<compile_context>
chip_gen: v7x
topology: tpu7x:2x2x1
jax: 0.10.0
libtpu: 0.0.40
codegen_flags: <defaults>
</compile_context>

<pallas_src>
import numpy as np
import jax
import jax.numpy as jnp
from jax.experimental import pallas as pl
from jax.experimental.pallas import tpu as pltpu


# ----------------------------- parameter setup ------------------------------
def _gaussian_1d(window_size: int, sigma: float) -> np.ndarray:
    # matches torch: x = arange(ws) - ws//2 ; (+0.5 if even) ; exp(-x^2/(2s^2)); normalize
    x = np.arange(window_size, dtype=np.float32) - (window_size // 2)
    if window_size % 2 == 0:
        x = x + 0.5
    g = np.exp(-(x ** 2) / float(2.0 * sigma ** 2))
    return (g / g.sum()).astype(np.float32)


def _blur_matrix(n: int, window_size: int, sigma: float) -> np.ndarray:
    """(n, n) matrix M such that (M @ v) is the 1-D Gaussian cross-correlation
    of v (length n) with reflect padding (pad = (ws-1)//2) folded into the
    border rows.  blur2d(x) = M_h @ x @ M_w.T matches
    F.conv2d(F.pad(x, reflect), outer(g, g))."""
    g = _gaussian_1d(window_size, sigma)
    p = (window_size - 1) // 2
    M = np.zeros((n, n), dtype=np.float64)
    for i in range(n):
        for k in range(window_size):
            j = i + k - p
            if j < 0:
                j = -j                     # reflect, no edge repeat
            elif j >= n:
                j = 2 * (n - 1) - j
            M[i, j] += g[k]
    return M.astype(np.float32)


# ------------------------------- Pallas kernel -------------------------------
def _make_ssim_kernel(Nb: int, H: int, W: int, C1: float, C2: float, fast: bool):
    C1 = float(C1)
    C2 = float(C2)
    HIGHEST = jax.lax.Precision.HIGHEST

    def kernel(bw_ref, bv_ref, x1_ref, x2_ref, o_ref):
        f32 = jnp.float32
        if fast:
            # ---- lane-friendly path (H % 8 == 0 and W % 8 == 0) ----
            x1 = x1_ref[...].astype(f32).reshape(Nb * H, W)
            x2 = x2_ref[...].astype(f32).reshape(Nb * H, W)
            # One fused matmul stream for all five blur operands.
            stacked = jnp.concatenate(
                [x1, x2, x1 * x1, x2 * x2, x1 * x2], axis=0)       # (5*Nb*H, W)
            P = 5 * Nb
            # W-direction blur: one unbatched (P*H, W) x (W, W) MXU matmul.
            t = jnp.dot(stacked, bw_ref[...],
                        preferred_element_type=f32, precision=HIGHEST)
            # H-direction blur via transpose sandwich: (P*W, H) x (H, H).
            t = jnp.transpose(t.reshape(P, H, W), (0, 2, 1)).reshape(P * W, H)
            u = jnp.dot(t, bv_ref[...],                            # bv_ref = Mv^T
                        preferred_element_type=f32, precision=HIGHEST)
            # Blurred stats are now laid out as (plane, w, h); SSIM math is
            # elementwise, so compute there and transpose only the result.
            G = Nb * W
            mu1 = u[0 * G:1 * G]
            mu2 = u[1 * G:2 * G]
            e11 = u[2 * G:3 * G]
            e22 = u[3 * G:4 * G]
            e12 = u[4 * G:5 * G]
        else:
            # ---- generic fallback (no in-kernel reshape/transpose) ----
            x1 = x1_ref[...].astype(f32)                           # (Nb, H, W)
            x2 = x2_ref[...].astype(f32)
            stacked = jnp.concatenate(
                [x1, x2, x1 * x1, x2 * x2, x1 * x2], axis=0)       # (5*Nb, H, W)
            bwb = jnp.broadcast_to(bw_ref[...], (5 * Nb, W, W))
            bvb = jnp.broadcast_to(bv_ref[...], (5 * Nb, H, H))    # bv_ref = Mv
            t = jnp.einsum('nhw,nwj->nhj', stacked, bwb,
                           preferred_element_type=f32, precision=HIGHEST)
            u = jnp.einsum('nik,nkw->niw', bvb, t,
                           preferred_element_type=f32, precision=HIGHEST)
            mu1 = u[0 * Nb:1 * Nb]
            mu2 = u[1 * Nb:2 * Nb]
            e11 = u[2 * Nb:3 * Nb]
            e22 = u[3 * Nb:4 * Nb]
            e12 = u[4 * Nb:5 * Nb]

        mu1_sq = mu1 * mu1
        mu2_sq = mu2 * mu2
        mu1_mu2 = mu1 * mu2
        sigma1_sq = e11 - mu1_sq
        sigma2_sq = e22 - mu2_sq
        sigma12 = e12 - mu1_mu2

        num = (2.0 * mu1_mu2 + C1) * (2.0 * sigma12 + C2)
        den = (mu1_sq + mu2_sq + C1) * (sigma1_sq + sigma2_sq + C2)
        # EUP approximate reciprocal + one Newton step (restores ~f32 accuracy).
        r = pl.reciprocal(den, approx=True)
        r = r * (2.0 - den * r)
        ssim_map = jnp.clip(num * r, 0.0, 1.0)

        if fast:
            ssim_map = jnp.transpose(ssim_map.reshape(Nb, W, H), (0, 2, 1))
        o_ref[...] = ssim_map.astype(o_ref.dtype)

    return kernel


# --------------------------------- wrapper -----------------------------------
def _tpu_vmem_capacity() -> int:
    try:
        cap = int(pltpu.get_tpu_info().vmem_capacity_bytes)
        if cap > 0:
            return cap
    except Exception:
        pass
    return 64 << 20          # conservative default (v7x-sized)


def _per_plane_bytes(H: int, W: int, in_itemsize: int) -> int:
    # 2 pipeline buffers x (2 inputs + 1 output) at the input dtype, plus
    # ~14 live f32 planes of in-kernel temps (5 stacked + 5 blurred + tail).
    return 2 * 3 * H * W * in_itemsize + 14 * H * W * 4


def _pick_nb(N: int, H: int, W: int, in_itemsize: int,
             vmem_cap: int, two_core_hint: bool) -> int:
    per_plane = _per_plane_bytes(H, W, in_itemsize)
    fixed = 2 * 2 * (H * H + W * W) * 4 + (2 << 20)   # blur-matrix buffers + slack
    budget = max(int(0.55 * vmem_cap) - fixed, per_plane)
    cap = max(1, budget // per_plane)
    steps = -(-N // cap)                               # cdiv
    if two_core_hint and N >= 2:
        # v7x: 2 TensorCores per chip -> even number of >= 2 grid steps.
        steps = max(steps, 2)
        if steps % 2 == 1 and steps < N:
            steps += 1
    steps = max(1, min(steps, N))
    return -(-N // steps)


def ssim(img1, img2, window_size: int = 5, reduction: str = "none",
         max_val: float = 1.0):
    if img1.ndim != 4 or img1.shape != img2.shape:
        raise ValueError("expect matching BxCxHxW inputs")
    if window_size % 2 == 0 or window_size <= 0:
        # torch reference (get_gaussian_kernel1d) also rejects even sizes.
        raise ValueError("window_size must be an odd positive integer")
    B, C, H, W = img1.shape
    pad = (window_size - 1) // 2
    if pad >= H or pad >= W:
        raise ValueError("window too large for reflect padding")

    C1 = (0.01 * max_val) ** 2
    C2 = (0.03 * max_val) ** 2

    in_dtype = img1.dtype
    if not jnp.issubdtype(in_dtype, jnp.floating):
        img1 = img1.astype(jnp.float32)
        img2 = img2.astype(jnp.float32)
        in_dtype = jnp.float32

    N = B * C
    x1 = img1.reshape(N, H, W)      # metadata-only reshape; dtype unchanged
    x2 = img2.reshape(N, H, W)

    # Reflect-pad Gaussian blur folded into small dense matrices:
    #   blur2d(x) = Mv @ x @ Mw^T   (per plane)
    Mv = _blur_matrix(H, window_size, 1.5)           # blur along H
    Mw = _blur_matrix(W, window_size, 1.5)           # blur along W
    fast = (H % 8 == 0) and (W % 8 == 0)             # layout-trivial reshapes
    bw_arg = jnp.asarray(Mw.T)                       # right-multiply form
    bv_arg = jnp.asarray(Mv.T if fast else Mv)

    vmem_cap = _tpu_vmem_capacity()
    two_core = vmem_cap <= (68 << 20)                # v7x heuristic (64 MiB, 2 TCs)
    itemsize = jnp.dtype(in_dtype).itemsize
    Nb = _pick_nb(N, H, W, itemsize, vmem_cap, two_core)
    grid = (pl.cdiv(N, Nb),)

    est = Nb * _per_plane_bytes(H, W, itemsize) \
        + 2 * 2 * (H * H + W * W) * 4 + (2 << 20)
    vmem_limit = int(min(int(0.9 * vmem_cap), max(est, 32 << 20)))

    kernel = _make_ssim_kernel(Nb, H, W, C1, C2, fast)
    out = pl.pallas_call(
        kernel,
        out_shape=jax.ShapeDtypeStruct((N, H, W), in_dtype),
        grid=grid,
        in_specs=[
            pl.BlockSpec((W, W), lambda i: (0, 0)),           # Mw^T
            pl.BlockSpec((H, H), lambda i: (0, 0)),           # Mv^T (or Mv)
            pl.BlockSpec((Nb, H, W), lambda i: (i, 0, 0)),    # img1 planes
            pl.BlockSpec((Nb, H, W), lambda i: (i, 0, 0)),    # img2 planes
        ],
        out_specs=pl.BlockSpec((Nb, H, W), lambda i: (i, 0, 0)),
        compiler_params=pltpu.CompilerParams(
            dimension_semantics=("parallel",),
            vmem_limit_bytes=vmem_limit,
        ),
    )(bw_arg, bv_arg, x1, x2)

    loss = out.reshape(B, C, H, W)
    if reduction == "mean":
        loss = jnp.mean(loss)
    elif reduction == "sum":
        loss = jnp.sum(loss)
    # reduction == 'none': full (B, C, H, W) clamped SSIM map
    return loss


# ------------------------- pure-JAX reference (check) ------------------------
def _ssim_reference(img1, img2, window_size=5, max_val=1.0):
    B, C, H, W = img1.shape
    p = (window_size - 1) // 2
    g = _gaussian_1d(window_size, 1.5)
    w2d = jnp.asarray(np.outer(g, g).astype(np.float32))
    x1 = img1.reshape(B * C, H, W).astype(jnp.float32)
    x2 = img2.reshape(B * C, H, W).astype(jnp.float32)

    def blur(x):
        xp = jnp.pad(x, ((0, 0), (p, p), (p, p)), mode="reflect")
        acc = jnp.zeros_like(x)
        for di in range(window_size):
            for dj in range(window_size):
                acc = acc + w2d[di, dj] * xp[:, di:di + H, dj:dj + W]
        return acc

    C1 = (0.01 * max_val) ** 2
    C2 = (0.03 * max_val) ** 2
    mu1, mu2 = blur(x1), blur(x2)
    s11 = blur(x1 * x1) - mu1 * mu1
    s22 = blur(x2 * x2) - mu2 * mu2
    s12 = blur(x1 * x2) - mu1 * mu2
    m = ((2 * mu1 * mu2 + C1) * (2 * s12 + C2)) / \
        ((mu1 * mu1 + mu2 * mu2 + C1) * (s11 + s22 + C2))
    return jnp.clip(m, 0.0, 1.0).reshape(B, C, H, W)


# ----------------------------------- main ------------------------------------
if __name__ == "__main__":
    key = jax.random.PRNGKey(0)
    k1, k2 = jax.random.split(key)
    B, C, H, W = 2, 4, 16, 16
    img1 = jax.random.uniform(k1, (B, C, H, W), dtype=jnp.float32)
    img2 = jax.random.uniform(k2, (B, C, H, W), dtype=jnp.float32)

    out = ssim(img1, img2, window_size=5, reduction="none", max_val=1.0)
    out = jax.block_until_ready(out)
    assert out.shape == (B, C, H, W)
    assert bool(jnp.all(jnp.isfinite(out)))

    ref = _ssim_reference(img1, img2, window_size=5, max_val=1.0)
    err = float(jnp.max(jnp.abs(out.astype(jnp.float32) - ref)))
    assert err < 1e-4, f"max abs error vs reference: {err}"
    print("KERNEL_OK")
</pallas_src>

<mosaic_0001>
module attributes {stable_mosaic.version = 11 : i64} {
  func.func @kernel(%arg0: i32, %arg1: memref<16x16xf32, #tpu.memory_space<vmem>>, %arg2: memref<16x16xf32, #tpu.memory_space<vmem>>, %arg3: memref<4x16x16xf32, #tpu.memory_space<vmem>>, %arg4: memref<4x16x16xf32, #tpu.memory_space<vmem>>, %arg5: memref<4x16x16xf32, #tpu.memory_space<vmem>>) attributes {dimension_semantics = [#tpu.dimension_semantics<parallel>], iteration_bounds = array<i64: 2>, scalar_prefetch = 0 : i64, scratch_operands = 0 : i64, tpu.core_type = #tpu.core_type<tc>, window_params = [{pipeline_mode = #tpu.pipeline_mode<synchronous>, transform_indices = @transform_0, window_bounds = array<i64: 16, 16>}, {pipeline_mode = #tpu.pipeline_mode<synchronous>, transform_indices = @transform_1, window_bounds = array<i64: 16, 16>}, {transform_indices = @transform_2, window_bounds = array<i64: 4, 16, 16>}, {transform_indices = @transform_3, window_bounds = array<i64: 4, 16, 16>}, {transform_indices = @transform_4, window_bounds = array<i64: 4, 16, 16>}]} {
    %c0 = arith.constant 0 : index
    %c0_0 = arith.constant 0 : index
    %c0_1 = arith.constant 0 : index
    %0 = vector.load %arg3[%c0, %c0_0, %c0_1] : memref<4x16x16xf32, #tpu.memory_space<vmem>>, vector<4x16x16xf32>
    %1 = vector.shape_cast %0 : vector<4x16x16xf32> to vector<64x16xf32>
    %c0_2 = arith.constant 0 : index
    %c0_3 = arith.constant 0 : index
    %c0_4 = arith.constant 0 : index
    %2 = vector.load %arg4[%c0_2, %c0_3, %c0_4] : memref<4x16x16xf32, #tpu.memory_space<vmem>>, vector<4x16x16xf32>
    %3 = vector.shape_cast %2 : vector<4x16x16xf32> to vector<64x16xf32>
    %4 = arith.mulf %1, %1 : vector<64x16xf32>
    %5 = arith.mulf %3, %3 : vector<64x16xf32>
    %6 = arith.mulf %1, %3 : vector<64x16xf32>
    %7 = tpu.concatenate %1, %3, %4, %5, %6 in 0 : vector<64x16xf32>, vector<64x16xf32>, vector<64x16xf32>, vector<64x16xf32>, vector<64x16xf32> -> vector<320x16xf32>
    %c0_5 = arith.constant 0 : index
    %c0_6 = arith.constant 0 : index
    %8 = vector.load %arg1[%c0_5, %c0_6] : memref<16x16xf32, #tpu.memory_space<vmem>>, vector<16x16xf32>
    %cst = arith.constant dense<0.000000e+00> : vector<320x16xf32>
    %9 = tpu.matmul %7, %8, %cst {dimension_numbers = #tpu.dot_dimension_numbers<[1], [0], [0], [1], [0, 0, 1, 1], [], []>, precision = #tpu.contract_precision<fp32>} : vector<320x16xf32>, vector<16x16xf32>, vector<320x16xf32> -> vector<320x16xf32>
    %10 = vector.shape_cast %9 : vector<320x16xf32> to vector<20x16x16xf32>
    %11 = tpu.transpose %10, [0, 2, 1] : vector<20x16x16xf32> -> vector<20x16x16xf32>
    %12 = vector.shape_cast %11 : vector<20x16x16xf32> to vector<320x16xf32>
    %c0_7 = arith.constant 0 : index
    %c0_8 = arith.constant 0 : index
    %13 = vector.load %arg2[%c0_7, %c0_8] : memref<16x16xf32, #tpu.memory_space<vmem>>, vector<16x16xf32>
    %cst_9 = arith.constant dense<0.000000e+00> : vector<320x16xf32>
    %14 = tpu.matmul %12, %13, %cst_9 {dimension_numbers = #tpu.dot_dimension_numbers<[1], [0], [0], [1], [0, 0, 1, 1], [], []>, precision = #tpu.contract_precision<fp32>} : vector<320x16xf32>, vector<16x16xf32>, vector<320x16xf32> -> vector<320x16xf32>
    %15 = vector.extract_strided_slice %14 {offsets = [0, 0], sizes = [64, 16], strides = [1, 1]} : vector<320x16xf32> to vector<64x16xf32>
    %16 = vector.extract_strided_slice %14 {offsets = [64, 0], sizes = [64, 16], strides = [1, 1]} : vector<320x16xf32> to vector<64x16xf32>
    %17 = vector.extract_strided_slice %14 {offsets = [128, 0], sizes = [64, 16], strides = [1, 1]} : vector<320x16xf32> to vector<64x16xf32>
    %18 = vector.extract_strided_slice %14 {offsets = [192, 0], sizes = [64, 16], strides = [1, 1]} : vector<320x16xf32> to vector<64x16xf32>
    %19 = vector.extract_strided_slice %14 {offsets = [256, 0], sizes = [64, 16], strides = [1, 1]} : vector<320x16xf32> to vector<64x16xf32>
    %20 = arith.mulf %15, %15 : vector<64x16xf32>
    %21 = arith.mulf %16, %16 : vector<64x16xf32>
    %22 = arith.mulf %15, %16 : vector<64x16xf32>
    %23 = arith.subf %17, %20 : vector<64x16xf32>
    %24 = arith.subf %18, %21 : vector<64x16xf32>
    %25 = arith.subf %19, %22 : vector<64x16xf32>
    %cst_10 = arith.constant 2.000000e+00 : f32
    %26 = vector.broadcast %cst_10 : f32 to vector<64x16xf32>
    %27 = arith.mulf %26, %22 : vector<64x16xf32>
    %cst_11 = arith.constant 9.99999974E-5 : f32
    %28 = vector.broadcast %cst_11 : f32 to vector<64x16xf32>
    %29 = arith.addf %27, %28 : vector<64x16xf32>
    %cst_12 = arith.constant 2.000000e+00 : f32
    %30 = vector.broadcast %cst_12 : f32 to vector<64x16xf32>
    %31 = arith.mulf %30, %25 : vector<64x16xf32>
    %cst_13 = arith.constant 8.99999984E-4 : f32
    %32 = vector.broadcast %cst_13 : f32 to vector<64x16xf32>
    %33 = arith.addf %31, %32 : vector<64x16xf32>
    %34 = arith.mulf %29, %33 : vector<64x16xf32>
    %35 = arith.addf %20, %21 : vector<64x16xf32>
    %cst_14 = arith.constant 9.99999974E-5 : f32
    %36 = vector.broadcast %cst_14 : f32 to vector<64x16xf32>
    %37 = arith.addf %35, %36 : vector<64x16xf32>
    %38 = arith.addf %23, %24 : vector<64x16xf32>
    %cst_15 = arith.constant 8.99999984E-4 : f32
    %39 = vector.broadcast %cst_15 : f32 to vector<64x16xf32>
    %40 = arith.addf %38, %39 : vector<64x16xf32>
    %41 = arith.mulf %37, %40 : vector<64x16xf32>
    %42 = tpu.reciprocal %41 {approx = true} : vector<64x16xf32> -> vector<64x16xf32>
    %43 = arith.mulf %41, %42 : vector<64x16xf32>
    %cst_16 = arith.constant 2.000000e+00 : f32
    %44 = vector.broadcast %cst_16 : f32 to vector<64x16xf32>
    %45 = arith.subf %44, %43 : vector<64x16xf32>
    %46 = arith.mulf %42, %45 : vector<64x16xf32>
    %47 = arith.mulf %34, %46 : vector<64x16xf32>
    %cst_17 = arith.constant 0.000000e+00 : f32
    %cst_18 = arith.constant 1.000000e+00 : f32
    %48 = vector.broadcast %cst_17 : f32 to vector<64x16xf32>
    %49 = arith.maximumf %48, %47 : vector<64x16xf32>
    %50 = vector.broadcast %cst_18 : f32 to vector<64x16xf32>
    %51 = arith.minimumf %50, %49 : vector<64x16xf32>
    %52 = vector.shape_cast %51 : vector<64x16xf32> to vector<4x16x16xf32>
    %53 = tpu.transpose %52, [0, 2, 1] : vector<4x16x16xf32> -> vector<4x16x16xf32>
    %c0_19 = arith.constant 0 : index
    %c0_20 = arith.constant 0 : index
    %c0_21 = arith.constant 0 : index
    %54 = vector.load %arg5[%c0_19, %c0_20, %c0_21] : memref<4x16x16xf32, #tpu.memory_space<vmem>>, vector<4x16x16xf32>
    tpu.vector_store %arg5[%c0_19, %c0_20, %c0_21], %53 {strides = array<i32>} : memref<4x16x16xf32, #tpu.memory_space<vmem>>, vector<4x16x16xf32>,
    return
  }
  func.func @transform_0(%arg0: i32) -> (i32, i32) {
    %c0_i32 = arith.constant 0 : i32
    %c0_i32_0 = arith.constant 0 : i32
    %c0_i32_1 = arith.constant 0 : i32
    return %c0_i32, %c0_i32_0 : i32, i32
  }
  func.func @transform_1(%arg0: i32) -> (i32, i32) {
    %c0_i32 = arith.constant 0 : i32
    %c0_i32_0 = arith.constant 0 : i32
    %c0_i32_1 = arith.constant 0 : i32
    return %c0_i32, %c0_i32_0 : i32, i32
  }
  func.func @transform_2(%arg0: i32) -> (i32, i32, i32) {
    %c0_i32 = arith.constant 0 : i32
    %c0_i32_0 = arith.constant 0 : i32
    %c0_i32_1 = arith.constant 0 : i32
    return %arg0, %c0_i32, %c0_i32_0 : i32, i32, i32
  }
  func.func @transform_3(%arg0: i32) -> (i32, i32, i32) {
    %c0_i32 = arith.constant 0 : i32
    %c0_i32_0 = arith.constant 0 : i32
    %c0_i32_1 = arith.constant 0 : i32
    return %arg0, %c0_i32, %c0_i32_0 : i32, i32, i32
  }
  func.func @transform_4(%arg0: i32) -> (i32, i32, i32) {
    %c0_i32 = arith.constant 0 : i32
    %c0_i32_0 = arith.constant 0 : i32
    %c0_i32_1 = arith.constant 0 : i32
    return %arg0, %c0_i32, %c0_i32_0 : i32, i32, i32
  }
}

</mosaic_0001>

<llo_original>
// kernel: tpu_custom_call.1
$region0: #{tpu_custom_call.1}
  #allocation0 [shape = 'u32[]', space=smem, size = 0x4, offset = 0x4, fixed_abs, tag = 'smem constant byte address 0x4 - core index']
  #allocation1 [shape = 'u32[144,128]{1,0:T(1,128)}', space=vmem, size = 0x12000, scoped, tag = 'internal scratch']
  %s0 = inlined_call_operand.hbm [shape: f32[16,16], index: 0, kind: input, shape index: {}]
  %s1 = inlined_call_operand.hbm [shape: f32[16,16], index: 1, kind: input, shape index: {}]
  %s2 = inlined_call_operand.hbm [shape: f32[8,16,16], index: 2, kind: input, shape index: {}]
  %s3 = inlined_call_operand.hbm [shape: f32[8,16,16], index: 3, kind: input, shape index: {}]
  %s4 = inlined_call_operand.hbm [shape: f32[8,16,16], index: 4, kind: output, shape index: {}]
  %s5 = sld [smem:[#allocation0]]
  $region65: #{tpu_custom_call.1} parent=0
    _
  %s7 = ssub.s32 1, %s5
  %s8 = scalar_select 0, %s7, %s5
  $region1: #{tpu_custom_call.1} parent=0
    #allocation2 [shape = 'u8[8192]{0}', space=vmem, size = 0x2000, scoped, tag = 'input window, operand 0, single buffered']
    #allocation3 [shape = 's32[2]{0}', space=sflag, size = 0x8, scoped, tag = 'scoped memory for tpu_custom_call.1']
    #allocation4 [shape = 's32[2]{0}', space=sflag, size = 0x8, scoped, tag = 'scoped memory for tpu_custom_call.1']
    #allocation5 [shape = 'u8[8192]{0}', space=vmem, size = 0x2000, scoped, tag = 'input window, operand 1, single buffered']
    #allocation6 [shape = 's32[1]{0}', space=sflag, size = 0x4, scoped, tag = 'scoped memory for tpu_custom_call.1']
    #allocation7 [shape = 'u8[65536]{0}', space=vmem, size = 0x10000, scoped, tag = 'input window, operand 2']
    #allocation8 [shape = 'u8[65536]{0}', space=vmem, size = 0x10000, scoped, tag = 'input window, operand 3']
    #allocation9 [shape = 'u8[65536]{0}', space=vmem, size = 0x10000, scoped, tag = 'output window, operand 0']
    %9 = vsyncpa [#allocation3], 0
    %10 = vsyncpa [#allocation6], 0
    %11 = vsyncpa [#allocation4], 0
    %s12 = scalar_lea.sflag [#allocation4], 1
    %13 = vsyncpa %s12, 0
    loop: start=0, step=1, limit=4
    $region2: #{tpu_custom_call.1} parent=1 // loop_pre_header
      _
    $region3: #{tpu_custom_call.1} parent=1 // loop_header
      %s15 = sphi 0, %s19
      %p16 = scmp.ge.s32.totalorder %s15, 4
      %s23 = sphi 0, %s23
      %s25 = sphi 0, %s23
      %s26 = sphi 0, %s25
      %s40 = sphi 0, %s26
      %s44 = sphi 0, %s44
      %s46 = sphi 0, %s44
      %s47 = sphi 0, %s46
      %s61 = sphi 0, %s47
      %s67 = sphi 0, %s69
      %s70 = sphi 0, %s67
      %s71 = sphi 0, %s70
      %s87 = sphi 0, %s71
      %s93 = sphi 0, %s95
      %s96 = sphi 0, %s93
      %s97 = sphi 0, %s96
      %s113 = sphi 0, %s97
      %s119 = sphi 0, %s121
      %s122 = sphi 0, %s119
      %s123 = sphi 0, %s122
      %s139 = sphi 0, %s123
    $region4: #{tpu_custom_call.1} parent=1 // loop_header_branch
      %18 = sbr.rel (%p16) target = $region8
    $region5: #{tpu_custom_call.1} parent=1 // loop_body
      %s20 = ssub.s32 %s15, 1
      %s21 = ssub.s32 %s15, 2
      %s22 = sadd.s32 %s15, 1
      %s24 = sadd.s32 %s23, 1
      %p27 = scmp.eq.s32.totalorder %s15, 1
      %p28 = scmp.ne.s32.totalorder %s23, %s25
      %p29 = scmp.eq.s32.totalorder %s15, 0
      %p30 = por %p28, %p29
      %p31 = scmp.ne.s32.totalorder %s23, %s25
      %p32 = scmp.eq.s32.totalorder %s20, 1
      %p33 = por %p31, %p32
      %p34 = scmp.ne.s32.totalorder %s25, %s26
      %p35 = scmp.eq.s32.totalorder %s20, 0
      %p36 = por %p34, %p35
      %p37 = scmp.ne.s32.totalorder %s25, %s26
      %p38 = scmp.eq.s32.totalorder %s21, 1
      %p39 = por %p37, %p38
      %p41 = scmp.ne.s32.totalorder %s26, %s40
      %p42 = scmp.eq.s32.totalorder %s21, 0
      %p43 = por %p41, %p42
      %s45 = sadd.s32 %s44, 1
      %p48 = scmp.eq.s32.totalorder %s15, 1
      %p49 = scmp.ne.s32.totalorder %s44, %s46
      %p50 = scmp.eq.s32.totalorder %s15, 0
      %p51 = por %p49, %p50
      %p52 = scmp.ne.s32.totalorder %s44, %s46
      %p53 = scmp.eq.s32.totalorder %s20, 1
      %p54 = por %p52, %p53
      %p55 = scmp.ne.s32.totalorder %s46, %s47
      %p56 = scmp.eq.s32.totalorder %s20, 0
      %p57 = por %p55, %p56
      %p58 = scmp.ne.s32.totalorder %s46, %s47
      %p59 = scmp.eq.s32.totalorder %s21, 1
      %p60 = por %p58, %p59
      %p62 = scmp.ne.s32.totalorder %s47, %s61
      %p63 = scmp.eq.s32.totalorder %s21, 0
      %p64 = por %p62, %p63
      %s65 = ssub.s32 %s15, %s22
      %p66 = scmp.eq.s32.totalorder %s65, 0
      %s68 = sadd.s32 %s67, 1
      %s69 = scalar_select %p66, %s67, %s68
      %p72 = pneg %p66
      %p73 = scmp.eq.s32.totalorder %s15, 1
      %p74 = por %p72, %p73
      %p75 = scmp.ne.s32.totalorder %s67, %s70
      %p76 = scmp.eq.s32.totalorder %s15, 0
      %p77 = por %p75, %p76
      %p78 = scmp.ne.s32.totalorder %s67, %s70
      %p79 = scmp.eq.s32.totalorder %s20, 1
      %p80 = por %p78, %p79
      %p81 = scmp.ne.s32.totalorder %s70, %s71
      %p82 = scmp.eq.s32.totalorder %s20, 0
      %p83 = por %p81, %p82
      %p84 = scmp.ne.s32.totalorder %s70, %s71
      %p85 = scmp.eq.s32.totalorder %s21, 1
      %p86 = por %p84, %p85
      %p88 = scmp.ne.s32.totalorder %s71, %s87
      %p89 = scmp.eq.s32.totalorder %s21, 0
      %p90 = por %p88, %p89
      %s91 = ssub.s32 %s15, %s22
      %p92 = scmp.eq.s32.totalorder %s91, 0
      %s94 = sadd.s32 %s93, 1
      %s95 = scalar_select %p92, %s93, %s94
      %p98 = pneg %p92
      %p99 = scmp.eq.s32.totalorder %s15, 1
      %p100 = por %p98, %p99
      %p101 = scmp.ne.s32.totalorder %s93, %s96
      %p102 = scmp.eq.s32.totalorder %s15, 0
      %p103 = por %p101, %p102
      %p104 = scmp.ne.s32.totalorder %s93, %s96
      %p105 = scmp.eq.s32.totalorder %s20, 1
      %p106 = por %p104, %p105
      %p107 = scmp.ne.s32.totalorder %s96, %s97
      %p108 = scmp.eq.s32.totalorder %s20, 0
      %p109 = por %p107, %p108
      %p110 = scmp.ne.s32.totalorder %s96, %s97
      %p111 = scmp.eq.s32.totalorder %s21, 1
      %p112 = por %p110, %p111
      %p114 = scmp.ne.s32.totalorder %s97, %s113
      %p115 = scmp.eq.s32.totalorder %s21, 0
      %p116 = por %p114, %p115
      %s117 = ssub.s32 %s15, %s22
      %p118 = scmp.eq.s32.totalorder %s117, 0
      %s120 = sadd.s32 %s119, 1
      %s121 = scalar_select %p118, %s119, %s120
      %p124 = pneg %p118
      %p125 = scmp.eq.s32.totalorder %s15, 1
      %p126 = por %p124, %p125
      %p127 = scmp.ne.s32.totalorder %s119, %s122
      %p128 = scmp.eq.s32.totalorder %s15, 0
      %p129 = por %p127, %p128
      %p130 = scmp.ne.s32.totalorder %s119, %s122
      %p131 = scmp.eq.s32.totalorder %s20, 1
      %p132 = por %p130, %p131
      %p133 = scmp.ne.s32.totalorder %s122, %s123
      %p134 = scmp.eq.s32.totalorder %s20, 0
      %p135 = por %p133, %p134
      %p136 = scmp.ne.s32.totalorder %s122, %s123
      %p137 = scmp.eq.s32.totalorder %s21, 1
      %p138 = por %p136, %p137
      %p140 = scmp.ne.s32.totalorder %s123, %s139
      %p141 = scmp.eq.s32.totalorder %s21, 0
      %p142 = por %p140, %p141
      %p143 = scmp.le.s32.totalorder 1, %s15
      %p144 = scmp.lt.s32.totalorder %s15, 3
      %p145 = pnand %p143, %p144
      %p146 = pneg %p145
      // Predicated region
      $region9: #{tpu_custom_call.1} parent=5 // pred_check
        _
      $region10: #{tpu_custom_call.1} parent=5 // pred_check_branch
        %148 = sbr.rel (%p145) target = $region12
      $region11: #{tpu_custom_call.1} parent=5 // pred_region
        %s149 = ssub.s32 %s15, 1
        // Predicated region
        $region13: #{tpu_custom_call.1} parent=11 // pred_check
          %p150 = pneg %p36
        $region14: #{tpu_custom_call.1} parent=11 // pred_check_branch
          %152 = sbr.rel (%p150) target = $region16
        $region15: #{tpu_custom_call.1} parent=11 // pred_region
          %s154 = ssub.s32 256, 256
          %155 = vsyncadd [#allocation3], %s154
          %s156 = sshll.u32 [#allocation2], 4
          %s157 = int_to_ptr.vmem [resolvable:$true] %s156
          %162 = dma.hbm_to_vmem [thread:$0]  %s0, 256, %s157, [#allocation3], 128, 128, 8
        $region16: #{tpu_custom_call.1} parent=11 // pred_fallthru
          _
        // Predicated region
        $region17: #{tpu_custom_call.1} parent=11 // pred_check
          %p163 = pneg %p57
        $region18: #{tpu_custom_call.1} parent=11 // pred_check_branch
          %165 = sbr.rel (%p163) target = $region20
        $region19: #{tpu_custom_call.1} parent=11 // pred_region
          %s167 = ssub.s32 256, 256
          %168 = vsyncadd [#allocation6], %s167
          %s169 = sshll.u32 [#allocation5], 4
          %s170 = int_to_ptr.vmem [resolvable:$true] %s169
          %175 = dma.hbm_to_vmem [thread:$0]  %s1, 256, %s170, [#allocation6], 128, 128, 8
        $region20: #{tpu_custom_call.1} parent=11 // pred_fallthru
          _
      $region12: #{tpu_custom_call.1} parent=5 // pred_fallthru
        _
      %p176 = scmp.lt.s32.totalorder %s15, 2
      // Predicated region
      $region21: #{tpu_custom_call.1} parent=5 // pred_check
        %p177 = pneg %p176
      $region22: #{tpu_custom_call.1} parent=5 // pred_check_branch
        %179 = sbr.rel (%p177) target = $region24
      $region23: #{tpu_custom_call.1} parent=5 // pred_region
        // Predicated region
        $region25: #{tpu_custom_call.1} parent=23 // pred_check
          %p180 = pneg %p77
        $region26: #{tpu_custom_call.1} parent=23 // pred_check_branch
          %182 = sbr.rel (%p180) target = $region28
        $region27: #{tpu_custom_call.1} parent=23 // pred_region
          %s183 = sand.u32 %s15, 1
          %s184 = scalar_lea.sflag [#allocation3], %s183
          %s185 = sand.u32 %s67, 1
          %s186 = smul.addr %s185, 64
          %s187 = scalar_lea.vmem [#allocation7], %s186
          %s188 = smul.u32 4, %s15
          %s190 = ssub.s32 1024, 1024
          %191 = vsyncadd %s184, %s190
          %s192 = smul.addr %s188, 2
          %s193 = smul.addr %s192, 128
          %s194 = scalar_lea.hbm %s2, %s193
          %s195 = sshll.u32 %s187, 4
          %s196 = int_to_ptr.vmem [resolvable:$true] %s195
          %201 = dma.hbm_to_vmem [thread:$0]  %s194, 1024, %s196, %s184, 128, 128, 8
        $region28: #{tpu_custom_call.1} parent=23 // pred_fallthru
          _
        // Predicated region
        $region29: #{tpu_custom_call.1} parent=23 // pred_check
          %p202 = pneg %p103
        $region30: #{tpu_custom_call.1} parent=23 // pred_check_branch
          %204 = sbr.rel (%p202) target = $region32
        $region31: #{tpu_custom_call.1} parent=23 // pred_region
          %s205 = sand.u32 %s15, 1
          %s206 = scalar_lea.sflag [#allocation3], %s205
          %s207 = sand.u32 %s93, 1
          %s208 = smul.addr %s207, 64
          %s209 = scalar_lea.vmem [#allocation8], %s208
          %s210 = smul.u32 4, %s15
          %s212 = ssub.s32 1024, 1024
          %213 = vsyncadd %s206, %s212
          %s214 = smul.addr %s210, 2
          %s215 = smul.addr %s214, 128
          %s216 = scalar_lea.hbm %s3, %s215
          %s217 = sshll.u32 %s209, 4
          %s218 = int_to_ptr.vmem [resolvable:$true] %s217
          %223 = dma.hbm_to_vmem [thread:$0]  %s216, 1024, %s218, %s206, 128, 128, 8
        $region32: #{tpu_custom_call.1} parent=23 // pred_fallthru
          _
      $region24: #{tpu_custom_call.1} parent=5 // pred_fallthru
        _
      %p224 = scmp.le.s32.totalorder 1, %s15
      %p225 = scmp.lt.s32.totalorder %s15, 3
      %p226 = pnand %p224, %p225
      %p227 = pneg %p226
      // Predicated region
      $region33: #{tpu_custom_call.1} parent=5 // pred_check
        _
      $region34: #{tpu_custom_call.1} parent=5 // pred_check_branch
        %229 = sbr.rel (%p226) target = $region36
      $region35: #{tpu_custom_call.1} parent=5 // pred_region
        %s230 = ssub.s32 %s15, 1
        // Predicated region
        $region37: #{tpu_custom_call.1} parent=35 // pred_check
          %p231 = pneg %p36
        $region38: #{tpu_custom_call.1} parent=35 // pred_check_branch
          %233 = sbr.rel (%p231) target = $region40
        $region39: #{tpu_custom_call.1} parent=35 // pred_region
          %234 = dma.done [#allocation3], 256
        $region40: #{tpu_custom_call.1} parent=35 // pred_fallthru
          _
        // Predicated region
        $region41: #{tpu_custom_call.1} parent=35 // pred_check
          %p235 = pneg %p57
        $region42: #{tpu_custom_call.1} parent=35 // pred_check_branch
          %237 = sbr.rel (%p235) target = $region44
        $region43: #{tpu_custom_call.1} parent=35 // pred_region
          %238 = dma.done [#allocation6], 256
        $region44: #{tpu_custom_call.1} parent=35 // pred_fallthru
          _
        %s239 = sand.u32 %s20, 1
        %s240 = scalar_lea.sflag [#allocation3], %s239
        %s241 = sand.u32 %s70, 1
        %s242 = smul.addr %s241, 64
        %s243 = scalar_lea.vmem [#allocation7], %s242
        // Predicated region
        $region45: #{tpu_custom_call.1} parent=35 // pred_check
          %p244 = pneg %p83
        $region46: #{tpu_custom_call.1} parent=35 // pred_check_branch
          %246 = sbr.rel (%p244) target = $region48
        $region47: #{tpu_custom_call.1} parent=35 // pred_region
          %247 = dma.done %s240, 1024
        $region48: #{tpu_custom_call.1} parent=35 // pred_fallthru
          _
        %s248 = sand.u32 %s20, 1
        %s249 = scalar_lea.sflag [#allocation3], %s248
        %s250 = sand.u32 %s96, 1
        %s251 = smul.addr %s250, 64
        %s252 = scalar_lea.vmem [#allocation8], %s251
        // Predicated region
        $region49: #{tpu_custom_call.1} parent=35 // pred_check
          %p253 = pneg %p109
        $region50: #{tpu_custom_call.1} parent=35 // pred_check_branch
          %255 = sbr.rel (%p253) target = $region52
        $region51: #{tpu_custom_call.1} parent=35 // pred_region
          %256 = dma.done %s249, 1024
        $region52: #{tpu_custom_call.1} parent=35 // pred_fallthru
          _
        %p257 = pneg %p36
        %p258 = pneg %p33
        %p259 = pneg %p57
        %p260 = pneg %p54
        %s261 = sand.u32 %s20, 1
        %s262 = scalar_lea.sflag [#allocation3], %s261
        %s263 = sand.u32 %s70, 1
        %s264 = smul.addr %s263, 64
        %s265 = scalar_lea.vmem [#allocation7], %s264
        %p266 = pneg %p83
        %p267 = pneg %p80
        %s268 = sand.u32 %s20, 1
        %s269 = scalar_lea.sflag [#allocation3], %s268
        %s270 = sand.u32 %s96, 1
        %s271 = smul.addr %s270, 64
        %s272 = scalar_lea.vmem [#allocation8], %s271
        %p273 = pneg %p109
        %p274 = pneg %p106
        %p275 = pneg %p135
        %p276 = pneg %p132
        %s277 = sand.u32 %s122, 1
        %s278 = scalar_lea.sflag [#allocation4], %s277
        %s279 = sand.u32 %s122, 1
        %s280 = smul.addr %s279, 64
        %s281 = scalar_lea.vmem [#allocation9], %s280
        %s282 = smul.u32 4, %s20
        %s283 = smul.u32 4, %s20
        %s284 = smul.u32 4, %s20
        %v285 = vld [vmem:[%s243] sm:$0xff]
        %v286 = vld [vmem:[%s243 + $0x8] sm:$0xff]
        %v287 = vld [vmem:[%s243 + $0x10] sm:$0xff]
        %v288 = vld [vmem:[%s243 + $0x18] sm:$0xff]
        %v289 = vld [vmem:[%s243 + $0x20] sm:$0xff]
        %v290 = vld [vmem:[%s243 + $0x28] sm:$0xff]
        %v291 = vld [vmem:[%s243 + $0x30] sm:$0xff]
        %v292 = vld [vmem:[%s243 + $0x38] sm:$0xff]
        %v293 = vld [vmem:[%s252] sm:$0xff]
        %v294 = vld [vmem:[%s252 + $0x8] sm:$0xff]
        %v295 = vld [vmem:[%s252 + $0x10] sm:$0xff]
        %v296 = vld [vmem:[%s252 + $0x18] sm:$0xff]
        %v297 = vld [vmem:[%s252 + $0x20] sm:$0xff]
        %v298 = vld [vmem:[%s252 + $0x28] sm:$0xff]
        %v299 = vld [vmem:[%s252 + $0x30] sm:$0xff]
        %v300 = vld [vmem:[%s252 + $0x38] sm:$0xff]
        %v301 = vmul.f32 %v285, %v285
        %v302 = vmul.f32 %v286, %v286
        %v303 = vmul.f32 %v287, %v287
        %v304 = vmul.f32 %v288, %v288
        %v305 = vmul.f32 %v289, %v289
        %v306 = vmul.f32 %v290, %v290
        %v307 = vmul.f32 %v291, %v291
        %v308 = vmul.f32 %v292, %v292
        %v309 = vmul.f32 %v293, %v293
        %v310 = vmul.f32 %v294, %v294
        %v311 = vmul.f32 %v295, %v295
        %v312 = vmul.f32 %v296, %v296
        %v313 = vmul.f32 %v297, %v297
        %v314 = vmul.f32 %v298, %v298
        %v315 = vmul.f32 %v299, %v299
        %v316 = vmul.f32 %v300, %v300
        %v317 = vmul.f32 %v285, %v293
        %v318 = vmul.f32 %v286, %v294
        %v319 = vmul.f32 %v287, %v295
        %v320 = vmul.f32 %v288, %v296
        %v321 = vmul.f32 %v289, %v297
        %v322 = vmul.f32 %v290, %v298
        %v323 = vmul.f32 %v291, %v299
        %v324 = vmul.f32 %v292, %v300
        %v325 = vld [vmem:[#allocation2] sm:$0xff]
        %v326 = vld [vmem:[#allocation2 + $0x8] sm:$0xff]
        %vm327 = vcmask 130048
        %v329 = vsel %vm327, %v285, 0
        %v332 = vsel %vm327, %v286, 0
        %v335 = vsel %vm327, %v287, 0
        %v338 = vsel %vm327, %v288, 0
        %v341 = vsel %vm327, %v289, 0
        %v344 = vsel %vm327, %v290, 0
        %v347 = vsel %vm327, %v291, 0
        %v350 = vsel %vm327, %v292, 0
        %v353 = vsel %vm327, %v293, 0
        %v356 = vsel %vm327, %v294, 0
        %v359 = vsel %vm327, %v295, 0
        %v362 = vsel %vm327, %v296, 0
        %v365 = vsel %vm327, %v297, 0
        %v368 = vsel %vm327, %v298, 0
        %v371 = vsel %vm327, %v299, 0
        %v374 = vsel %vm327, %v300, 0
        %v377 = vsel %vm327, %v301, 0
        %v380 = vsel %vm327, %v302, 0
        %v383 = vsel %vm327, %v303, 0
        %v386 = vsel %vm327, %v304, 0
        %v389 = vsel %vm327, %v305, 0
        %v392 = vsel %vm327, %v306, 0
        %v395 = vsel %vm327, %v307, 0
        %v398 = vsel %vm327, %v308, 0
        %v401 = vsel %vm327, %v309, 0
        %v404 = vsel %vm327, %v310, 0
        %v407 = vsel %vm327, %v311, 0
        %v410 = vsel %vm327, %v312, 0
        %v413 = vsel %vm327, %v313, 0
        %v416 = vsel %vm327, %v314, 0
        %v419 = vsel %vm327, %v315, 0
        %v422 = vsel %vm327, %v316, 0
        %v425 = vsel %vm327, %v317, 0
        %v428 = vsel %vm327, %v318, 0
        %v431 = vsel %vm327, %v319, 0
        %v434 = vsel %vm327, %v320, 0
        %v437 = vsel %vm327, %v321, 0
        %v440 = vsel %vm327, %v322, 0
        %v443 = vsel %vm327, %v323, 0
        %v446 = vsel %vm327, %v324, 0
        %448 = vmatprep.subr.mxu0 0.0
        %v449 = vand.u32 %v325, 4294901760
        %450 = vmatpush1.msra.mxu0 %v449
        %451 = vmatprep.subr.mxu0 0.0
        %v452 = vand.u32 %v326, 4294901760
        %453 = vmatpush1.msra.mxu0 %v452
        %454 = vmatprep.subr.mxu0 0.0
        %455 = vmatpush1.msra.mxu0 0.0
        %456 = vmatprep.subr.mxu0 0.0
        %457 = vmatpush1.msra.mxu0 0.0
        %458 = vmatprep.subr.mxu0 0.0
        %459 = vmatpush1.msra.mxu0 0.0
        %460 = vmatprep.subr.mxu0 0.0
        %461 = vmatpush1.msra.mxu0 0.0
        %462 = vmatprep.subr.mxu0 0.0
        %463 = vmatpush1.msra.mxu0 0.0
        %464 = vmatprep.subr.mxu0 0.0
        %465 = vmatpush1.msra.mxu0 0.0
        %466 = vmatprep.subr.mxu0 0.0
        %467 = vmatpush1.msra.mxu0 0.0
        %468 = vmatprep.subr.mxu0 0.0
        %469 = vmatpush1.msra.mxu0 0.0
        %470 = vmatprep.subr.mxu0 0.0
        %471 = vmatpush1.msra.mxu0 0.0
        %472 = vmatprep.subr.mxu0 0.0
        %473 = vmatpush1.msra.mxu0 0.0
        %474 = vmatprep.subr.mxu0 0.0
        %475 = vmatpush1.msra.mxu0 0.0
        %476 = vmatprep.subr.mxu0 0.0
        %477 = vmatpush1.msra.mxu0 0.0
        %478 = vmatprep.subr.mxu0 0.0
        %479 = vmatpush1.msra.mxu0 0.0
        %480 = vmatprep.subr.mxu0 0.0
        %481 = vmatpush1.msra.mxu0 0.0
        %482 = vmatprep.subr.mxu0 0.0
        %483 = vmatpush1.msra.mxu0 0.0
        %484 = vmatprep.subr.mxu0 0.0
        %485 = vmatpush1.msra.mxu0 0.0
        %486 = vmatprep.subr.mxu0 0.0
        %487 = vmatpush1.msra.mxu0 0.0
        %488 = vmatprep.subr.mxu0 0.0
        %489 = vmatpush1.msra.mxu0 0.0
        %490 = vmatprep.subr.mxu0 0.0
        %491 = vmatpush1.msra.mxu0 0.0
        %492 = vmatprep.subr.mxu0 0.0
        %493 = vmatpush1.msra.mxu0 0.0
        %494 = vmatprep.subr.mxu0 0.0
        %495 = vmatpush1.msra.mxu0 0.0
        %496 = vmatprep.subr.mxu0 0.0
        %497 = vmatpush1.msra.mxu0 0.0
        %498 = vmatprep.subr.mxu0 0.0
        %499 = vmatpush1.msra.mxu0 0.0
        %500 = vmatprep.subr.mxu0 0.0
        %501 = vmatpush1.msra.mxu0 0.0
        %502 = vmatprep.subr.mxu0 0.0
        %503 = vmatpush1.msra.mxu0 0.0
        %504 = vmatprep.subr.mxu0 0.0
        %505 = vmatpush1.msra.mxu0 0.0
        %506 = vmatprep.subr.mxu0 0.0
        %507 = vmatpush1.msra.mxu0 0.0
        %508 = vmatprep.subr.mxu0 0.0
        %509 = vmatpush1.msra.mxu0 0.0
        %510 = vmatprep.subr.mxu0 0.0
        %511 = vmatpush1.msra.mxu0 0.0
        %512 = vmatprep.subr.mxu0 0.0
        %513 = vmatpush1.msra.mxu0 0.0
        %514 = vmatprep.mubr.f32.mxu0 0.0
        %v515 = vand.u32 %v329, 4294901760
        %v516 = vsub.f32 %v329, %v515
        %v517 = vand.u32 %v516, 4294901760
        %v518 = vsub.f32 %v516, %v517
        %v519 = vand.u32 %v518, 4294901760
        %520 = vmatmul.mubr.f32.gmra.mrb[0].mxu0 %v519
        %v521 = vpop.f32.mrb[0].mxu0
        %v522 = vadd.f32 0.0, %v521
        %v523 = vpop.f32.mrb[0].mxu0
        %524 = vmatprep.mubr.f32.mxu0 0.0
        %v525 = vand.u32 %v332, 4294901760
        %v526 = vsub.f32 %v332, %v525
        %v527 = vand.u32 %v526, 4294901760
        %v528 = vsub.f32 %v526, %v527
        %v529 = vand.u32 %v528, 4294901760
        %530 = vmatmul.mubr.f32.gmra.mrb[0].mxu0 %v529
        %v531 = vpop.f32.mrb[0].mxu0
        %v532 = vadd.f32 0.0, %v531
        %v533 = vpop.f32.mrb[0].mxu0
        %534 = vmatprep.mubr.f32.mxu0 0.0
        %v535 = vand.u32 %v335, 4294901760
        %v536 = vsub.f32 %v335, %v535
        %v537 = vand.u32 %v536, 4294901760
        %v538 = vsub.f32 %v536, %v537
        %v539 = vand.u32 %v538, 4294901760
        %540 = vmatmul.mubr.f32.gmra.mrb[0].mxu0 %v539
        %v541 = vpop.f32.mrb[0].mxu0
        %v542 = vadd.f32 0.0, %v541
        %v543 = vpop.f32.mrb[0].mxu0
        %544 = vmatprep.mubr.f32.mxu0 0.0
        %v545 = vand.u32 %v338, 4294901760
        %v546 = vsub.f32 %v338, %v545
        %v547 = vand.u32 %v546, 4294901760
        %v548 = vsub.f32 %v546, %v547
        %v549 = vand.u32 %v548, 4294901760
        %550 = vmatmul.mubr.f32.gmra.mrb[0].mxu0 %v549
        %v551 = vpop.f32.mrb[0].mxu0
        %v552 = vadd.f32 0.0, %v551
        %v553 = vpop.f32.mrb[0].mxu0
        %554 = vmatprep.mubr.f32.mxu0 0.0
        %v555 = vand.u32 %v341, 4294901760
        %v556 = vsub.f32 %v341, %v555
        %v557 = vand.u32 %v556, 4294901760
        %v558 = vsub.f32 %v556, %v557
        %v559 = vand.u32 %v558, 4294901760
        %560 = vmatmul.mubr.f32.gmra.mrb[0].mxu0 %v559
        %v561 = vpop.f32.mrb[0].mxu0
        %v562 = vadd.f32 0.0, %v561
        %v563 = vpop.f32.mrb[0].mxu0
        %564 = vmatprep.mubr.f32.mxu0 0.0
        %v565 = vand.u32 %v344, 4294901760
        %v566 = vsub.f32 %v344, %v565
        %v567 = vand.u32 %v566, 4294901760
        %v568 = vsub.f32 %v566, %v567
        %v569 = vand.u32 %v568, 4294901760
        %570 = vmatmul.mubr.f32.gmra.mrb[0].mxu0 %v569
        %v571 = vpop.f32.mrb[0].mxu0
        %v572 = vadd.f32 0.0, %v571
        %v573 = vpop.f32.mrb[0].mxu0
        %574 = vmatprep.mubr.f32.mxu0 0.0
        %v575 = vand.u32 %v347, 4294901760
        %v576 = vsub.f32 %v347, %v575
        %v577 = vand.u32 %v576, 4294901760
        %v578 = vsub.f32 %v576, %v577
        %v579 = vand.u32 %v578, 4294901760
        %580 = vmatmul.mubr.f32.gmra.mrb[0].mxu0 %v579
        %v581 = vpop.f32.mrb[0].mxu0
        %v582 = vadd.f32 0.0, %v581
        %v583 = vpop.f32.mrb[0].mxu0
        %584 = vmatprep.mubr.f32.mxu0 0.0
        %v585 = vand.u32 %v350, 4294901760
        %v586 = vsub.f32 %v350, %v585
        %v587 = vand.u32 %v586, 4294901760
        %v588 = vsub.f32 %v586, %v587
        %v589 = vand.u32 %v588, 4294901760
        %590 = vmatmul.mubr.f32.gmra.mrb[0].mxu0 %v589
        %v591 = vpop.f32.mrb[0].mxu0
        %v592 = vadd.f32 0.0, %v591
        %v593 = vpop.f32.mrb[0].mxu0
        %594 = vmatprep.mubr.f32.mxu0 0.0
        %v595 = vand.u32 %v353, 4294901760
        %v596 = vsub.f32 %v353, %v595
        %v597 = vand.u32 %v596, 4294901760
        %v598 = vsub.f32 %v596, %v597
        %v599 = vand.u32 %v598, 4294901760
        %600 = vmatmul.mubr.f32.gmra.mrb[0].mxu0 %v599
        %v601 = vpop.f32.mrb[0].mxu0
        %v602 = vadd.f32 0.0, %v601
        %v603 = vpop.f32.mrb[0].mxu0
        %604 = vmatprep.mubr.f32.mxu0 0.0
        %v605 = vand.u32 %v356, 4294901760
        %v606 = vsub.f32 %v356, %v605
        %v607 = vand.u32 %v606, 4294901760
        %v608 = vsub.f32 %v606, %v607
        %v609 = vand.u32 %v608, 4294901760
        %610 = vmatmul.mubr.f32.gmra.mrb[0].mxu0 %v609
        %v611 = vpop.f32.mrb[0].mxu0
        %v612 = vadd.f32 0.0, %v611
        %v613 = vpop.f32.mrb[0].mxu0
        %614 = vmatprep.mubr.f32.mxu0 0.0
        %v615 = vand.u32 %v359, 4294901760
        %v616 = vsub.f32 %v359, %v615
        %v617 = vand.u32 %v616, 4294901760
        %v618 = vsub.f32 %v616, %v617
        %v619 = vand.u32 %v618, 4294901760
        %620 = vmatmul.mubr.f32.gmra.mrb[0].mxu0 %v619
        %v621 = vpop.f32.mrb[0].mxu0
        %v622 = vadd.f32 0.0, %v621
        %v623 = vpop.f32.mrb[0].mxu0
        %624 = vmatprep.mubr.f32.mxu0 0.0
        %v625 = vand.u32 %v362, 4294901760
        %v626 = vsub.f32 %v362, %v625
        %v627 = vand.u32 %v626, 4294901760
        %v628 = vsub.f32 %v626, %v627
        %v629 = vand.u32 %v628, 4294901760
        %630 = vmatmul.mubr.f32.gmra.mrb[0].mxu0 %v629
        %v631 = vpop.f32.mrb[0].mxu0
        %v632 = vadd.f32 0.0, %v631
        %v633 = vpop.f32.mrb[0].mxu0
        %634 = vmatprep.mubr.f32.mxu0 0.0
        %v635 = vand.u32 %v365, 4294901760
        %v636 = vsub.f32 %v365, %v635
        %v637 = vand.u32 %v636, 4294901760
        %v638 = vsub.f32 %v636, %v637
        %v639 = vand.u32 %v638, 4294901760
        %640 = vmatmul.mubr.f32.gmra.mrb[0].mxu0 %v639
        %v641 = vpop.f32.mrb[0].mxu0
        %v642 = vadd.f32 0.0, %v641
        %v643 = vpop.f32.mrb[0].mxu0
        %644 = vmatprep.mubr.f32.mxu0 0.0
        %v645 = vand.u32 %v368, 4294901760
        %v646 = vsub.f32 %v368, %v645
        %v647 = vand.u32 %v646, 4294901760
        %v648 = vsub.f32 %v646, %v647
        %v649 = vand.u32 %v648, 4294901760
        %650 = vmatmul.mubr.f32.gmra.mrb[0].mxu0 %v649
        %v651 = vpop.f32.mrb[0].mxu0
        %v652 = vadd.f32 0.0, %v651
        %v653 = vpop.f32.mrb[0].mxu0
        %654 = vmatprep.mubr.f32.mxu0 0.0
        %v655 = vand.u32 %v371, 4294901760
        %v656 = vsub.f32 %v371, %v655
        %v657 = vand.u32 %v656, 4294901760
        %v658 = vsub.f32 %v656, %v657
        %v659 = vand.u32 %v658, 4294901760
        %660 = vmatmul.mubr.f32.gmra.mrb[0].mxu0 %v659
        %v661 = vpop.f32.mrb[0].mxu0
        %v662 = vadd.f32 0.0, %v661
        %v663 = vpop.f32.mrb[0].mxu0
        %664 = vmatprep.mubr.f32.mxu0 0.0
        %v665 = vand.u32 %v374, 4294901760
        %v666 = vsub.f32 %v374, %v665
        %v667 = vand.u32 %v666, 4294901760
        %v668 = vsub.f32 %v666, %v667
        %v669 = vand.u32 %v668, 4294901760
        %670 = vmatmul.mubr.f32.gmra.mrb[0].mxu0 %v669
        %v671 = vpop.f32.mrb[0].mxu0
        %v672 = vadd.f32 0.0, %v671
        %v673 = vpop.f32.mrb[0].mxu0
        %674 = vmatprep.mubr.f32.mxu0 0.0
        %v675 = vand.u32 %v377, 4294901760
        %v676 = vsub.f32 %v377, %v675
        %v677 = vand.u32 %v676, 4294901760
        %v678 = vsub.f32 %v676, %v677
        %v679 = vand.u32 %v678, 4294901760
        %680 = vmatmul.mubr.f32.gmra.mrb[0].mxu0 %v679
        %v681 = vpop.f32.mrb[0].mxu0
        %v682 = vadd.f32 0.0, %v681
        %v683 = vpop.f32.mrb[0].mxu0
        %684 = vmatprep.mubr.f32.mxu0 0.0
        %v685 = vand.u32 %v380, 4294901760
        %v686 = vsub.f32 %v380, %v685
        %v687 = vand.u32 %v686, 4294901760
        %v688 = vsub.f32 %v686, %v687
        %v689 = vand.u32 %v688, 4294901760
        %690 = vmatmul.mubr.f32.gmra.mrb[0].mxu0 %v689
        %v691 = vpop.f32.mrb[0].mxu0
        %v692 = vadd.f32 0.0, %v691
        %v693 = vpop.f32.mrb[0].mxu0
        %694 = vmatprep.mubr.f32.mxu0 0.0
        %v695 = vand.u32 %v383, 4294901760
        %v696 = vsub.f32 %v383, %v695
        %v697 = vand.u32 %v696, 4294901760
        %v698 = vsub.f32 %v696, %v697
        %v699 = vand.u32 %v698, 4294901760
        %700 = vmatmul.mubr.f32.gmra.mrb[0].mxu0 %v699
        %v701 = vpop.f32.mrb[0].mxu0
        %v702 = vadd.f32 0.0, %v701
        %v703 = vpop.f32.mrb[0].mxu0
        %704 = vmatprep.mubr.f32.mxu0 0.0
        %v705 = vand.u32 %v386, 4294901760
        %v706 = vsub.f32 %v386, %v705
        %v707 = vand.u32 %v706, 4294901760
        %v708 = vsub.f32 %v706, %v707
        %v709 = vand.u32 %v708, 4294901760
        %710 = vmatmul.mubr.f32.gmra.mrb[0].mxu0 %v709
        %v711 = vpop.f32.mrb[0].mxu0
        %v712 = vadd.f32 0.0, %v711
        %v713 = vpop.f32.mrb[0].mxu0
        %714 = vmatprep.mubr.f32.mxu0 0.0
        %v715 = vand.u32 %v389, 4294901760
        %v716 = vsub.f32 %v389, %v715
        %v717 = vand.u32 %v716, 4294901760
        %v718 = vsub.f32 %v716, %v717
        %v719 = vand.u32 %v718, 4294901760
        %720 = vmatmul.mubr.f32.gmra.mrb[0].mxu0 %v719
        %v721 = vpop.f32.mrb[0].mxu0
        %v722 = vadd.f32 0.0, %v721
        %v723 = vpop.f32.mrb[0].mxu0
        %724 = vmatprep.mubr.f32.mxu0 0.0
        %v725 = vand.u32 %v392, 4294901760
        %v726 = vsub.f32 %v392, %v725
        %v727 = vand.u32 %v726, 4294901760
        %v728 = vsub.f32 %v726, %v727
        %v729 = vand.u32 %v728, 4294901760
        %730 = vmatmul.mubr.f32.gmra.mrb[0].mxu0 %v729
        %v731 = vpop.f32.mrb[0].mxu0
        %v732 = vadd.f32 0.0, %v731
        %v733 = vpop.f32.mrb[0].mxu0
        %734 = vmatprep.mubr.f32.mxu0 0.0
        %v735 = vand.u32 %v395, 4294901760
        %v736 = vsub.f32 %v395, %v735
        %v737 = vand.u32 %v736, 4294901760
        %v738 = vsub.f32 %v736, %v737
        %v739 = vand.u32 %v738, 4294901760
        %740 = vmatmul.mubr.f32.gmra.mrb[0].mxu0 %v739
        %v741 = vpop.f32.mrb[0].mxu0
        %v742 = vadd.f32 0.0, %v741
        %v743 = vpop.f32.mrb[0].mxu0
        %744 = vmatprep.mubr.f32.mxu0 0.0
        %v745 = vand.u32 %v398, 4294901760
        %v746 = vsub.f32 %v398, %v745
        %v747 = vand.u32 %v746, 4294901760
        %v748 = vsub.f32 %v746, %v747
        %v749 = vand.u32 %v748, 4294901760
        %750 = vmatmul.mubr.f32.gmra.mrb[0].mxu0 %v749
        %v751 = vpop.f32.mrb[0].mxu0
        %v752 = vadd.f32 0.0, %v751
        %v753 = vpop.f32.mrb[0].mxu0
        %754 = vmatprep.mubr.f32.mxu0 0.0
        %v755 = vand.u32 %v401, 4294901760
        %v756 = vsub.f32 %v401, %v755
        %v757 = vand.u32 %v756, 4294901760
        %v758 = vsub.f32 %v756, %v757
        %v759 = vand.u32 %v758, 4294901760
        %760 = vmatmul.mubr.f32.gmra.mrb[0].mxu0 %v759
        %v761 = vpop.f32.mrb[0].mxu0
        %v762 = vadd.f32 0.0, %v761
        %v763 = vpop.f32.mrb[0].mxu0
        %764 = vmatprep.mubr.f32.mxu0 0.0
        %v765 = vand.u32 %v404, 4294901760
        %v766 = vsub.f32 %v404, %v765
        %v767 = vand.u32 %v766, 4294901760
        %v768 = vsub.f32 %v766, %v767
        %v769 = vand.u32 %v768, 4294901760
        %770 = vmatmul.mubr.f32.gmra.mrb[0].mxu0 %v769
        %v771 = vpop.f32.mrb[0].mxu0
        %v772 = vadd.f32 0.0, %v771
        %v773 = vpop.f32.mrb[0].mxu0
        %774 = vmatprep.mubr.f32.mxu0 0.0
        %v775 = vand.u32 %v407, 4294901760
        %v776 = vsub.f32 %v407, %v775
        %v777 = vand.u32 %v776, 4294901760
        %v778 = vsub.f32 %v776, %v777
        %v779 = vand.u32 %v778, 4294901760
        %780 = vmatmul.mubr.f32.gmra.mrb[0].mxu0 %v779
        %v781 = vpop.f32.mrb[0].mxu0
        %v782 = vadd.f32 0.0, %v781
        %v783 = vpop.f32.mrb[0].mxu0
        %784 = vmatprep.mubr.f32.mxu0 0.0
        %v785 = vand.u32 %v410, 4294901760
        %v786 = vsub.f32 %v410, %v785
        %v787 = vand.u32 %v786, 4294901760
        %v788 = vsub.f32 %v786, %v787
        %v789 = vand.u32 %v788, 4294901760
        %790 = vmatmul.mubr.f32.gmra.mrb[0].mxu0 %v789
        %v791 = vpop.f32.mrb[0].mxu0
        %v792 = vadd.f32 0.0, %v791
        %v793 = vpop.f32.mrb[0].mxu0
        %794 = vmatprep.mubr.f32.mxu0 0.0
        %v795 = vand.u32 %v413, 4294901760
        %v796 = vsub.f32 %v413, %v795
        %v797 = vand.u32 %v796, 4294901760
        %v798 = vsub.f32 %v796, %v797
        %v799 = vand.u32 %v798, 4294901760
        %800 = vmatmul.mubr.f32.gmra.mrb[0].mxu0 %v799
        %v801 = vpop.f32.mrb[0].mxu0
        %v802 = vadd.f32 0.0, %v801
        %v803 = vpop.f32.mrb[0].mxu0
        %804 = vmatprep.mubr.f32.mxu0 0.0
        %v805 = vand.u32 %v416, 4294901760
        %v806 = vsub.f32 %v416, %v805
        %v807 = vand.u32 %v806, 4294901760
        %v808 = vsub.f32 %v806, %v807
        %v809 = vand.u32 %v808, 4294901760
        %810 = vmatmul.mubr.f32.gmra.mrb[0].mxu0 %v809
        %v811 = vpop.f32.mrb[0].mxu0
        %v812 = vadd.f32 0.0, %v811
        %v813 = vpop.f32.mrb[0].mxu0
        %814 = vmatprep.mubr.f32.mxu0 0.0
        %v815 = vand.u32 %v419, 4294901760
        %v816 = vsub.f32 %v419, %v815
        %v817 = vand.u32 %v816, 4294901760
        %v818 = vsub.f32 %v816, %v817
        %v819 = vand.u32 %v818, 4294901760
        %820 = vmatmul.mubr.f32.gmra.mrb[0].mxu0 %v819
        %v821 = vpop.f32.mrb[0].mxu0
        %v822 = vadd.f32 0.0, %v821
        %v823 = vpop.f32.mrb[0].mxu0
        %824 = vmatprep.mubr.f32.mxu0 0.0
        %v825 = vand.u32 %v422, 4294901760
        %v826 = vsub.f32 %v422, %v825
        %v827 = vand.u32 %v826, 4294901760
        %v828 = vsub.f32 %v826, %v827
        %v829 = vand.u32 %v828, 4294901760
        %830 = vmatmul.mubr.f32.gmra.mrb[0].mxu0 %v829
        %v831 = vpop.f32.mrb[0].mxu0
        %v832 = vadd.f32 0.0, %v831
        %v833 = vpop.f32.mrb[0].mxu0
        %834 = vmatprep.mubr.f32.mxu0 0.0
        %v835 = vand.u32 %v425, 4294901760
        %v836 = vsub.f32 %v425, %v835
        %v837 = vand.u32 %v836, 4294901760
        %v838 = vsub.f32 %v836, %v837
        %v839 = vand.u32 %v838, 4294901760
        %840 = vmatmul.mubr.f32.gmra.mrb[0].mxu0 %v839
        %v841 = vpop.f32.mrb[0].mxu0
        %v842 = vadd.f32 0.0, %v841
        %v843 = vpop.f32.mrb[0].mxu0
        %844 = vmatprep.mubr.f32.mxu0 0.0
        %v845 = vand.u32 %v428, 4294901760
        %v846 = vsub.f32 %v428, %v845
        %v847 = vand.u32 %v846, 4294901760
        %v848 = vsub.f32 %v846, %v847
        %v849 = vand.u32 %v848, 4294901760
        %850 = vmatmul.mubr.f32.gmra.mrb[0].mxu0 %v849
        %v851 = vpop.f32.mrb[0].mxu0
        %v852 = vadd.f32 0.0, %v851
        %v853 = vpop.f32.mrb[0].mxu0
        %854 = vmatprep.mubr.f32.mxu0 0.0
        %v855 = vand.u32 %v431, 4294901760
        %v856 = vsub.f32 %v431, %v855
        %v857 = vand.u32 %v856, 4294901760
        %v858 = vsub.f32 %v856, %v857
        %v859 = vand.u32 %v858, 4294901760
        %860 = vmatmul.mubr.f32.gmra.mrb[0].mxu0 %v859
        %v861 = vpop.f32.mrb[0].mxu0
        %v862 = vadd.f32 0.0, %v861
        %v863 = vpop.f32.mrb[0].mxu0
        %864 = vmatprep.mubr.f32.mxu0 0.0
        %v865 = vand.u32 %v434, 4294901760
        %v866 = vsub.f32 %v434, %v865
        %v867 = vand.u32 %v866, 4294901760
        %v868 = vsub.f32 %v866, %v867
        %v869 = vand.u32 %v868, 4294901760
        %870 = vmatmul.mubr.f32.gmra.mrb[0].mxu0 %v869
        %v871 = vpop.f32.mrb[0].mxu0
        %v872 = vadd.f32 0.0, %v871
        %v873 = vpop.f32.mrb[0].mxu0
        %874 = vmatprep.mubr.f32.mxu0 0.0
        %v875 = vand.u32 %v437, 4294901760
        %v876 = vsub.f32 %v437, %v875
        %v877 = vand.u32 %v876, 4294901760
        %v878 = vsub.f32 %v876, %v877
        %v879 = vand.u32 %v878, 4294901760
        %880 = vmatmul.mubr.f32.gmra.mrb[0].mxu0 %v879
        %v881 = vpop.f32.mrb[0].mxu0
        %v882 = vadd.f32 0.0, %v881
        %v883 = vpop.f32.mrb[0].mxu0
        %884 = vmatprep.mubr.f32.mxu0 0.0
        %v885 = vand.u32 %v440, 4294901760
        %v886 = vsub.f32 %v440, %v885
        %v887 = vand.u32 %v886, 4294901760
        %v888 = vsub.f32 %v886, %v887
        %v889 = vand.u32 %v888, 4294901760
        %890 = vmatmul.mubr.f32.gmra.mrb[0].mxu0 %v889
        %v891 = vpop.f32.mrb[0].mxu0
        %v892 = vadd.f32 0.0, %v891
        %v893 = vpop.f32.mrb[0].mxu0
        %894 = vmatprep.mubr.f32.mxu0 0.0
        %v895 = vand.u32 %v443, 4294901760
        %v896 = vsub.f32 %v443, %v895
        %v897 = vand.u32 %v896, 4294901760
        %v898 = vsub.f32 %v896, %v897
        %v899 = vand.u32 %v898, 4294901760
        %900 = vmatmul.mubr.f32.gmra.mrb[0].mxu0 %v899
        %v901 = vpop.f32.mrb[0].mxu0
        %v902 = vadd.f32 0.0, %v901
        %v903 = vpop.f32.mrb[0].mxu0
        %904 = vmatprep.mubr.f32.mxu0 0.0
        %v905 = vand.u32 %v446, 4294901760
        %v906 = vsub.f32 %v446, %v905
        %v907 = vand.u32 %v906, 4294901760
        %v908 = vsub.f32 %v906, %v907
        %v909 = vand.u32 %v908, 4294901760
        %910 = vmatmul.mubr.f32.gmra.mrb[0].mxu0 %v909
        %v911 = vpop.f32.mrb[0].mxu0
        %v912 = vadd.f32 0.0, %v911
        %v913 = vpop.f32.mrb[0].mxu0
        %914 = vdwg.mxu0
        %915 = vmatprep.subr.mxu0 0.0
        %v916 = vand.u32 %v325, 4294901760
        %v917 = vsub.f32 %v325, %v916
        %v918 = vand.u32 %v917, 4294901760
        %v919 = vsub.f32 %v917, %v918
        %v920 = vand.u32 %v919, 4294901760
        %921 = vmatpush1.msra.mxu0 %v920
        %922 = vmatprep.subr.mxu0 0.0
        %v923 = vand.u32 %v326, 4294901760
        %v924 = vsub.f32 %v326, %v923
        %v925 = vand.u32 %v924, 4294901760
        %v926 = vsub.f32 %v924, %v925
        %v927 = vand.u32 %v926, 4294901760
        %928 = vmatpush1.msra.mxu0 %v927
        %929 = vmatprep.subr.mxu0 0.0
        %930 = vmatpush1.msra.mxu0 0.0
        %931 = vmatprep.subr.mxu0 0.0
        %932 = vmatpush1.msra.mxu0 0.0
        %933 = vmatprep.subr.mxu0 0.0
        %934 = vmatpush1.msra.mxu0 0.0
        %935 = vmatprep.subr.mxu0 0.0
        %936 = vmatpush1.msra.mxu0 0.0
        %937 = vmatprep.subr.mxu0 0.0
        %938 = vmatpush1.msra.mxu0 0.0
        %939 = vmatprep.subr.mxu0 0.0
        %940 = vmatpush1.msra.mxu0 0.0
        %941 = vmatprep.subr.mxu0 0.0
        %942 = vmatpush1.msra.mxu0 0.0
        %943 = vmatprep.subr.mxu0 0.0
        %944 = vmatpush1.msra.mxu0 0.0
        %945 = vmatprep.subr.mxu0 0.0
        %946 = vmatpush1.msra.mxu0 0.0
        %947 = vmatprep.subr.mxu0 0.0
        %948 = vmatpush1.msra.mxu0 0.0
        %949 = vmatprep.subr.mxu0 0.0
        %950 = vmatpush1.msra.mxu0 0.0
        %951 = vmatprep.subr.mxu0 0.0
        %952 = vmatpush1.msra.mxu0 0.0
        %953 = vmatprep.subr.mxu0 0.0
        %954 = vmatpush1.msra.mxu0 0.0
        %955 = vmatprep.subr.mxu0 0.0
        %956 = vmatpush1.msra.mxu0 0.0
        %957 = vmatprep.subr.mxu0 0.0
        %958 = vmatpush1.msra.mxu0 0.0
        %959 = vmatprep.subr.mxu0 0.0
        %960 = vmatpush1.msra.mxu0 0.0
        %961 = vmatprep.subr.mxu0 0.0
        %962 = vmatpush1.msra.mxu0 0.0
        %963 = vmatprep.subr.mxu0 0.0
        %964 = vmatpush1.msra.mxu0 0.0
        %965 = vmatprep.subr.mxu0 0.0
        %966 = vmatpush1.msra.mxu0 0.0
        %967 = vmatprep.subr.mxu0 0.0
        %968 = vmatpush1.msra.mxu0 0.0
        %969 = vmatprep.subr.mxu0 0.0
        %970 = vmatpush1.msra.mxu0 0.0
        %971 = vmatprep.subr.mxu0 0.0
        %972 = vmatpush1.msra.mxu0 0.0
        %973 = vmatprep.subr.mxu0 0.0
        %974 = vmatpush1.msra.mxu0 0.0
        %975 = vmatprep.subr.mxu0 0.0
        %976 = vmatpush1.msra.mxu0 0.0
        %977 = vmatprep.subr.mxu0 0.0
        %978 = vmatpush1.msra.mxu0 0.0
        %979 = vmatprep.subr.mxu0 0.0
        %980 = vmatpush1.msra.mxu0 0.0
        %981 = vmatprep.subr.mxu0 0.0
        %982 = vmatpush1.msra.mxu0 0.0
        %983 = vmatprep.subr.mxu0 0.0
        %984 = vmatpush1.msra.mxu0 0.0
        %985 = vmatprep.subr.mxu0 0.0
        %986 = vmatpush1.msra.mxu0 0.0
        %987 = vmatprep.subr.mxu0 0.0
        %988 = vmatpush1.msra.mxu0 0.0
        %989 = vmatprep.mubr.f32.mxu0 0.0
        %v990 = vand.u32 %v329, 4294901760
        %991 = vmatmul.mubr.f32.gmra.mrb[0].mxu0 %v990
        %v992 = vpop.f32.mrb[0].mxu0
        %v993 = vadd.f32 %v522, %v992
        %v994 = vpop.f32.mrb[0].mxu0
        %995 = vmatprep.mubr.f32.mxu0 0.0
        %v996 = vand.u32 %v332, 4294901760
        %997 = vmatmul.mubr.f32.gmra.mrb[0].mxu0 %v996
        %v998 = vpop.f32.mrb[0].mxu0
        %v999 = vadd.f32 %v532, %v998
        %v1000 = vpop.f32.mrb[0].mxu0
        %1001 = vmatprep.mubr.f32.mxu0 0.0
        %v1002 = vand.u32 %v335, 4294901760
        %1003 = vmatmul.mubr.f32.gmra.mrb[0].mxu0 %v1002
        %v1004 = vpop.f32.mrb[0].mxu0
        %v1005 = vadd.f32 %v542, %v1004
        %v1006 = vpop.f32.mrb[0].mxu0
        %1007 = vmatprep.mubr.f32.mxu0 0.0
        %v1008 = vand.u32 %v338, 4294901760
        %1009 = vmatmul.mubr.f32.gmra.mrb[0].mxu0 %v1008
        %v1010 = vpop.f32.mrb[0].mxu0
        %v1011 = vadd.f32 %v552, %v1010
        %v1012 = vpop.f32.mrb[0].mxu0
        %1013 = vmatprep.mubr.f32.mxu0 0.0
        %v1014 = vand.u32 %v341, 4294901760
        %1015 = vmatmul.mubr.f32.gmra.mrb[0].mxu0 %v1014
        %v1016 = vpop.f32.mrb[0].mxu0
        %v1017 = vadd.f32 %v562, %v1016
        %v1018 = vpop.f32.mrb[0].mxu0
        %1019 = vmatprep.mubr.f32.mxu0 0.0
        %v1020 = vand.u32 %v344, 4294901760
        %1021 = vmatmul.mubr.f32.gmra.mrb[0].mxu0 %v1020
        %v1022 = vpop.f32.mrb[0].mxu0
        %v1023 = vadd.f32 %v572, %v1022
        %v1024 = vpop.f32.mrb[0].mxu0
        %1025 = vmatprep.mubr.f32.mxu0 0.0
        %v1026 = vand.u32 %v347, 4294901760
        %1027 = vmatmul.mubr.f32.gmra.mrb[0].mxu0 %v1026
        %v1028 = vpop.f32.mrb[0].mxu0
        %v1029 = vadd.f32 %v582, %v1028
        %v1030 = vpop.f32.mrb[0].mxu0
        %1031 = vmatprep.mubr.f32.mxu0 0.0
        %v1032 = vand.u32 %v350, 4294901760
        %1033 = vmatmul.mubr.f32.gmra.mrb[0].mxu0 %v1032
        %v1034 = vpop.f32.mrb[0].mxu0
        %v1035 = vadd.f32 %v592, %v1034
        %v1036 = vpop.f32.mrb[0].mxu0
        %1037 = vmatprep.mubr.f32.mxu0 0.0
        %v1038 = vand.u32 %v353, 4294901760
        %1039 = vmatmul.mubr.f32.gmra.mrb[0].mxu0 %v1038
        %v1040 = vpop.f32.mrb[0].mxu0
        %v1041 = vadd.f32 %v602, %v1040
        %v1042 = vpop.f32.mrb[0].mxu0
        %1043 = vmatprep.mubr.f32.mxu0 0.0
        %v1044 = vand.u32 %v356, 4294901760
        %1045 = vmatmul.mubr.f32.gmra.mrb[0].mxu0 %v1044
        %v1046 = vpop.f32.mrb[0].mxu0
        %v1047 = vadd.f32 %v612, %v1046
        %v1048 = vpop.f32.mrb[0].mxu0
        %1049 = vmatprep.mubr.f32.mxu0 0.0
        %v1050 = vand.u32 %v359, 4294901760
        %1051 = vmatmul.mubr.f32.gmra.mrb[0].mxu0 %v1050
        %v1052 = vpop.f32.mrb[0].mxu0
        %v1053 = vadd.f32 %v622, %v1052
        %v1054 = vpop.f32.mrb[0].mxu0
        %1055 = vmatprep.mubr.f32.mxu0 0.0
        %v1056 = vand.u32 %v362, 4294901760
        %1057 = vmatmul.mubr.f32.gmra.mrb[0].mxu0 %v1056
        %v1058 = vpop.f32.mrb[0].mxu0
        %v1059 = vadd.f32 %v632, %v1058
        %v1060 = vpop.f32.mrb[0].mxu0
        %1061 = vmatprep.mubr.f32.mxu0 0.0
        %v1062 = vand.u32 %v365, 4294901760
        %1063 = vmatmul.mubr.f32.gmra.mrb[0].mxu0 %v1062
        %v1064 = vpop.f32.mrb[0].mxu0
        %v1065 = vadd.f32 %v642, %v1064
        %v1066 = vpop.f32.mrb[0].mxu0
        %1067 = vmatprep.mubr.f32.mxu0 0.0
        %v1068 = vand.u32 %v368, 4294901760
        %1069 = vmatmul.mubr.f32.gmra.mrb[0].mxu0 %v1068
        %v1070 = vpop.f32.mrb[0].mxu0
        %v1071 = vadd.f32 %v652, %v1070
        %v1072 = vpop.f32.mrb[0].mxu0
        %1073 = vmatprep.mubr.f32.mxu0 0.0
        %v1074 = vand.u32 %v371, 4294901760
        %1075 = vmatmul.mubr.f32.gmra.mrb[0].mxu0 %v1074
        %v1076 = vpop.f32.mrb[0].mxu0
        %v1077 = vadd.f32 %v662, %v1076
        %v1078 = vpop.f32.mrb[0].mxu0
        %1079 = vmatprep.mubr.f32.mxu0 0.0
        %v1080 = vand.u32 %v374, 4294901760
        %1081 = vmatmul.mubr.f32.gmra.mrb[0].mxu0 %v1080
        %v1082 = vpop.f32.mrb[0].mxu0
        %v1083 = vadd.f32 %v672, %v1082
        %v1084 = vpop.f32.mrb[0].mxu0
        %1085 = vmatprep.mubr.f32.mxu0 0.0
        %v1086 = vand.u32 %v377, 4294901760
        %1087 = vmatmul.mubr.f32.gmra.mrb[0].mxu0 %v1086
        %v1088 = vpop.f32.mrb[0].mxu0
        %v1089 = vadd.f32 %v682, %v1088
        %v1090 = vpop.f32.mrb[0].mxu0
        %1091 = vmatprep.mubr.f32.mxu0 0.0
        %v1092 = vand.u32 %v380, 4294901760
        %1093 = vmatmul.mubr.f32.gmra.mrb[0].mxu0 %v1092
        %v1094 = vpop.f32.mrb[0].mxu0
        %v1095 = vadd.f32 %v692, %v1094
        %v1096 = vpop.f32.mrb[0].mxu0
        %1097 = vmatprep.mubr.f32.mxu0 0.0
        %v1098 = vand.u32 %v383, 4294901760
        %1099 = vmatmul.mubr.f32.gmra.mrb[0].mxu0 %v1098
        %v1100 = vpop.f32.mrb[0].mxu0
        %v1101 = vadd.f32 %v702, %v1100
        %v1102 = vpop.f32.mrb[0].mxu0
        %1103 = vmatprep.mubr.f32.mxu0 0.0
        %v1104 = vand.u32 %v386, 4294901760
        %1105 = vmatmul.mubr.f32.gmra.mrb[0].mxu0 %v1104
        %v1106 = vpop.f32.mrb[0].mxu0
        %v1107 = vadd.f32 %v712, %v1106
        %v1108 = vpop.f32.mrb[0].mxu0
        %1109 = vmatprep.mubr.f32.mxu0 0.0
        %v1110 = vand.u32 %v389, 4294901760
        %1111 = vmatmul.mubr.f32.gmra.mrb[0].mxu0 %v1110
        %v1112 = vpop.f32.mrb[0].mxu0
        %v1113 = vadd.f32 %v722, %v1112
        %v1114 = vpop.f32.mrb[0].mxu0
        %1115 = vmatprep.mubr.f32.mxu0 0.0
        %v1116 = vand.u32 %v392, 4294901760
        %1117 = vmatmul.mubr.f32.gmra.mrb[0].mxu0 %v1116
        %v1118 = vpop.f32.mrb[0].mxu0
        %v1119 = vadd.f32 %v732, %v1118
        %v1120 = vpop.f32.mrb[0].mxu0
        %1121 = vmatprep.mubr.f32.mxu0 0.0
        %v1122 = vand.u32 %v395, 4294901760
        %1123 = vmatmul.mubr.f32.gmra.mrb[0].mxu0 %v1122
        %v1124 = vpop.f32.mrb[0].mxu0
        %v1125 = vadd.f32 %v742, %v1124
        %v1126 = vpop.f32.mrb[0].mxu0
        %1127 = vmatprep.mubr.f32.mxu0 0.0
        %v1128 = vand.u32 %v398, 4294901760
        %1129 = vmatmul.mubr.f32.gmra.mrb[0].mxu0 %v1128
        %v1130 = vpop.f32.mrb[0].mxu0
        %v1131 = vadd.f32 %v752, %v1130
        %v1132 = vpop.f32.mrb[0].mxu0
        %1133 = vmatprep.mubr.f32.mxu0 0.0
        %v1134 = vand.u32 %v401, 4294901760
        %1135 = vmatmul.mubr.f32.gmra.mrb[0].mxu0 %v1134
        %v1136 = vpop.f32.mrb[0].mxu0
        %v1137 = vadd.f32 %v762, %v1136
        %v1138 = vpop.f32.mrb[0].mxu0
        %1139 = vmatprep.mubr.f32.mxu0 0.0
        %v1140 = vand.u32 %v404, 4294901760
        %1141 = vmatmul.mubr.f32.gmra.mrb[0].mxu0 %v1140
        %v1142 = vpop.f32.mrb[0].mxu0
        %v1143 = vadd.f32 %v772, %v1142
        %v1144 = vpop.f32.mrb[0].mxu0
        %1145 = vmatprep.mubr.f32.mxu0 0.0
        %v1146 = vand.u32 %v407, 4294901760
        %1147 = vmatmul.mubr.f32.gmra.mrb[0].mxu0 %v1146
        %v1148 = vpop.f32.mrb[0].mxu0
        %v1149 = vadd.f32 %v782, %v1148
        %v1150 = vpop.f32.mrb[0].mxu0
        %1151 = vmatprep.mubr.f32.mxu0 0.0
        %v1152 = vand.u32 %v410, 4294901760
        %1153 = vmatmul.mubr.f32.gmra.mrb[0].mxu0 %v1152
        %v1154 = vpop.f32.mrb[0].mxu0
        %v1155 = vadd.f32 %v792, %v1154
        %v1156 = vpop.f32.mrb[0].mxu0
        %1157 = vmatprep.mubr.f32.mxu0 0.0
        %v1158 = vand.u32 %v413, 4294901760
        %1159 = vmatmul.mubr.f32.gmra.mrb[0].mxu0 %v1158
        %v1160 = vpop.f32.mrb[0].mxu0
        %v1161 = vadd.f32 %v802, %v1160
        %v1162 = vpop.f32.mrb[0].mxu0
        %1163 = vmatprep.mubr.f32.mxu0 0.0
        %v1164 = vand.u32 %v416, 4294901760
        %1165 = vmatmul.mubr.f32.gmra.mrb[0].mxu0 %v1164
        %v1166 = vpop.f32.mrb[0].mxu0
        %v1167 = vadd.f32 %v812, %v1166
        %v1168 = vpop.f32.mrb[0].mxu0
        %1169 = vmatprep.mubr.f32.mxu0 0.0
        %v1170 = vand.u32 %v419, 4294901760
        %1171 = vmatmul.mubr.f32.gmra.mrb[0].mxu0 %v1170
        %v1172 = vpop.f32.mrb[0].mxu0
        %v1173 = vadd.f32 %v822, %v1172
        %v1174 = vpop.f32.mrb[0].mxu0
        %1175 = vmatprep.mubr.f32.mxu0 0.0
        %v1176 = vand.u32 %v422, 4294901760
        %1177 = vmatmul.mubr.f32.gmra.mrb[0].mxu0 %v1176
        %v1178 = vpop.f32.mrb[0].mxu0
        %v1179 = vadd.f32 %v832, %v1178
        %v1180 = vpop.f32.mrb[0].mxu0
        %1181 = vmatprep.mubr.f32.mxu0 0.0
        %v1182 = vand.u32 %v425, 4294901760
        %1183 = vmatmul.mubr.f32.gmra.mrb[0].mxu0 %v1182
        %v1184 = vpop.f32.mrb[0].mxu0
        %v1185 = vadd.f32 %v842, %v1184
        %v1186 = vpop.f32.mrb[0].mxu0
        %1187 = vmatprep.mubr.f32.mxu0 0.0
        %v1188 = vand.u32 %v428, 4294901760
        %1189 = vmatmul.mubr.f32.gmra.mrb[0].mxu0 %v1188
        %v1190 = vpop.f32.mrb[0].mxu0
        %v1191 = vadd.f32 %v852, %v1190
        %v1192 = vpop.f32.mrb[0].mxu0
        %1193 = vmatprep.mubr.f32.mxu0 0.0
        %v1194 = vand.u32 %v431, 4294901760
        %1195 = vmatmul.mubr.f32.gmra.mrb[0].mxu0 %v1194
        %v1196 = vpop.f32.mrb[0].mxu0
        %v1197 = vadd.f32 %v862, %v1196
        %v1198 = vpop.f32.mrb[0].mxu0
        %1199 = vmatprep.mubr.f32.mxu0 0.0
        %v1200 = vand.u32 %v434, 4294901760
        %1201 = vmatmul.mubr.f32.gmra.mrb[0].mxu0 %v1200
        %v1202 = vpop.f32.mrb[0].mxu0
        %v1203 = vadd.f32 %v872, %v1202
        %v1204 = vpop.f32.mrb[0].mxu0
        %1205 = vmatprep.mubr.f32.mxu0 0.0
        %v1206 = vand.u32 %v437, 4294901760
        %1207 = vmatmul.mubr.f32.gmra.mrb[0].mxu0 %v1206
        %v1208 = vpop.f32.mrb[0].mxu0
        %v1209 = vadd.f32 %v882, %v1208
        %v1210 = vpop.f32.mrb[0].mxu0
        %1211 = vmatprep.mubr.f32.mxu0 0.0
        %v1212 = vand.u32 %v440, 4294901760
        %1213 = vmatmul.mubr.f32.gmra.mrb[0].mxu0 %v1212
        %v1214 = vpop.f32.mrb[0].mxu0
        %v1215 = vadd.f32 %v892, %v1214
        %v1216 = vpop.f32.mrb[0].mxu0
        %1217 = vmatprep.mubr.f32.mxu0 0.0
        %v1218 = vand.u32 %v443, 4294901760
        %1219 = vmatmul.mubr.f32.gmra.mrb[0].mxu0 %v1218
        %v1220 = vpop.f32.mrb[0].mxu0
        %v1221 = vadd.f32 %v902, %v1220
        %v1222 = vpop.f32.mrb[0].mxu0
        %1223 = vmatprep.mubr.f32.mxu0 0.0
        %v1224 = vand.u32 %v446, 4294901760
        %1225 = vmatmul.mubr.f32.gmra.mrb[0].mxu0 %v1224
        %v1226 = vpop.f32.mrb[0].mxu0
        %v1227 = vadd.f32 %v912, %v1226
        %v1228 = vpop.f32.mrb[0].mxu0
        %1229 = vdwg.mxu0
        %1230 = vmatprep.subr.mxu0 0.0
        %v1231 = vand.u32 %v325, 4294901760
        %v1232 = vsub.f32 %v325, %v1231
        %1233 = vmatpush1.msra.mxu0 %v1232
        %1234 = vmatprep.subr.mxu0 0.0
        %v1235 = vand.u32 %v326, 4294901760
        %v1236 = vsub.f32 %v326, %v1235
        %1237 = vmatpush1.msra.mxu0 %v1236
        %1238 = vmatprep.subr.mxu0 0.0
        %1239 = vmatpush1.msra.mxu0 0.0
        %1240 = vmatprep.subr.mxu0 0.0
        %1241 = vmatpush1.msra.mxu0 0.0
        %1242 = vmatprep.subr.mxu0 0.0
        %1243 = vmatpush1.msra.mxu0 0.0
        %1244 = vmatprep.subr.mxu0 0.0
        %1245 = vmatpush1.msra.mxu0 0.0
        %1246 = vmatprep.subr.mxu0 0.0
        %1247 = vmatpush1.msra.mxu0 0.0
        %1248 = vmatprep.subr.mxu0 0.0
        %1249 = vmatpush1.msra.mxu0 0.0
        %1250 = vmatprep.subr.mxu0 0.0
        %1251 = vmatpush1.msra.mxu0 0.0
        %1252 = vmatprep.subr.mxu0 0.0
        %1253 = vmatpush1.msra.mxu0 0.0
        %1254 = vmatprep.subr.mxu0 0.0
        %1255 = vmatpush1.msra.mxu0 0.0
        %1256 = vmatprep.subr.mxu0 0.0
        %1257 = vmatpush1.msra.mxu0 0.0
        %1258 = vmatprep.subr.mxu0 0.0
        %1259 = vmatpush1.msra.mxu0 0.0
        %1260 = vmatprep.subr.mxu0 0.0
        %1261 = vmatpush1.msra.mxu0 0.0
        %1262 = vmatprep.subr.mxu0 0.0
        %1263 = vmatpush1.msra.mxu0 0.0
        %1264 = vmatprep.subr.mxu0 0.0
        %1265 = vmatpush1.msra.mxu0 0.0
        %1266 = vmatprep.subr.mxu0 0.0
        %1267 = vmatpush1.msra.mxu0 0.0
        %1268 = vmatprep.subr.mxu0 0.0
        %1269 = vmatpush1.msra.mxu0 0.0
        %1270 = vmatprep.subr.mxu0 0.0
        %1271 = vmatpush1.msra.mxu0 0.0
        %1272 = vmatprep.subr.mxu0 0.0
        %1273 = vmatpush1.msra.mxu0 0.0
        %1274 = vmatprep.subr.mxu0 0.0
        %1275 = vmatpush1.msra.mxu0 0.0
        %1276 = vmatprep.subr.mxu0 0.0
        %1277 = vmatpush1.msra.mxu0 0.0
        %1278 = vmatprep.subr.mxu0 0.0
        %1279 = vmatpush1.msra.mxu0 0.0
        %1280 = vmatprep.subr.mxu0 0.0
        %1281 = vmatpush1.msra.mxu0 0.0
        %1282 = vmatprep.subr.mxu0 0.0
        %1283 = vmatpush1.msra.mxu0 0.0
        %1284 = vmatprep.subr.mxu0 0.0
        %1285 = vmatpush1.msra.mxu0 0.0
        %1286 = vmatprep.subr.mxu0 0.0
        %1287 = vmatpush1.msra.mxu0 0.0
        %1288 = vmatprep.subr.mxu0 0.0
        %1289 = vmatpush1.msra.mxu0 0.0
        %1290 = vmatprep.subr.mxu0 0.0
        %1291 = vmatpush1.msra.mxu0 0.0
        %1292 = vmatprep.subr.mxu0 0.0
        %1293 = vmatpush1.msra.mxu0 0.0
        %1294 = vmatprep.subr.mxu0 0.0
        %1295 = vmatpush1.msra.mxu0 0.0
        %1296 = vmatprep.subr.mxu0 0.0
        %1297 = vmatpush1.msra.mxu0 0.0
        %1298 = vmatprep.mubr.f32.mxu0 0.0
        %v1299 = vand.u32 %v329, 4294901760
        %v1300 = vsub.f32 %v329, %v1299
        %1301 = vmatmul.mubr.f32.gmra.mrb[0].mxu0 %v1300
        %v1302 = vpop.f32.mrb[0].mxu0
        %v1303 = vadd.f32 %v993, %v1302
        %v1304 = vpop.f32.mrb[0].mxu0
        %1305 = vmatprep.mubr.f32.mxu0 0.0
        %v1306 = vand.u32 %v332, 4294901760
        %v1307 = vsub.f32 %v332, %v1306
        %1308 = vmatmul.mubr.f32.gmra.mrb[0].mxu0 %v1307
        %v1309 = vpop.f32.mrb[0].mxu0
        %v1310 = vadd.f32 %v999, %v1309
        %v1311 = vpop.f32.mrb[0].mxu0
        %1312 = vmatprep.mubr.f32.mxu0 0.0
        %v1313 = vand.u32 %v335, 4294901760
        %v1314 = vsub.f32 %v335, %v1313
        %1315 = vmatmul.mubr.f32.gmra.mrb[0].mxu0 %v1314
        %v1316 = vpop.f32.mrb[0].mxu0
        %v1317 = vadd.f32 %v1005, %v1316
        %v1318 = vpop.f32.mrb[0].mxu0
        %1319 = vmatprep.mubr.f32.mxu0 0.0
        %v1320 = vand.u32 %v338, 4294901760
        %v1321 = vsub.f32 %v338, %v1320
        %1322 = vmatmul.mubr.f32.gmra.mrb[0].mxu0 %v1321
        %v1323 = vpop.f32.mrb[0].mxu0
        %v1324 = vadd.f32 %v1011, %v1323
        %v1325 = vpop.f32.mrb[0].mxu0
        %1326 = vmatprep.mubr.f32.mxu0 0.0
        %v1327 = vand.u32 %v341, 4294901760
        %v1328 = vsub.f32 %v341, %v1327
        %1329 = vmatmul.mubr.f32.gmra.mrb[0].mxu0 %v1328
        %v1330 = vpop.f32.mrb[0].mxu0
        %v1331 = vadd.f32 %v1017, %v1330
        %v1332 = vpop.f32.mrb[0].mxu0
        %1333 = vmatprep.mubr.f32.mxu0 0.0
        %v1334 = vand.u32 %v344, 4294901760
        %v1335 = vsub.f32 %v344, %v1334
        %1336 = vmatmul.mubr.f32.gmra.mrb[0].mxu0 %v1335
        %v1337 = vpop.f32.mrb[0].mxu0
        %v1338 = vadd.f32 %v1023, %v1337
        %v1339 = vpop.f32.mrb[0].mxu0
        %1340 = vmatprep.mubr.f32.mxu0 0.0
        %v1341 = vand.u32 %v347, 4294901760
        %v1342 = vsub.f32 %v347, %v1341
        %1343 = vmatmul.mubr.f32.gmra.mrb[0].mxu0 %v1342
        %v1344 = vpop.f32.mrb[0].mxu0
        %v1345 = vadd.f32 %v1029, %v1344
        %v1346 = vpop.f32.mrb[0].mxu0
        %1347 = vmatprep.mubr.f32.mxu0 0.0
        %v1348 = vand.u32 %v350, 4294901760
        %v1349 = vsub.f32 %v350, %v1348
        %1350 = vmatmul.mubr.f32.gmra.mrb[0].mxu0 %v1349
        %v1351 = vpop.f32.mrb[0].mxu0
        %v1352 = vadd.f32 %v1035, %v1351
        %v1353 = vpop.f32.mrb[0].mxu0
        %1354 = vmatprep.mubr.f32.mxu0 0.0
        %v1355 = vand.u32 %v353, 4294901760
        %v1356 = vsub.f32 %v353, %v1355
        %1357 = vmatmul.mubr.f32.gmra.mrb[0].mxu0 %v1356
        %v1358 = vpop.f32.mrb[0].mxu0
        %v1359 = vadd.f32 %v1041, %v1358
        %v1360 = vpop.f32.mrb[0].mxu0
        %1361 = vmatprep.mubr.f32.mxu0 0.0
        %v1362 = vand.u32 %v356, 4294901760
        %v1363 = vsub.f32 %v356, %v1362
        %1364 = vmatmul.mubr.f32.gmra.mrb[0].mxu0 %v1363
        %v1365 = vpop.f32.mrb[0].mxu0
        %v1366 = vadd.f32 %v1047, %v1365
        %v1367 = vpop.f32.mrb[0].mxu0
        %1368 = vmatprep.mubr.f32.mxu0 0.0
        %v1369 = vand.u32 %v359, 4294901760
        %v1370 = vsub.f32 %v359, %v1369
        %1371 = vmatmul.mubr.f32.gmra.mrb[0].mxu0 %v1370
        %v1372 = vpop.f32.mrb[0].mxu0
        %v1373 = vadd.f32 %v1053, %v1372
        %v1374 = vpop.f32.mrb[0].mxu0
        %1375 = vmatprep.mubr.f32.mxu0 0.0
        %v1376 = vand.u32 %v362, 4294901760
        %v1377 = vsub.f32 %v362, %v1376
        %1378 = vmatmul.mubr.f32.gmra.mrb[0].mxu0 %v1377
        %v1379 = vpop.f32.mrb[0].mxu0
        %v1380 = vadd.f32 %v1059, %v1379
        %v1381 = vpop.f32.mrb[0].mxu0
        %1382 = vmatprep.mubr.f32.mxu0 0.0
        %v1383 = vand.u32 %v365, 4294901760
        %v1384 = vsub.f32 %v365, %v1383
        %1385 = vmatmul.mubr.f32.gmra.mrb[0].mxu0 %v1384
        %v1386 = vpop.f32.mrb[0].mxu0
        %v1387 = vadd.f32 %v1065, %v1386
        %v1388 = vpop.f32.mrb[0].mxu0
        %1389 = vmatprep.mubr.f32.mxu0 0.0
        %v1390 = vand.u32 %v368, 4294901760
        %v1391 = vsub.f32 %v368, %v1390
        %1392 = vmatmul.mubr.f32.gmra.mrb[0].mxu0 %v1391
        %v1393 = vpop.f32.mrb[0].mxu0
        %v1394 = vadd.f32 %v1071, %v1393
        %v1395 = vpop.f32.mrb[0].mxu0
        %1396 = vmatprep.mubr.f32.mxu0 0.0
        %v1397 = vand.u32 %v371, 4294901760
        %v1398 = vsub.f32 %v371, %v1397
        %1399 = vmatmul.mubr.f32.gmra.mrb[0].mxu0 %v1398
        %v1400 = vpop.f32.mrb[0].mxu0
        %v1401 = vadd.f32 %v1077, %v1400
        %v1402 = vpop.f32.mrb[0].mxu0
        %1403 = vmatprep.mubr.f32.mxu0 0.0
        %v1404 = vand.u32 %v374, 4294901760
        %v1405 = vsub.f32 %v374, %v1404
        %1406 = vmatmul.mubr.f32.gmra.mrb[0].mxu0 %v1405
        %v1407 = vpop.f32.mrb[0].mxu0
        %v1408 = vadd.f32 %v1083, %v1407
        %v1409 = vpop.f32.mrb[0].mxu0
        %1410 = vmatprep.mubr.f32.mxu0 0.0
        %v1411 = vand.u32 %v377, 4294901760
        %v1412 = vsub.f32 %v377, %v1411
        %1413 = vmatmul.mubr.f32.gmra.mrb[0].mxu0 %v1412
        %v1414 = vpop.f32.mrb[0].mxu0
        %v1415 = vadd.f32 %v1089, %v1414
        %v1416 = vpop.f32.mrb[0].mxu0
        %1417 = vmatprep.mubr.f32.mxu0 0.0
        %v1418 = vand.u32 %v380, 4294901760
        %v1419 = vsub.f32 %v380, %v1418
        %1420 = vmatmul.mubr.f32.gmra.mrb[0].mxu0 %v1419
        %v1421 = vpop.f32.mrb[0].mxu0
        %v1422 = vadd.f32 %v1095, %v1421
        %v1423 = vpop.f32.mrb[0].mxu0
        %1424 = vmatprep.mubr.f32.mxu0 0.0
        %v1425 = vand.u32 %v383, 4294901760
        %v1426 = vsub.f32 %v383, %v1425
        %1427 = vmatmul.mubr.f32.gmra.mrb[0].mxu0 %v1426
        %v1428 = vpop.f32.mrb[0].mxu0
        %v1429 = vadd.f32 %v1101, %v1428
        %v1430 = vpop.f32.mrb[0].mxu0
        %1431 = vmatprep.mubr.f32.mxu0 0.0
        %v1432 = vand.u32 %v386, 4294901760
        %v1433 = vsub.f32 %v386, %v1432
        %1434 = vmatmul.mubr.f32.gmra.mrb[0].mxu0 %v1433
        %v1435 = vpop.f32.mrb[0].mxu0
        %v1436 = vadd.f32 %v1107, %v1435
        %v1437 = vpop.f32.mrb[0].mxu0
        %1438 = vmatprep.mubr.f32.mxu0 0.0
        %v1439 = vand.u32 %v389, 4294901760
        %v1440 = vsub.f32 %v389, %v1439
        %1441 = vmatmul.mubr.f32.gmra.mrb[0].mxu0 %v1440
        %v1442 = vpop.f32.mrb[0].mxu0
        %v1443 = vadd.f32 %v1113, %v1442
        %v1444 = vpop.f32.mrb[0].mxu0
        %1445 = vmatprep.mubr.f32.mxu0 0.0
        %v1446 = vand.u32 %v392, 4294901760
        %v1447 = vsub.f32 %v392, %v1446
        %1448 = vmatmul.mubr.f32.gmra.mrb[0].mxu0 %v1447
        %v1449 = vpop.f32.mrb[0].mxu0
        %v1450 = vadd.f32 %v1119, %v1449
        %v1451 = vpop.f32.mrb[0].mxu0
        %1452 = vmatprep.mubr.f32.mxu0 0.0
        %v1453 = vand.u32 %v395, 4294901760
        %v1454 = vsub.f32 %v395, %v1453
        %1455 = vmatmul.mubr.f32.gmra.mrb[0].mxu0 %v1454
        %v1456 = vpop.f32.mrb[0].mxu0
        %v1457 = vadd.f32 %v1125, %v1456
        %v1458 = vpop.f32.mrb[0].mxu0
        %1459 = vmatprep.mubr.f32.mxu0 0.0
        %v1460 = vand.u32 %v398, 4294901760
        %v1461 = vsub.f32 %v398, %v1460
        %1462 = vmatmul.mubr.f32.gmra.mrb[0].mxu0 %v1461
        %v1463 = vpop.f32.mrb[0].mxu0
        %v1464 = vadd.f32 %v1131, %v1463
        %v1465 = vpop.f32.mrb[0].mxu0
        %1466 = vmatprep.mubr.f32.mxu0 0.0
        %v1467 = vand.u32 %v401, 4294901760
        %v1468 = vsub.f32 %v401, %v1467
        %1469 = vmatmul.mubr.f32.gmra.mrb[0].mxu0 %v1468
        %v1470 = vpop.f32.mrb[0].mxu0
        %v1471 = vadd.f32 %v1137, %v1470
        %v1472 = vpop.f32.mrb[0].mxu0
        %1473 = vmatprep.mubr.f32.mxu0 0.0
        %v1474 = vand.u32 %v404, 4294901760
        %v1475 = vsub.f32 %v404, %v1474
        %1476 = vmatmul.mubr.f32.gmra.mrb[0].mxu0 %v1475
        %v1477 = vpop.f32.mrb[0].mxu0
        %v1478 = vadd.f32 %v1143, %v1477
        %v1479 = vpop.f32.mrb[0].mxu0
        %1480 = vmatprep.mubr.f32.mxu0 0.0
        %v1481 = vand.u32 %v407, 4294901760
        %v1482 = vsub.f32 %v407, %v1481
        %1483 = vmatmul.mubr.f32.gmra.mrb[0].mxu0 %v1482
        %v1484 = vpop.f32.mrb[0].mxu0
        %v1485 = vadd.f32 %v1149, %v1484
        %v1486 = vpop.f32.mrb[0].mxu0
        %1487 = vmatprep.mubr.f32.mxu0 0.0
        %v1488 = vand.u32 %v410, 4294901760
        %v1489 = vsub.f32 %v410, %v1488
        %1490 = vmatmul.mubr.f32.gmra.mrb[0].mxu0 %v1489
        %v1491 = vpop.f32.mrb[0].mxu0
        %v1492 = vadd.f32 %v1155, %v1491
        %v1493 = vpop.f32.mrb[0].mxu0
        %1494 = vmatprep.mubr.f32.mxu0 0.0
        %v1495 = vand.u32 %v413, 4294901760
        %v1496 = vsub.f32 %v413, %v1495
        %1497 = vmatmul.mubr.f32.gmra.mrb[0].mxu0 %v1496
        %v1498 = vpop.f32.mrb[0].mxu0
        %v1499 = vadd.f32 %v1161, %v1498
        %v1500 = vpop.f32.mrb[0].mxu0
        %1501 = vmatprep.mubr.f32.mxu0 0.0
        %v1502 = vand.u32 %v416, 4294901760
        %v1503 = vsub.f32 %v416, %v1502
        %1504 = vmatmul.mubr.f32.gmra.mrb[0].mxu0 %v1503
        %v1505 = vpop.f32.mrb[0].mxu0
        %v1506 = vadd.f32 %v1167, %v1505
        %v1507 = vpop.f32.mrb[0].mxu0
        %1508 = vmatprep.mubr.f32.mxu0 0.0
        %v1509 = vand.u32 %v419, 4294901760
        %v1510 = vsub.f32 %v419, %v1509
        %1511 = vmatmul.mubr.f32.gmra.mrb[0].mxu0 %v1510
        %v1512 = vpop.f32.mrb[0].mxu0
        %v1513 = vadd.f32 %v1173, %v1512
        %v1514 = vpop.f32.mrb[0].mxu0
        %1515 = vmatprep.mubr.f32.mxu0 0.0
        %v1516 = vand.u32 %v422, 4294901760
        %v1517 = vsub.f32 %v422, %v1516
        %1518 = vmatmul.mubr.f32.gmra.mrb[0].mxu0 %v1517
        %v1519 = vpop.f32.mrb[0].mxu0
        %v1520 = vadd.f32 %v1179, %v1519
        %v1521 = vpop.f32.mrb[0].mxu0
        %1522 = vmatprep.mubr.f32.mxu0 0.0
        %v1523 = vand.u32 %v425, 4294901760
        %v1524 = vsub.f32 %v425, %v1523
        %1525 = vmatmul.mubr.f32.gmra.mrb[0].mxu0 %v1524
        %v1526 = vpop.f32.mrb[0].mxu0
        %v1527 = vadd.f32 %v1185, %v1526
        %v1528 = vpop.f32.mrb[0].mxu0
        %1529 = vmatprep.mubr.f32.mxu0 0.0
        %v1530 = vand.u32 %v428, 4294901760
        %v1531 = vsub.f32 %v428, %v1530
        %1532 = vmatmul.mubr.f32.gmra.mrb[0].mxu0 %v1531
        %v1533 = vpop.f32.mrb[0].mxu0
        %v1534 = vadd.f32 %v1191, %v1533
        %v1535 = vpop.f32.mrb[0].mxu0
        %1536 = vmatprep.mubr.f32.mxu0 0.0
        %v1537 = vand.u32 %v431, 4294901760
        %v1538 = vsub.f32 %v431, %v1537
        %1539 = vmatmul.mubr.f32.gmra.mrb[0].mxu0 %v1538
        %v1540 = vpop.f32.mrb[0].mxu0
        %v1541 = vadd.f32 %v1197, %v1540
        %v1542 = vpop.f32.mrb[0].mxu0
        %1543 = vmatprep.mubr.f32.mxu0 0.0
        %v1544 = vand.u32 %v434, 4294901760
        %v1545 = vsub.f32 %v434, %v1544
        %1546 = vmatmul.mubr.f32.gmra.mrb[0].mxu0 %v1545
        %v1547 = vpop.f32.mrb[0].mxu0
        %v1548 = vadd.f32 %v1203, %v1547
        %v1549 = vpop.f32.mrb[0].mxu0
        %1550 = vmatprep.mubr.f32.mxu0 0.0
        %v1551 = vand.u32 %v437, 4294901760
        %v1552 = vsub.f32 %v437, %v1551
        %1553 = vmatmul.mubr.f32.gmra.mrb[0].mxu0 %v1552
        %v1554 = vpop.f32.mrb[0].mxu0
        %v1555 = vadd.f32 %v1209, %v1554
        %v1556 = vpop.f32.mrb[0].mxu0
        %1557 = vmatprep.mubr.f32.mxu0 0.0
        %v1558 = vand.u32 %v440, 4294901760
        %v1559 = vsub.f32 %v440, %v1558
        %1560 = vmatmul.mubr.f32.gmra.mrb[0].mxu0 %v1559
        %v1561 = vpop.f32.mrb[0].mxu0
        %v1562 = vadd.f32 %v1215, %v1561
        %v1563 = vpop.f32.mrb[0].mxu0
        %1564 = vmatprep.mubr.f32.mxu0 0.0
        %v1565 = vand.u32 %v443, 4294901760
        %v1566 = vsub.f32 %v443, %v1565
        %1567 = vmatmul.mubr.f32.gmra.mrb[0].mxu0 %v1566
        %v1568 = vpop.f32.mrb[0].mxu0
        %v1569 = vadd.f32 %v1221, %v1568
        %v1570 = vpop.f32.mrb[0].mxu0
        %1571 = vmatprep.mubr.f32.mxu0 0.0
        %v1572 = vand.u32 %v446, 4294901760
        %v1573 = vsub.f32 %v446, %v1572
        %1574 = vmatmul.mubr.f32.gmra.mrb[0].mxu0 %v1573
        %v1575 = vpop.f32.mrb[0].mxu0
        %v1576 = vadd.f32 %v1227, %v1575
        %v1577 = vpop.f32.mrb[0].mxu0
        %1578 = vdwg.mxu0
        %1579 = vmatprep.subr.mxu0 0.0
        %v1580 = vand.u32 %v325, 4294901760
        %1581 = vmatpush1.msra.mxu0 %v1580
        %1582 = vmatprep.subr.mxu0 0.0
        %v1583 = vand.u32 %v326, 4294901760
        %1584 = vmatpush1.msra.mxu0 %v1583
        %1585 = vmatprep.subr.mxu0 0.0
        %1586 = vmatpush1.msra.mxu0 0.0
        %1587 = vmatprep.subr.mxu0 0.0
        %1588 = vmatpush1.msra.mxu0 0.0
        %1589 = vmatprep.subr.mxu0 0.0
        %1590 = vmatpush1.msra.mxu0 0.0
        %1591 = vmatprep.subr.mxu0 0.0
        %1592 = vmatpush1.msra.mxu0 0.0
        %1593 = vmatprep.subr.mxu0 0.0
        %1594 = vmatpush1.msra.mxu0 0.0
        %1595 = vmatprep.subr.mxu0 0.0
        %1596 = vmatpush1.msra.mxu0 0.0
        %1597 = vmatprep.subr.mxu0 0.0
        %1598 = vmatpush1.msra.mxu0 0.0
        %1599 = vmatprep.subr.mxu0 0.0
        %1600 = vmatpush1.msra.mxu0 0.0
        %1601 = vmatprep.subr.mxu0 0.0
        %1602 = vmatpush1.msra.mxu0 0.0
        %1603 = vmatprep.subr.mxu0 0.0
        %1604 = vmatpush1.msra.mxu0 0.0
        %1605 = vmatprep.subr.mxu0 0.0
        %1606 = vmatpush1.msra.mxu0 0.0
        %1607 = vmatprep.subr.mxu0 0.0
        %1608 = vmatpush1.msra.mxu0 0.0
        %1609 = vmatprep.subr.mxu0 0.0
        %1610 = vmatpush1.msra.mxu0 0.0
        %1611 = vmatprep.subr.mxu0 0.0
        %1612 = vmatpush1.msra.mxu0 0.0
        %1613 = vmatprep.subr.mxu0 0.0
        %1614 = vmatpush1.msra.mxu0 0.0
        %1615 = vmatprep.subr.mxu0 0.0
        %1616 = vmatpush1.msra.mxu0 0.0
        %1617 = vmatprep.subr.mxu0 0.0
        %1618 = vmatpush1.msra.mxu0 0.0
        %1619 = vmatprep.subr.mxu0 0.0
        %1620 = vmatpush1.msra.mxu0 0.0
        %1621 = vmatprep.subr.mxu0 0.0
        %1622 = vmatpush1.msra.mxu0 0.0
        %1623 = vmatprep.subr.mxu0 0.0
        %1624 = vmatpush1.msra.mxu0 0.0
        %1625 = vmatprep.subr.mxu0 0.0
        %1626 = vmatpush1.msra.mxu0 0.0
        %1627 = vmatprep.subr.mxu0 0.0
        %1628 = vmatpush1.msra.mxu0 0.0
        %1629 = vmatprep.subr.mxu0 0.0
        %1630 = vmatpush1.msra.mxu0 0.0
        %1631 = vmatprep.subr.mxu0 0.0
        %1632 = vmatpush1.msra.mxu0 0.0
        %1633 = vmatprep.subr.mxu0 0.0
        %1634 = vmatpush1.msra.mxu0 0.0
        %1635 = vmatprep.subr.mxu0 0.0
        %1636 = vmatpush1.msra.mxu0 0.0
        %1637 = vmatprep.subr.mxu0 0.0
        %1638 = vmatpush1.msra.mxu0 0.0
        %1639 = vmatprep.subr.mxu0 0.0
        %1640 = vmatpush1.msra.mxu0 0.0
        %1641 = vmatprep.subr.mxu0 0.0
        %1642 = vmatpush1.msra.mxu0 0.0
        %1643 = vmatprep.subr.mxu0 0.0
        %1644 = vmatpush1.msra.mxu0 0.0
        %1645 = vmatprep.mubr.f32.mxu0 0.0
        %v1646 = vand.u32 %v329, 4294901760
        %v1647 = vsub.f32 %v329, %v1646
        %v1648 = vand.u32 %v1647, 4294901760
        %1649 = vmatmul.mubr.f32.gmra.mrb[0].mxu0 %v1648
        %v1650 = vpop.f32.mrb[0].mxu0
        %v1651 = vadd.f32 %v1303, %v1650
        %v1652 = vpop.f32.mrb[0].mxu0
        %1653 = vmatprep.mubr.f32.mxu0 0.0
        %v1654 = vand.u32 %v332, 4294901760
        %v1655 = vsub.f32 %v332, %v1654
        %v1656 = vand.u32 %v1655, 4294901760
        %1657 = vmatmul.mubr.f32.gmra.mrb[0].mxu0 %v1656
        %v1658 = vpop.f32.mrb[0].mxu0
        %v1659 = vadd.f32 %v1310, %v1658
        %v1660 = vpop.f32.mrb[0].mxu0
        %1661 = vmatprep.mubr.f32.mxu0 0.0
        %v1662 = vand.u32 %v335, 4294901760
        %v1663 = vsub.f32 %v335, %v1662
        %v1664 = vand.u32 %v1663, 4294901760
        %1665 = vmatmul.mubr.f32.gmra.mrb[0].mxu0 %v1664
        %v1666 = vpop.f32.mrb[0].mxu0
        %v1667 = vadd.f32 %v1317, %v1666
        %v1668 = vpop.f32.mrb[0].mxu0
        %1669 = vmatprep.mubr.f32.mxu0 0.0
        %v1670 = vand.u32 %v338, 4294901760
        %v1671 = vsub.f32 %v338, %v1670
        %v1672 = vand.u32 %v1671, 4294901760
        %1673 = vmatmul.mubr.f32.gmra.mrb[0].mxu0 %v1672
        %v1674 = vpop.f32.mrb[0].mxu0
        %v1675 = vadd.f32 %v1324, %v1674
        %v1676 = vpop.f32.mrb[0].mxu0
        %1677 = vmatprep.mubr.f32.mxu0 0.0
        %v1678 = vand.u32 %v341, 4294901760
        %v1679 = vsub.f32 %v341, %v1678
        %v1680 = vand.u32 %v1679, 4294901760
        %1681 = vmatmul.mubr.f32.gmra.mrb[0].mxu0 %v1680
        %v1682 = vpop.f32.mrb[0].mxu0
        %v1683 = vadd.f32 %v1331, %v1682
        %v1684 = vpop.f32.mrb[0].mxu0
        %1685 = vmatprep.mubr.f32.mxu0 0.0
        %v1686 = vand.u32 %v344, 4294901760
        %v1687 = vsub.f32 %v344, %v1686
        %v1688 = vand.u32 %v1687, 4294901760
        %1689 = vmatmul.mubr.f32.gmra.mrb[0].mxu0 %v1688
        %v1690 = vpop.f32.mrb[0].mxu0
        %v1691 = vadd.f32 %v1338, %v1690
        %v1692 = vpop.f32.mrb[0].mxu0
        %1693 = vmatprep.mubr.f32.mxu0 0.0
        %v1694 = vand.u32 %v347, 4294901760
        %v1695 = vsub.f32 %v347, %v1694
        %v1696 = vand.u32 %v1695, 4294901760
        %1697 = vmatmul.mubr.f32.gmra.mrb[0].mxu0 %v1696
        %v1698 = vpop.f32.mrb[0].mxu0
        %v1699 = vadd.f32 %v1345, %v1698
        %v1700 = vpop.f32.mrb[0].mxu0
        %1701 = vmatprep.mubr.f32.mxu0 0.0
        %v1702 = vand.u32 %v350, 4294901760
        %v1703 = vsub.f32 %v350, %v1702
        %v1704 = vand.u32 %v1703, 4294901760
        %1705 = vmatmul.mubr.f32.gmra.mrb[0].mxu0 %v1704
        %v1706 = vpop.f32.mrb[0].mxu0
        %v1707 = vadd.f32 %v1352, %v1706
        %v1708 = vpop.f32.mrb[0].mxu0
        %1709 = vmatprep.mubr.f32.mxu0 0.0
        %v1710 = vand.u32 %v353, 4294901760
        %v1711 = vsub.f32 %v353, %v1710
        %v1712 = vand.u32 %v1711, 4294901760
        %1713 = vmatmul.mubr.f32.gmra.mrb[0].mxu0 %v1712
        %v1714 = vpop.f32.mrb[0].mxu0
        %v1715 = vadd.f32 %v1359, %v1714
        %v1716 = vpop.f32.mrb[0].mxu0
        %1717 = vmatprep.mubr.f32.mxu0 0.0
        %v1718 = vand.u32 %v356, 4294901760
        %v1719 = vsub.f32 %v356, %v1718
        %v1720 = vand.u32 %v1719, 4294901760
        %1721 = vmatmul.mubr.f32.gmra.mrb[0].mxu0 %v1720
        %v1722 = vpop.f32.mrb[0].mxu0
        %v1723 = vadd.f32 %v1366, %v1722
        %v1724 = vpop.f32.mrb[0].mxu0
        %1725 = vmatprep.mubr.f32.mxu0 0.0
        %v1726 = vand.u32 %v359, 4294901760
        %v1727 = vsub.f32 %v359, %v1726
        %v1728 = vand.u32 %v1727, 4294901760
        %1729 = vmatmul.mubr.f32.gmra.mrb[0].mxu0 %v1728
        %v1730 = vpop.f32.mrb[0].mxu0
        %v1731 = vadd.f32 %v1373, %v1730
        %v1732 = vpop.f32.mrb[0].mxu0
        %1733 = vmatprep.mubr.f32.mxu0 0.0
        %v1734 = vand.u32 %v362, 4294901760
        %v1735 = vsub.f32 %v362, %v1734
        %v1736 = vand.u32 %v1735, 4294901760
        %1737 = vmatmul.mubr.f32.gmra.mrb[0].mxu0 %v1736
        %v1738 = vpop.f32.mrb[0].mxu0
        %v1739 = vadd.f32 %v1380, %v1738
        %v1740 = vpop.f32.mrb[0].mxu0
        %1741 = vmatprep.mubr.f32.mxu0 0.0
        %v1742 = vand.u32 %v365, 4294901760
        %v1743 = vsub.f32 %v365, %v1742
        %v1744 = vand.u32 %v1743, 4294901760
        %1745 = vmatmul.mubr.f32.gmra.mrb[0].mxu0 %v1744
        %v1746 = vpop.f32.mrb[0].mxu0
        %v1747 = vadd.f32 %v1387, %v1746
        %v1748 = vpop.f32.mrb[0].mxu0
        %1749 = vmatprep.mubr.f32.mxu0 0.0
        %v1750 = vand.u32 %v368, 4294901760
        %v1751 = vsub.f32 %v368, %v1750
        %v1752 = vand.u32 %v1751, 4294901760
        %1753 = vmatmul.mubr.f32.gmra.mrb[0].mxu0 %v1752
        %v1754 = vpop.f32.mrb[0].mxu0
        %v1755 = vadd.f32 %v1394, %v1754
        %v1756 = vpop.f32.mrb[0].mxu0
        %1757 = vmatprep.mubr.f32.mxu0 0.0
        %v1758 = vand.u32 %v371, 4294901760
        %v1759 = vsub.f32 %v371, %v1758
        %v1760 = vand.u32 %v1759, 4294901760
        %1761 = vmatmul.mubr.f32.gmra.mrb[0].mxu0 %v1760
        %v1762 = vpop.f32.mrb[0].mxu0
        %v1763 = vadd.f32 %v1401, %v1762
        %v1764 = vpop.f32.mrb[0].mxu0
        %1765 = vmatprep.mubr.f32.mxu0 0.0
        %v1766 = vand.u32 %v374, 4294901760
        %v1767 = vsub.f32 %v374, %v1766
        %v1768 = vand.u32 %v1767, 4294901760
        %1769 = vmatmul.mubr.f32.gmra.mrb[0].mxu0 %v1768
        %v1770 = vpop.f32.mrb[0].mxu0
        %v1771 = vadd.f32 %v1408, %v1770
        %v1772 = vpop.f32.mrb[0].mxu0
        %1773 = vmatprep.mubr.f32.mxu0 0.0
        %v1774 = vand.u32 %v377, 4294901760
        %v1775 = vsub.f32 %v377, %v1774
        %v1776 = vand.u32 %v1775, 4294901760
        %1777 = vmatmul.mubr.f32.gmra.mrb[0].mxu0 %v1776
        %v1778 = vpop.f32.mrb[0].mxu0
        %v1779 = vadd.f32 %v1415, %v1778
        %v1780 = vpop.f32.mrb[0].mxu0
        %1781 = vmatprep.mubr.f32.mxu0 0.0
        %v1782 = vand.u32 %v380, 4294901760
        %v1783 = vsub.f32 %v380, %v1782
        %v1784 = vand.u32 %v1783, 4294901760
        %1785 = vmatmul.mubr.f32.gmra.mrb[0].mxu0 %v1784
        %v1786 = vpop.f32.mrb[0].mxu0
        %v1787 = vadd.f32 %v1422, %v1786
        %v1788 = vpop.f32.mrb[0].mxu0
        %1789 = vmatprep.mubr.f32.mxu0 0.0
        %v1790 = vand.u32 %v383, 4294901760
        %v1791 = vsub.f32 %v383, %v1790
        %v1792 = vand.u32 %v1791, 4294901760
        %1793 = vmatmul.mubr.f32.gmra.mrb[0].mxu0 %v1792
        %v1794 = vpop.f32.mrb[0].mxu0
        %v1795 = vadd.f32 %v1429, %v1794
        %v1796 = vpop.f32.mrb[0].mxu0
        %1797 = vmatprep.mubr.f32.mxu0 0.0
        %v1798 = vand.u32 %v386, 4294901760
        %v1799 = vsub.f32 %v386, %v1798
        %v1800 = vand.u32 %v1799, 4294901760
        %1801 = vmatmul.mubr.f32.gmra.mrb[0].mxu0 %v1800
        %v1802 = vpop.f32.mrb[0].mxu0
        %v1803 = vadd.f32 %v1436, %v1802
        %v1804 = vpop.f32.mrb[0].mxu0
        %1805 = vmatprep.mubr.f32.mxu0 0.0
        %v1806 = vand.u32 %v389, 4294901760
        %v1807 = vsub.f32 %v389, %v1806
        %v1808 = vand.u32 %v1807, 4294901760
        %1809 = vmatmul.mubr.f32.gmra.mrb[0].mxu0 %v1808
        %v1810 = vpop.f32.mrb[0].mxu0
        %v1811 = vadd.f32 %v1443, %v1810
        %v1812 = vpop.f32.mrb[0].mxu0
        %1813 = vmatprep.mubr.f32.mxu0 0.0
        %v1814 = vand.u32 %v392, 4294901760
        %v1815 = vsub.f32 %v392, %v1814
        %v1816 = vand.u32 %v1815, 4294901760
        %1817 = vmatmul.mubr.f32.gmra.mrb[0].mxu0 %v1816
        %v1818 = vpop.f32.mrb[0].mxu0
        %v1819 = vadd.f32 %v1450, %v1818
        %v1820 = vpop.f32.mrb[0].mxu0
        %1821 = vmatprep.mubr.f32.mxu0 0.0
        %v1822 = vand.u32 %v395, 4294901760
        %v1823 = vsub.f32 %v395, %v1822
        %v1824 = vand.u32 %v1823, 4294901760
        %1825 = vmatmul.mubr.f32.gmra.mrb[0].mxu0 %v1824
        %v1826 = vpop.f32.mrb[0].mxu0
        %v1827 = vadd.f32 %v1457, %v1826
        %v1828 = vpop.f32.mrb[0].mxu0
        %1829 = vmatprep.mubr.f32.mxu0 0.0
        %v1830 = vand.u32 %v398, 4294901760
        %v1831 = vsub.f32 %v398, %v1830
        %v1832 = vand.u32 %v1831, 4294901760
        %1833 = vmatmul.mubr.f32.gmra.mrb[0].mxu0 %v1832
        %v1834 = vpop.f32.mrb[0].mxu0
        %v1835 = vadd.f32 %v1464, %v1834
        %v1836 = vpop.f32.mrb[0].mxu0
        %1837 = vmatprep.mubr.f32.mxu0 0.0
        %v1838 = vand.u32 %v401, 4294901760
        %v1839 = vsub.f32 %v401, %v1838
        %v1840 = vand.u32 %v1839, 4294901760
        %1841 = vmatmul.mubr.f32.gmra.mrb[0].mxu0 %v1840
        %v1842 = vpop.f32.mrb[0].mxu0
        %v1843 = vadd.f32 %v1471, %v1842
        %v1844 = vpop.f32.mrb[0].mxu0
        %1845 = vmatprep.mubr.f32.mxu0 0.0
        %v1846 = vand.u32 %v404, 4294901760
        %v1847 = vsub.f32 %v404, %v1846
        %v1848 = vand.u32 %v1847, 4294901760
        %1849 = vmatmul.mubr.f32.gmra.mrb[0].mxu0 %v1848
        %v1850 = vpop.f32.mrb[0].mxu0
        %v1851 = vadd.f32 %v1478, %v1850
        %v1852 = vpop.f32.mrb[0].mxu0
        %1853 = vmatprep.mubr.f32.mxu0 0.0
        %v1854 = vand.u32 %v407, 4294901760
        %v1855 = vsub.f32 %v407, %v1854
        %v1856 = vand.u32 %v1855, 4294901760
        %1857 = vmatmul.mubr.f32.gmra.mrb[0].mxu0 %v1856
        %v1858 = vpop.f32.mrb[0].mxu0
        %v1859 = vadd.f32 %v1485, %v1858
        %v1860 = vpop.f32.mrb[0].mxu0
        %1861 = vmatprep.mubr.f32.mxu0 0.0
        %v1862 = vand.u32 %v410, 4294901760
        %v1863 = vsub.f32 %v410, %v1862
        %v1864 = vand.u32 %v1863, 4294901760
        %1865 = vmatmul.mubr.f32.gmra.mrb[0].mxu0 %v1864
        %v1866 = vpop.f32.mrb[0].mxu0
        %v1867 = vadd.f32 %v1492, %v1866
        %v1868 = vpop.f32.mrb[0].mxu0
        %1869 = vmatprep.mubr.f32.mxu0 0.0
        %v1870 = vand.u32 %v413, 4294901760
        %v1871 = vsub.f32 %v413, %v1870
        %v1872 = vand.u32 %v1871, 4294901760
        %1873 = vmatmul.mubr.f32.gmra.mrb[0].mxu0 %v1872
        %v1874 = vpop.f32.mrb[0].mxu0
        %v1875 = vadd.f32 %v1499, %v1874
        %v1876 = vpop.f32.mrb[0].mxu0
        %1877 = vmatprep.mubr.f32.mxu0 0.0
        %v1878 = vand.u32 %v416, 4294901760
        %v1879 = vsub.f32 %v416, %v1878
        %v1880 = vand.u32 %v1879, 4294901760
        %1881 = vmatmul.mubr.f32.gmra.mrb[0].mxu0 %v1880
        %v1882 = vpop.f32.mrb[0].mxu0
        %v1883 = vadd.f32 %v1506, %v1882
        %v1884 = vpop.f32.mrb[0].mxu0
        %1885 = vmatprep.mubr.f32.mxu0 0.0
        %v1886 = vand.u32 %v419, 4294901760
        %v1887 = vsub.f32 %v419, %v1886
        %v1888 = vand.u32 %v1887, 4294901760
        %1889 = vmatmul.mubr.f32.gmra.mrb[0].mxu0 %v1888
        %v1890 = vpop.f32.mrb[0].mxu0
        %v1891 = vadd.f32 %v1513, %v1890
        %v1892 = vpop.f32.mrb[0].mxu0
        %1893 = vmatprep.mubr.f32.mxu0 0.0
        %v1894 = vand.u32 %v422, 4294901760
        %v1895 = vsub.f32 %v422, %v1894
        %v1896 = vand.u32 %v1895, 4294901760
        %1897 = vmatmul.mubr.f32.gmra.mrb[0].mxu0 %v1896
        %v1898 = vpop.f32.mrb[0].mxu0
        %v1899 = vadd.f32 %v1520, %v1898
        %v1900 = vpop.f32.mrb[0].mxu0
        %1901 = vmatprep.mubr.f32.mxu0 0.0
        %v1902 = vand.u32 %v425, 4294901760
        %v1903 = vsub.f32 %v425, %v1902
        %v1904 = vand.u32 %v1903, 4294901760
        %1905 = vmatmul.mubr.f32.gmra.mrb[0].mxu0 %v1904
        %v1906 = vpop.f32.mrb[0].mxu0
        %v1907 = vadd.f32 %v1527, %v1906
        %v1908 = vpop.f32.mrb[0].mxu0
        %1909 = vmatprep.mubr.f32.mxu0 0.0
        %v1910 = vand.u32 %v428, 4294901760
        %v1911 = vsub.f32 %v428, %v1910
        %v1912 = vand.u32 %v1911, 4294901760
        %1913 = vmatmul.mubr.f32.gmra.mrb[0].mxu0 %v1912
        %v1914 = vpop.f32.mrb[0].mxu0
        %v1915 = vadd.f32 %v1534, %v1914
        %v1916 = vpop.f32.mrb[0].mxu0
        %1917 = vmatprep.mubr.f32.mxu0 0.0
        %v1918 = vand.u32 %v431, 4294901760
        %v1919 = vsub.f32 %v431, %v1918
        %v1920 = vand.u32 %v1919, 4294901760
        %1921 = vmatmul.mubr.f32.gmra.mrb[0].mxu0 %v1920
        %v1922 = vpop.f32.mrb[0].mxu0
        %v1923 = vadd.f32 %v1541, %v1922
        %v1924 = vpop.f32.mrb[0].mxu0
        %1925 = vmatprep.mubr.f32.mxu0 0.0
        %v1926 = vand.u32 %v434, 4294901760
        %v1927 = vsub.f32 %v434, %v1926
        %v1928 = vand.u32 %v1927, 4294901760
        %1929 = vmatmul.mubr.f32.gmra.mrb[0].mxu0 %v1928
        %v1930 = vpop.f32.mrb[0].mxu0
        %v1931 = vadd.f32 %v1548, %v1930
        %v1932 = vpop.f32.mrb[0].mxu0
        %1933 = vmatprep.mubr.f32.mxu0 0.0
        %v1934 = vand.u32 %v437, 4294901760
        %v1935 = vsub.f32 %v437, %v1934
        %v1936 = vand.u32 %v1935, 4294901760
        %1937 = vmatmul.mubr.f32.gmra.mrb[0].mxu0 %v1936
        %v1938 = vpop.f32.mrb[0].mxu0
        %v1939 = vadd.f32 %v1555, %v1938
        %v1940 = vpop.f32.mrb[0].mxu0
        %1941 = vmatprep.mubr.f32.mxu0 0.0
        %v1942 = vand.u32 %v440, 4294901760
        %v1943 = vsub.f32 %v440, %v1942
        %v1944 = vand.u32 %v1943, 4294901760
        %1945 = vmatmul.mubr.f32.gmra.mrb[0].mxu0 %v1944
        %v1946 = vpop.f32.mrb[0].mxu0
        %v1947 = vadd.f32 %v1562, %v1946
        %v1948 = vpop.f32.mrb[0].mxu0
        %1949 = vmatprep.mubr.f32.mxu0 0.0
        %v1950 = vand.u32 %v443, 4294901760
        %v1951 = vsub.f32 %v443, %v1950
        %v1952 = vand.u32 %v1951, 4294901760
        %1953 = vmatmul.mubr.f32.gmra.mrb[0].mxu0 %v1952
        %v1954 = vpop.f32.mrb[0].mxu0
        %v1955 = vadd.f32 %v1569, %v1954
        %v1956 = vpop.f32.mrb[0].mxu0
        %1957 = vmatprep.mubr.f32.mxu0 0.0
        %v1958 = vand.u32 %v446, 4294901760
        %v1959 = vsub.f32 %v446, %v1958
        %v1960 = vand.u32 %v1959, 4294901760
        %1961 = vmatmul.mubr.f32.gmra.mrb[0].mxu0 %v1960
        %v1962 = vpop.f32.mrb[0].mxu0
        %v1963 = vadd.f32 %v1576, %v1962
        %v1964 = vpop.f32.mrb[0].mxu0
        %1965 = vdwg.mxu0
        %1966 = vmatprep.subr.mxu0 0.0
        %v1967 = vand.u32 %v325, 4294901760
        %v1968 = vsub.f32 %v325, %v1967
        %v1969 = vand.u32 %v1968, 4294901760
        %1970 = vmatpush1.msra.mxu0 %v1969
        %1971 = vmatprep.subr.mxu0 0.0
        %v1972 = vand.u32 %v326, 4294901760
        %v1973 = vsub.f32 %v326, %v1972
        %v1974 = vand.u32 %v1973, 4294901760
        %1975 = vmatpush1.msra.mxu0 %v1974
        %1976 = vmatprep.subr.mxu0 0.0
        %1977 = vmatpush1.msra.mxu0 0.0
        %1978 = vmatprep.subr.mxu0 0.0
        %1979 = vmatpush1.msra.mxu0 0.0
        %1980 = vmatprep.subr.mxu0 0.0
        %1981 = vmatpush1.msra.mxu0 0.0
        %1982 = vmatprep.subr.mxu0 0.0
        %1983 = vmatpush1.msra.mxu0 0.0
        %1984 = vmatprep.subr.mxu0 0.0
        %1985 = vmatpush1.msra.mxu0 0.0
        %1986 = vmatprep.subr.mxu0 0.0
        %1987 = vmatpush1.msra.mxu0 0.0
        %1988 = vmatprep.subr.mxu0 0.0
        %1989 = vmatpush1.msra.mxu0 0.0
        %1990 = vmatprep.subr.mxu0 0.0
        %1991 = vmatpush1.msra.mxu0 0.0
        %1992 = vmatprep.subr.mxu0 0.0
        %1993 = vmatpush1.msra.mxu0 0.0
        %1994 = vmatprep.subr.mxu0 0.0
        %1995 = vmatpush1.msra.mxu0 0.0
        %1996 = vmatprep.subr.mxu0 0.0
        %1997 = vmatpush1.msra.mxu0 0.0
        %1998 = vmatprep.subr.mxu0 0.0
        %1999 = vmatpush1.msra.mxu0 0.0
        %2000 = vmatprep.subr.mxu0 0.0
        %2001 = vmatpush1.msra.mxu0 0.0
        %2002 = vmatprep.subr.mxu0 0.0
        %2003 = vmatpush1.msra.mxu0 0.0
        %2004 = vmatprep.subr.mxu0 0.0
        %2005 = vmatpush1.msra.mxu0 0.0
        %2006 = vmatprep.subr.mxu0 0.0
        %2007 = vmatpush1.msra.mxu0 0.0
        %2008 = vmatprep.subr.mxu0 0.0
        %2009 = vmatpush1.msra.mxu0 0.0
        %2010 = vmatprep.subr.mxu0 0.0
        %2011 = vmatpush1.msra.mxu0 0.0
        %2012 = vmatprep.subr.mxu0 0.0
        %2013 = vmatpush1.msra.mxu0 0.0
        %2014 = vmatprep.subr.mxu0 0.0
        %2015 = vmatpush1.msra.mxu0 0.0
        %2016 = vmatprep.subr.mxu0 0.0
        %2017 = vmatpush1.msra.mxu0 0.0
        %2018 = vmatprep.subr.mxu0 0.0
        %2019 = vmatpush1.msra.mxu0 0.0
        %2020 = vmatprep.subr.mxu0 0.0
        %2021 = vmatpush1.msra.mxu0 0.0
        %2022 = vmatprep.subr.mxu0 0.0
        %2023 = vmatpush1.msra.mxu0 0.0
        %2024 = vmatprep.subr.mxu0 0.0
        %2025 = vmatpush1.msra.mxu0 0.0
        %2026 = vmatprep.subr.mxu0 0.0
        %2027 = vmatpush1.msra.mxu0 0.0
        %2028 = vmatprep.subr.mxu0 0.0
        %2029 = vmatpush1.msra.mxu0 0.0
        %2030 = vmatprep.subr.mxu0 0.0
        %2031 = vmatpush1.msra.mxu0 0.0
        %2032 = vmatprep.subr.mxu0 0.0
        %2033 = vmatpush1.msra.mxu0 0.0
        %2034 = vmatprep.subr.mxu0 0.0
        %2035 = vmatpush1.msra.mxu0 0.0
        %2036 = vmatprep.mubr.f32.mxu0 0.0
        %v2037 = vand.u32 %v329, 4294901760
        %2038 = vmatmul.mubr.f32.gmra.mrb[0].mxu0 %v2037
        %v2039 = vpop.f32.mrb[0].mxu0
        %v2040 = vadd.f32 %v1651, %v2039
        %v2041 = vpop.f32.mrb[0].mxu0
        %2042 = vmatprep.mubr.f32.mxu0 0.0
        %v2043 = vand.u32 %v332, 4294901760
        %2044 = vmatmul.mubr.f32.gmra.mrb[0].mxu0 %v2043
        %v2045 = vpop.f32.mrb[0].mxu0
        %v2046 = vadd.f32 %v1659, %v2045
        %v2047 = vpop.f32.mrb[0].mxu0
        %2048 = vmatprep.mubr.f32.mxu0 0.0
        %v2049 = vand.u32 %v335, 4294901760
        %2050 = vmatmul.mubr.f32.gmra.mrb[0].mxu0 %v2049
        %v2051 = vpop.f32.mrb[0].mxu0
        %v2052 = vadd.f32 %v1667, %v2051
        %v2053 = vpop.f32.mrb[0].mxu0
        %2054 = vmatprep.mubr.f32.mxu0 0.0
        %v2055 = vand.u32 %v338, 4294901760
        %2056 = vmatmul.mubr.f32.gmra.mrb[0].mxu0 %v2055
        %v2057 = vpop.f32.mrb[0].mxu0
        %v2058 = vadd.f32 %v1675, %v2057
        %v2059 = vpop.f32.mrb[0].mxu0
        %2060 = vmatprep.mubr.f32.mxu0 0.0
        %v2061 = vand.u32 %v341, 4294901760
        %2062 = vmatmul.mubr.f32.gmra.mrb[0].mxu0 %v2061
        %v2063 = vpop.f32.mrb[0].mxu0
        %v2064 = vadd.f32 %v1683, %v2063
        %v2065 = vpop.f32.mrb[0].mxu0
        %2066 = vmatprep.mubr.f32.mxu0 0.0
        %v2067 = vand.u32 %v344, 4294901760
        %2068 = vmatmul.mubr.f32.gmra.mrb[0].mxu0 %v2067
        %v2069 = vpop.f32.mrb[0].mxu0
        %v2070 = vadd.f32 %v1691, %v2069
        %v2071 = vpop.f32.mrb[0].mxu0
        %2072 = vmatprep.mubr.f32.mxu0 0.0
        %v2073 = vand.u32 %v347, 4294901760
        %2074 = vmatmul.mubr.f32.gmra.mrb[0].mxu0 %v2073
        %v2075 = vpop.f32.mrb[0].mxu0
        %v2076 = vadd.f32 %v1699, %v2075
        %v2077 = vpop.f32.mrb[0].mxu0
        %2078 = vmatprep.mubr.f32.mxu0 0.0
        %v2079 = vand.u32 %v350, 4294901760
        %2080 = vmatmul.mubr.f32.gmra.mrb[0].mxu0 %v2079
        %v2081 = vpop.f32.mrb[0].mxu0
        %v2082 = vadd.f32 %v1707, %v2081
        %v2083 = vpop.f32.mrb[0].mxu0
        %2084 = vmatprep.mubr.f32.mxu0 0.0
        %v2085 = vand.u32 %v353, 4294901760
        %2086 = vmatmul.mubr.f32.gmra.mrb[0].mxu0 %v2085
        %v2087 = vpop.f32.mrb[0].mxu0
        %v2088 = vadd.f32 %v1715, %v2087
        %v2089 = vpop.f32.mrb[0].mxu0
        %2090 = vmatprep.mubr.f32.mxu0 0.0
        %v2091 = vand.u32 %v356, 4294901760
        %2092 = vmatmul.mubr.f32.gmra.mrb[0].mxu0 %v2091
        %v2093 = vpop.f32.mrb[0].mxu0
        %v2094 = vadd.f32 %v1723, %v2093
        %v2095 = vpop.f32.mrb[0].mxu0
        %2096 = vmatprep.mubr.f32.mxu0 0.0
        %v2097 = vand.u32 %v359, 4294901760
        %2098 = vmatmul.mubr.f32.gmra.mrb[0].mxu0 %v2097
        %v2099 = vpop.f32.mrb[0].mxu0
        %v2100 = vadd.f32 %v1731, %v2099
        %v2101 = vpop.f32.mrb[0].mxu0
        %2102 = vmatprep.mubr.f32.mxu0 0.0
        %v2103 = vand.u32 %v362, 4294901760
        %2104 = vmatmul.mubr.f32.gmra.mrb[0].mxu0 %v2103
        %v2105 = vpop.f32.mrb[0].mxu0
        %v2106 = vadd.f32 %v1739, %v2105
        %v2107 = vpop.f32.mrb[0].mxu0
        %2108 = vmatprep.mubr.f32.mxu0 0.0
        %v2109 = vand.u32 %v365, 4294901760
        %2110 = vmatmul.mubr.f32.gmra.mrb[0].mxu0 %v2109
        %v2111 = vpop.f32.mrb[0].mxu0
        %v2112 = vadd.f32 %v1747, %v2111
        %v2113 = vpop.f32.mrb[0].mxu0
        %2114 = vmatprep.mubr.f32.mxu0 0.0
        %v2115 = vand.u32 %v368, 4294901760
        %2116 = vmatmul.mubr.f32.gmra.mrb[0].mxu0 %v2115
        %v2117 = vpop.f32.mrb[0].mxu0
        %v2118 = vadd.f32 %v1755, %v2117
        %v2119 = vpop.f32.mrb[0].mxu0
        %2120 = vmatprep.mubr.f32.mxu0 0.0
        %v2121 = vand.u32 %v371, 4294901760
        %2122 = vmatmul.mubr.f32.gmra.mrb[0].mxu0 %v2121
        %v2123 = vpop.f32.mrb[0].mxu0
        %v2124 = vadd.f32 %v1763, %v2123
        %v2125 = vpop.f32.mrb[0].mxu0
        %2126 = vmatprep.mubr.f32.mxu0 0.0
        %v2127 = vand.u32 %v374, 4294901760
        %2128 = vmatmul.mubr.f32.gmra.mrb[0].mxu0 %v2127
        %v2129 = vpop.f32.mrb[0].mxu0
        %v2130 = vadd.f32 %v1771, %v2129
        %v2131 = vpop.f32.mrb[0].mxu0
        %2132 = vmatprep.mubr.f32.mxu0 0.0
        %v2133 = vand.u32 %v377, 4294901760
        %2134 = vmatmul.mubr.f32.gmra.mrb[0].mxu0 %v2133
        %v2135 = vpop.f32.mrb[0].mxu0
        %v2136 = vadd.f32 %v1779, %v2135
        %v2137 = vpop.f32.mrb[0].mxu0
        %2138 = vmatprep.mubr.f32.mxu0 0.0
        %v2139 = vand.u32 %v380, 4294901760
        %2140 = vmatmul.mubr.f32.gmra.mrb[0].mxu0 %v2139
        %v2141 = vpop.f32.mrb[0].mxu0
        %v2142 = vadd.f32 %v1787, %v2141
        %v2143 = vpop.f32.mrb[0].mxu0
        %2144 = vmatprep.mubr.f32.mxu0 0.0
        %v2145 = vand.u32 %v383, 4294901760
        %2146 = vmatmul.mubr.f32.gmra.mrb[0].mxu0 %v2145
        %v2147 = vpop.f32.mrb[0].mxu0
        %v2148 = vadd.f32 %v1795, %v2147
        %v2149 = vpop.f32.mrb[0].mxu0
        %2150 = vmatprep.mubr.f32.mxu0 0.0
        %v2151 = vand.u32 %v386, 4294901760
        %2152 = vmatmul.mubr.f32.gmra.mrb[0].mxu0 %v2151
        %v2153 = vpop.f32.mrb[0].mxu0
        %v2154 = vadd.f32 %v1803, %v2153
        %v2155 = vpop.f32.mrb[0].mxu0
        %2156 = vmatprep.mubr.f32.mxu0 0.0
        %v2157 = vand.u32 %v389, 4294901760
        %2158 = vmatmul.mubr.f32.gmra.mrb[0].mxu0 %v2157
        %v2159 = vpop.f32.mrb[0].mxu0
        %v2160 = vadd.f32 %v1811, %v2159
        %v2161 = vpop.f32.mrb[0].mxu0
        %2162 = vmatprep.mubr.f32.mxu0 0.0
        %v2163 = vand.u32 %v392, 4294901760
        %2164 = vmatmul.mubr.f32.gmra.mrb[0].mxu0 %v2163
        %v2165 = vpop.f32.mrb[0].mxu0
        %v2166 = vadd.f32 %v1819, %v2165
        %v2167 = vpop.f32.mrb[0].mxu0
        %2168 = vmatprep.mubr.f32.mxu0 0.0
        %v2169 = vand.u32 %v395, 4294901760
        %2170 = vmatmul.mubr.f32.gmra.mrb[0].mxu0 %v2169
        %v2171 = vpop.f32.mrb[0].mxu0
        %v2172 = vadd.f32 %v1827, %v2171
        %v2173 = vpop.f32.mrb[0].mxu0
        %2174 = vmatprep.mubr.f32.mxu0 0.0
        %v2175 = vand.u32 %v398, 4294901760
        %2176 = vmatmul.mubr.f32.gmra.mrb[0].mxu0 %v2175
        %v2177 = vpop.f32.mrb[0].mxu0
        %v2178 = vadd.f32 %v1835, %v2177
        %v2179 = vpop.f32.mrb[0].mxu0
        %2180 = vmatprep.mubr.f32.mxu0 0.0
        %v2181 = vand.u32 %v401, 4294901760
        %2182 = vmatmul.mubr.f32.gmra.mrb[0].mxu0 %v2181
        %v2183 = vpop.f32.mrb[0].mxu0
        %v2184 = vadd.f32 %v1843, %v2183
        %v2185 = vpop.f32.mrb[0].mxu0
        %2186 = vmatprep.mubr.f32.mxu0 0.0
        %v2187 = vand.u32 %v404, 4294901760
        %2188 = vmatmul.mubr.f32.gmra.mrb[0].mxu0 %v2187
        %v2189 = vpop.f32.mrb[0].mxu0
        %v2190 = vadd.f32 %v1851, %v2189
        %v2191 = vpop.f32.mrb[0].mxu0
        %2192 = vmatprep.mubr.f32.mxu0 0.0
        %v2193 = vand.u32 %v407, 4294901760
        %2194 = vmatmul.mubr.f32.gmra.mrb[0].mxu0 %v2193
        %v2195 = vpop.f32.mrb[0].mxu0
        %v2196 = vadd.f32 %v1859, %v2195
        %v2197 = vpop.f32.mrb[0].mxu0
        %2198 = vmatprep.mubr.f32.mxu0 0.0
        %v2199 = vand.u32 %v410, 4294901760
        %2200 = vmatmul.mubr.f32.gmra.mrb[0].mxu0 %v2199
        %v2201 = vpop.f32.mrb[0].mxu0
        %v2202 = vadd.f32 %v1867, %v2201
        %v2203 = vpop.f32.mrb[0].mxu0
        %2204 = vmatprep.mubr.f32.mxu0 0.0
        %v2205 = vand.u32 %v413, 4294901760
        %2206 = vmatmul.mubr.f32.gmra.mrb[0].mxu0 %v2205
        %v2207 = vpop.f32.mrb[0].mxu0
        %v2208 = vadd.f32 %v1875, %v2207
        %v2209 = vpop.f32.mrb[0].mxu0
        %2210 = vmatprep.mubr.f32.mxu0 0.0
        %v2211 = vand.u32 %v416, 4294901760
        %2212 = vmatmul.mubr.f32.gmra.mrb[0].mxu0 %v2211
        %v2213 = vpop.f32.mrb[0].mxu0
        %v2214 = vadd.f32 %v1883, %v2213
        %v2215 = vpop.f32.mrb[0].mxu0
        %2216 = vmatprep.mubr.f32.mxu0 0.0
        %v2217 = vand.u32 %v419, 4294901760
        %2218 = vmatmul.mubr.f32.gmra.mrb[0].mxu0 %v2217
        %v2219 = vpop.f32.mrb[0].mxu0
        %v2220 = vadd.f32 %v1891, %v2219
        %v2221 = vpop.f32.mrb[0].mxu0
        %2222 = vmatprep.mubr.f32.mxu0 0.0
        %v2223 = vand.u32 %v422, 4294901760
        %2224 = vmatmul.mubr.f32.gmra.mrb[0].mxu0 %v2223
        %v2225 = vpop.f32.mrb[0].mxu0
        %v2226 = vadd.f32 %v1899, %v2225
        %v2227 = vpop.f32.mrb[0].mxu0
        %2228 = vmatprep.mubr.f32.mxu0 0.0
        %v2229 = vand.u32 %v425, 4294901760
        %2230 = vmatmul.mubr.f32.gmra.mrb[0].mxu0 %v2229
        %v2231 = vpop.f32.mrb[0].mxu0
        %v2232 = vadd.f32 %v1907, %v2231
        %v2233 = vpop.f32.mrb[0].mxu0
        %2234 = vmatprep.mubr.f32.mxu0 0.0
        %v2235 = vand.u32 %v428, 4294901760
        %2236 = vmatmul.mubr.f32.gmra.mrb[0].mxu0 %v2235
        %v2237 = vpop.f32.mrb[0].mxu0
        %v2238 = vadd.f32 %v1915, %v2237
        %v2239 = vpop.f32.mrb[0].mxu0
        %2240 = vmatprep.mubr.f32.mxu0 0.0
        %v2241 = vand.u32 %v431, 4294901760
        %2242 = vmatmul.mubr.f32.gmra.mrb[0].mxu0 %v2241
        %v2243 = vpop.f32.mrb[0].mxu0
        %v2244 = vadd.f32 %v1923, %v2243
        %v2245 = vpop.f32.mrb[0].mxu0
        %2246 = vmatprep.mubr.f32.mxu0 0.0
        %v2247 = vand.u32 %v434, 4294901760
        %2248 = vmatmul.mubr.f32.gmra.mrb[0].mxu0 %v2247
        %v2249 = vpop.f32.mrb[0].mxu0
        %v2250 = vadd.f32 %v1931, %v2249
        %v2251 = vpop.f32.mrb[0].mxu0
        %2252 = vmatprep.mubr.f32.mxu0 0.0
        %v2253 = vand.u32 %v437, 4294901760
        %2254 = vmatmul.mubr.f32.gmra.mrb[0].mxu0 %v2253
        %v2255 = vpop.f32.mrb[0].mxu0
        %v2256 = vadd.f32 %v1939, %v2255
        %v2257 = vpop.f32.mrb[0].mxu0
        %2258 = vmatprep.mubr.f32.mxu0 0.0
        %v2259 = vand.u32 %v440, 4294901760
        %2260 = vmatmul.mubr.f32.gmra.mrb[0].mxu0 %v2259
        %v2261 = vpop.f32.mrb[0].mxu0
        %v2262 = vadd.f32 %v1947, %v2261
        %v2263 = vpop.f32.mrb[0].mxu0
        %2264 = vmatprep.mubr.f32.mxu0 0.0
        %v2265 = vand.u32 %v443, 4294901760
        %2266 = vmatmul.mubr.f32.gmra.mrb[0].mxu0 %v2265
        %v2267 = vpop.f32.mrb[0].mxu0
        %v2268 = vadd.f32 %v1955, %v2267
        %v2269 = vpop.f32.mrb[0].mxu0
        %2270 = vmatprep.mubr.f32.mxu0 0.0
        %v2271 = vand.u32 %v446, 4294901760
        %2272 = vmatmul.mubr.f32.gmra.mrb[0].mxu0 %v2271
        %v2273 = vpop.f32.mrb[0].mxu0
        %v2274 = vadd.f32 %v1963, %v2273
        %v2275 = vpop.f32.mrb[0].mxu0
        %2276 = vdwg.mxu0
        %2277 = vmatprep.subr.mxu0 0.0
        %v2278 = vand.u32 %v325, 4294901760
        %2279 = vmatpush1.msra.mxu0 %v2278
        %2280 = vmatprep.subr.mxu0 0.0
        %v2281 = vand.u32 %v326, 4294901760
        %2282 = vmatpush1.msra.mxu0 %v2281
        %2283 = vmatprep.subr.mxu0 0.0
        %2284 = vmatpush1.msra.mxu0 0.0
        %2285 = vmatprep.subr.mxu0 0.0
        %2286 = vmatpush1.msra.mxu0 0.0
        %2287 = vmatprep.subr.mxu0 0.0
        %2288 = vmatpush1.msra.mxu0 0.0
        %2289 = vmatprep.subr.mxu0 0.0
        %2290 = vmatpush1.msra.mxu0 0.0
        %2291 = vmatprep.subr.mxu0 0.0
        %2292 = vmatpush1.msra.mxu0 0.0
        %2293 = vmatprep.subr.mxu0 0.0
        %2294 = vmatpush1.msra.mxu0 0.0
        %2295 = vmatprep.subr.mxu0 0.0
        %2296 = vmatpush1.msra.mxu0 0.0
        %2297 = vmatprep.subr.mxu0 0.0
        %2298 = vmatpush1.msra.mxu0 0.0
        %2299 = vmatprep.subr.mxu0 0.0
        %2300 = vmatpush1.msra.mxu0 0.0
        %2301 = vmatprep.subr.mxu0 0.0
        %2302 = vmatpush1.msra.mxu0 0.0
        %2303 = vmatprep.subr.mxu0 0.0
        %2304 = vmatpush1.msra.mxu0 0.0
        %2305 = vmatprep.subr.mxu0 0.0
        %2306 = vmatpush1.msra.mxu0 0.0
        %2307 = vmatprep.subr.mxu0 0.0
        %2308 = vmatpush1.msra.mxu0 0.0
        %2309 = vmatprep.subr.mxu0 0.0
        %2310 = vmatpush1.msra.mxu0 0.0
        %2311 = vmatprep.subr.mxu0 0.0
        %2312 = vmatpush1.msra.mxu0 0.0
        %2313 = vmatprep.subr.mxu0 0.0
        %2314 = vmatpush1.msra.mxu0 0.0
        %2315 = vmatprep.subr.mxu0 0.0
        %2316 = vmatpush1.msra.mxu0 0.0
        %2317 = vmatprep.subr.mxu0 0.0
        %2318 = vmatpush1.msra.mxu0 0.0
        %2319 = vmatprep.subr.mxu0 0.0
        %2320 = vmatpush1.msra.mxu0 0.0
        %2321 = vmatprep.subr.mxu0 0.0
        %2322 = vmatpush1.msra.mxu0 0.0
        %2323 = vmatprep.subr.mxu0 0.0
        %2324 = vmatpush1.msra.mxu0 0.0
        %2325 = vmatprep.subr.mxu0 0.0
        %2326 = vmatpush1.msra.mxu0 0.0
        %2327 = vmatprep.subr.mxu0 0.0
        %2328 = vmatpush1.msra.mxu0 0.0
        %2329 = vmatprep.subr.mxu0 0.0
        %2330 = vmatpush1.msra.mxu0 0.0
        %2331 = vmatprep.subr.mxu0 0.0
        %2332 = vmatpush1.msra.mxu0 0.0
        %2333 = vmatprep.subr.mxu0 0.0
        %2334 = vmatpush1.msra.mxu0 0.0
        %2335 = vmatprep.subr.mxu0 0.0
        %2336 = vmatpush1.msra.mxu0 0.0
        %2337 = vmatprep.subr.mxu0 0.0
        %2338 = vmatpush1.msra.mxu0 0.0
        %2339 = vmatprep.subr.mxu0 0.0
        %2340 = vmatpush1.msra.mxu0 0.0
        %2341 = vmatprep.subr.mxu0 0.0
        %2342 = vmatpush1.msra.mxu0 0.0
        %2343 = vmatprep.mubr.f32.mxu0 0.0
        %v2344 = vand.u32 %v329, 4294901760
        %2345 = vmatmul.mubr.f32.gmra.mrb[0].mxu0 %v2344
        %v2346 = vpop.f32.mrb[0].mxu0
        %v2347 = vadd.f32 %v2040, %v2346
        %v2348 = vpop.f32.mrb[0].mxu0
        %2349 = vmatprep.mubr.f32.mxu0 0.0
        %v2350 = vand.u32 %v332, 4294901760
        %2351 = vmatmul.mubr.f32.gmra.mrb[0].mxu0 %v2350
        %v2352 = vpop.f32.mrb[0].mxu0
        %v2353 = vadd.f32 %v2046, %v2352
        %v2354 = vpop.f32.mrb[0].mxu0
        %2355 = vmatprep.mubr.f32.mxu0 0.0
        %v2356 = vand.u32 %v335, 4294901760
        %2357 = vmatmul.mubr.f32.gmra.mrb[0].mxu0 %v2356
        %v2358 = vpop.f32.mrb[0].mxu0
        %v2359 = vadd.f32 %v2052, %v2358
        %v2360 = vpop.f32.mrb[0].mxu0
        %2361 = vmatprep.mubr.f32.mxu0 0.0
        %v2362 = vand.u32 %v338, 4294901760
        %2363 = vmatmul.mubr.f32.gmra.mrb[0].mxu0 %v2362
        %v2364 = vpop.f32.mrb[0].mxu0
        %v2365 = vadd.f32 %v2058, %v2364
        %v2366 = vpop.f32.mrb[0].mxu0
        %2367 = vmatprep.mubr.f32.mxu0 0.0
        %v2368 = vand.u32 %v341, 4294901760
        %2369 = vmatmul.mubr.f32.gmra.mrb[0].mxu0 %v2368
        %v2370 = vpop.f32.mrb[0].mxu0
        %v2371 = vadd.f32 %v2064, %v2370
        %v2372 = vpop.f32.mrb[0].mxu0
        %2373 = vmatprep.mubr.f32.mxu0 0.0
        %v2374 = vand.u32 %v344, 4294901760
        %2375 = vmatmul.mubr.f32.gmra.mrb[0].mxu0 %v2374
        %v2376 = vpop.f32.mrb[0].mxu0
        %v2377 = vadd.f32 %v2070, %v2376
        %v2378 = vpop.f32.mrb[0].mxu0
        %2379 = vmatprep.mubr.f32.mxu0 0.0
        %v2380 = vand.u32 %v347, 4294901760
        %2381 = vmatmul.mubr.f32.gmra.mrb[0].mxu0 %v2380
        %v2382 = vpop.f32.mrb[0].mxu0
        %v2383 = vadd.f32 %v2076, %v2382
        %v2384 = vpop.f32.mrb[0].mxu0
        %2385 = vmatprep.mubr.f32.mxu0 0.0
        %v2386 = vand.u32 %v350, 4294901760
        %2387 = vmatmul.mubr.f32.gmra.mrb[0].mxu0 %v2386
        %v2388 = vpop.f32.mrb[0].mxu0
        %v2389 = vadd.f32 %v2082, %v2388
        %v2390 = vpop.f32.mrb[0].mxu0
        %2391 = vmatprep.mubr.f32.mxu0 0.0
        %v2392 = vand.u32 %v353, 4294901760
        %2393 = vmatmul.mubr.f32.gmra.mrb[0].mxu0 %v2392
        %v2394 = vpop.f32.mrb[0].mxu0
        %v2395 = vadd.f32 %v2088, %v2394
        %v2396 = vpop.f32.mrb[0].mxu0
        %2397 = vmatprep.mubr.f32.mxu0 0.0
        %v2398 = vand.u32 %v356, 4294901760
        %2399 = vmatmul.mubr.f32.gmra.mrb[0].mxu0 %v2398
        %v2400 = vpop.f32.mrb[0].mxu0
        %v2401 = vadd.f32 %v2094, %v2400
        %v2402 = vpop.f32.mrb[0].mxu0
        %2403 = vmatprep.mubr.f32.mxu0 0.0
        %v2404 = vand.u32 %v359, 4294901760
        %2405 = vmatmul.mubr.f32.gmra.mrb[0].mxu0 %v2404
        %v2406 = vpop.f32.mrb[0].mxu0
        %v2407 = vadd.f32 %v2100, %v2406
        %v2408 = vpop.f32.mrb[0].mxu0
        %2409 = vmatprep.mubr.f32.mxu0 0.0
        %v2410 = vand.u32 %v362, 4294901760
        %2411 = vmatmul.mubr.f32.gmra.mrb[0].mxu0 %v2410
        %v2412 = vpop.f32.mrb[0].mxu0
        %v2413 = vadd.f32 %v2106, %v2412
        %v2414 = vpop.f32.mrb[0].mxu0
        %2415 = vmatprep.mubr.f32.mxu0 0.0
        %v2416 = vand.u32 %v365, 4294901760
        %2417 = vmatmul.mubr.f32.gmra.mrb[0].mxu0 %v2416
        %v2418 = vpop.f32.mrb[0].mxu0
        %v2419 = vadd.f32 %v2112, %v2418
        %v2420 = vpop.f32.mrb[0].mxu0
        %2421 = vmatprep.mubr.f32.mxu0 0.0
        %v2422 = vand.u32 %v368, 4294901760
        %2423 = vmatmul.mubr.f32.gmra.mrb[0].mxu0 %v2422
        %v2424 = vpop.f32.mrb[0].mxu0
        %v2425 = vadd.f32 %v2118, %v2424
        %v2426 = vpop.f32.mrb[0].mxu0
        %2427 = vmatprep.mubr.f32.mxu0 0.0
        %v2428 = vand.u32 %v371, 4294901760
        %2429 = vmatmul.mubr.f32.gmra.mrb[0].mxu0 %v2428
        %v2430 = vpop.f32.mrb[0].mxu0
        %v2431 = vadd.f32 %v2124, %v2430
        %v2432 = vpop.f32.mrb[0].mxu0
        %2433 = vmatprep.mubr.f32.mxu0 0.0
        %v2434 = vand.u32 %v374, 4294901760
        %2435 = vmatmul.mubr.f32.gmra.mrb[0].mxu0 %v2434
        %v2436 = vpop.f32.mrb[0].mxu0
        %v2437 = vadd.f32 %v2130, %v2436
        %v2438 = vpop.f32.mrb[0].mxu0
        %2439 = vmatprep.mubr.f32.mxu0 0.0
        %v2440 = vand.u32 %v377, 4294901760
        %2441 = vmatmul.mubr.f32.gmra.mrb[0].mxu0 %v2440
        %v2442 = vpop.f32.mrb[0].mxu0
        %v2443 = vadd.f32 %v2136, %v2442
        %v2444 = vpop.f32.mrb[0].mxu0
        %2445 = vmatprep.mubr.f32.mxu0 0.0
        %v2446 = vand.u32 %v380, 4294901760
        %2447 = vmatmul.mubr.f32.gmra.mrb[0].mxu0 %v2446
        %v2448 = vpop.f32.mrb[0].mxu0
        %v2449 = vadd.f32 %v2142, %v2448
        %v2450 = vpop.f32.mrb[0].mxu0
        %2451 = vmatprep.mubr.f32.mxu0 0.0
        %v2452 = vand.u32 %v383, 4294901760
        %2453 = vmatmul.mubr.f32.gmra.mrb[0].mxu0 %v2452
        %v2454 = vpop.f32.mrb[0].mxu0
        %v2455 = vadd.f32 %v2148, %v2454
        %v2456 = vpop.f32.mrb[0].mxu0
        %2457 = vmatprep.mubr.f32.mxu0 0.0
        %v2458 = vand.u32 %v386, 4294901760
        %2459 = vmatmul.mubr.f32.gmra.mrb[0].mxu0 %v2458
        %v2460 = vpop.f32.mrb[0].mxu0
        %v2461 = vadd.f32 %v2154, %v2460
        %v2462 = vpop.f32.mrb[0].mxu0
        %2463 = vmatprep.mubr.f32.mxu0 0.0
        %v2464 = vand.u32 %v389, 4294901760
        %2465 = vmatmul.mubr.f32.gmra.mrb[0].mxu0 %v2464
        %v2466 = vpop.f32.mrb[0].mxu0
        %v2467 = vadd.f32 %v2160, %v2466
        %v2468 = vpop.f32.mrb[0].mxu0
        %2469 = vmatprep.mubr.f32.mxu0 0.0
        %v2470 = vand.u32 %v392, 4294901760
        %2471 = vmatmul.mubr.f32.gmra.mrb[0].mxu0 %v2470
        %v2472 = vpop.f32.mrb[0].mxu0
        %v2473 = vadd.f32 %v2166, %v2472
        %v2474 = vpop.f32.mrb[0].mxu0
        %2475 = vmatprep.mubr.f32.mxu0 0.0
        %v2476 = vand.u32 %v395, 4294901760
        %2477 = vmatmul.mubr.f32.gmra.mrb[0].mxu0 %v2476
        %v2478 = vpop.f32.mrb[0].mxu0
        %v2479 = vadd.f32 %v2172, %v2478
        %v2480 = vpop.f32.mrb[0].mxu0
        %2481 = vmatprep.mubr.f32.mxu0 0.0
        %v2482 = vand.u32 %v398, 4294901760
        %2483 = vmatmul.mubr.f32.gmra.mrb[0].mxu0 %v2482
        %v2484 = vpop.f32.mrb[0].mxu0
        %v2485 = vadd.f32 %v2178, %v2484
        %v2486 = vpop.f32.mrb[0].mxu0
        %2487 = vmatprep.mubr.f32.mxu0 0.0
        %v2488 = vand.u32 %v401, 4294901760
        %2489 = vmatmul.mubr.f32.gmra.mrb[0].mxu0 %v2488
        %v2490 = vpop.f32.mrb[0].mxu0
        %v2491 = vadd.f32 %v2184, %v2490
        %v2492 = vpop.f32.mrb[0].mxu0
        %2493 = vmatprep.mubr.f32.mxu0 0.0
        %v2494 = vand.u32 %v404, 4294901760
        %2495 = vmatmul.mubr.f32.gmra.mrb[0].mxu0 %v2494
        %v2496 = vpop.f32.mrb[0].mxu0
        %v2497 = vadd.f32 %v2190, %v2496
        %v2498 = vpop.f32.mrb[0].mxu0
        %2499 = vmatprep.mubr.f32.mxu0 0.0
        %v2500 = vand.u32 %v407, 4294901760
        %2501 = vmatmul.mubr.f32.gmra.mrb[0].mxu0 %v2500
        %v2502 = vpop.f32.mrb[0].mxu0
        %v2503 = vadd.f32 %v2196, %v2502
        %v2504 = vpop.f32.mrb[0].mxu0
        %2505 = vmatprep.mubr.f32.mxu0 0.0
        %v2506 = vand.u32 %v410, 4294901760
        %2507 = vmatmul.mubr.f32.gmra.mrb[0].mxu0 %v2506
        %v2508 = vpop.f32.mrb[0].mxu0
        %v2509 = vadd.f32 %v2202, %v2508
        %v2510 = vpop.f32.mrb[0].mxu0
        %2511 = vmatprep.mubr.f32.mxu0 0.0
        %v2512 = vand.u32 %v413, 4294901760
        %2513 = vmatmul.mubr.f32.gmra.mrb[0].mxu0 %v2512
        %v2514 = vpop.f32.mrb[0].mxu0
        %v2515 = vadd.f32 %v2208, %v2514
        %v2516 = vpop.f32.mrb[0].mxu0
        %2517 = vmatprep.mubr.f32.mxu0 0.0
        %v2518 = vand.u32 %v416, 4294901760
        %2519 = vmatmul.mubr.f32.gmra.mrb[0].mxu0 %v2518
        %v2520 = vpop.f32.mrb[0].mxu0
        %v2521 = vadd.f32 %v2214, %v2520
        %v2522 = vpop.f32.mrb[0].mxu0
        %2523 = vmatprep.mubr.f32.mxu0 0.0
        %v2524 = vand.u32 %v419, 4294901760
        %2525 = vmatmul.mubr.f32.gmra.mrb[0].mxu0 %v2524
        %v2526 = vpop.f32.mrb[0].mxu0
        %v2527 = vadd.f32 %v2220, %v2526
        %v2528 = vpop.f32.mrb[0].mxu0
        %2529 = vmatprep.mubr.f32.mxu0 0.0
        %v2530 = vand.u32 %v422, 4294901760
        %2531 = vmatmul.mubr.f32.gmra.mrb[0].mxu0 %v2530
        %v2532 = vpop.f32.mrb[0].mxu0
        %v2533 = vadd.f32 %v2226, %v2532
        %v2534 = vpop.f32.mrb[0].mxu0
        %2535 = vmatprep.mubr.f32.mxu0 0.0
        %v2536 = vand.u32 %v425, 4294901760
        %2537 = vmatmul.mubr.f32.gmra.mrb[0].mxu0 %v2536
        %v2538 = vpop.f32.mrb[0].mxu0
        %v2539 = vadd.f32 %v2232, %v2538
        %v2540 = vpop.f32.mrb[0].mxu0
        %2541 = vmatprep.mubr.f32.mxu0 0.0
        %v2542 = vand.u32 %v428, 4294901760
        %2543 = vmatmul.mubr.f32.gmra.mrb[0].mxu0 %v2542
        %v2544 = vpop.f32.mrb[0].mxu0
        %v2545 = vadd.f32 %v2238, %v2544
        %v2546 = vpop.f32.mrb[0].mxu0
        %2547 = vmatprep.mubr.f32.mxu0 0.0
        %v2548 = vand.u32 %v431, 4294901760
        %2549 = vmatmul.mubr.f32.gmra.mrb[0].mxu0 %v2548
        %v2550 = vpop.f32.mrb[0].mxu0
        %v2551 = vadd.f32 %v2244, %v2550
        %v2552 = vpop.f32.mrb[0].mxu0
        %2553 = vmatprep.mubr.f32.mxu0 0.0
        %v2554 = vand.u32 %v434, 4294901760
        %2555 = vmatmul.mubr.f32.gmra.mrb[0].mxu0 %v2554
        %v2556 = vpop.f32.mrb[0].mxu0
        %v2557 = vadd.f32 %v2250, %v2556
        %v2558 = vpop.f32.mrb[0].mxu0
        %2559 = vmatprep.mubr.f32.mxu0 0.0
        %v2560 = vand.u32 %v437, 4294901760
        %2561 = vmatmul.mubr.f32.gmra.mrb[0].mxu0 %v2560
        %v2562 = vpop.f32.mrb[0].mxu0
        %v2563 = vadd.f32 %v2256, %v2562
        %v2564 = vpop.f32.mrb[0].mxu0
        %2565 = vmatprep.mubr.f32.mxu0 0.0
        %v2566 = vand.u32 %v440, 4294901760
        %2567 = vmatmul.mubr.f32.gmra.mrb[0].mxu0 %v2566
        %v2568 = vpop.f32.mrb[0].mxu0
        %v2569 = vadd.f32 %v2262, %v2568
        %v2570 = vpop.f32.mrb[0].mxu0
        %2571 = vmatprep.mubr.f32.mxu0 0.0
        %v2572 = vand.u32 %v443, 4294901760
        %2573 = vmatmul.mubr.f32.gmra.mrb[0].mxu0 %v2572
        %v2574 = vpop.f32.mrb[0].mxu0
        %v2575 = vadd.f32 %v2268, %v2574
        %v2576 = vpop.f32.mrb[0].mxu0
        %2577 = vmatprep.mubr.f32.mxu0 0.0
        %v2578 = vand.u32 %v446, 4294901760
        %2579 = vmatmul.mubr.f32.gmra.mrb[0].mxu0 %v2578
        %v2580 = vpop.f32.mrb[0].mxu0
        %v2581 = vadd.f32 %v2274, %v2580
        %v2582 = vpop.f32.mrb[0].mxu0
        %2583 = vdwg.mxu0
        %2584 = vxpose.xlu0.b32.start [1/16] %v2347, 128
        %2585 = vxpose.xlu0.b32.cont [2/16] %v2353, 128
        %2586 = vxpose.xlu0.b32.cont [3/16] 0.0, 128
        %2587 = vxpose.xlu0.b32.cont [4/16] 0.0, 128
        %2588 = vxpose.xlu0.b32.cont [5/16] 0.0, 128
        %2589 = vxpose.xlu0.b32.cont [6/16] 0.0, 128
        %2590 = vxpose.xlu0.b32.cont [7/16] 0.0, 128
        %2591 = vxpose.xlu0.b32.cont [8/16] 0.0, 128
        %2592 = vxpose.xlu0.b32.cont [9/16] 0.0, 128
        %2593 = vxpose.xlu0.b32.cont [10/16] 0.0, 128
        %2594 = vxpose.xlu0.b32.cont [11/16] 0.0, 128
        %2595 = vxpose.xlu0.b32.cont [12/16] 0.0, 128
        %2596 = vxpose.xlu0.b32.cont [13/16] 0.0, 128
        %2597 = vxpose.xlu0.b32.cont [14/16] 0.0, 128
        %2598 = vxpose.xlu0.b32.cont [15/16] 0.0, 128
        %2599 = vxpose.xlu0.b32.end [16/16] 0.0, 128
        %v2600 = vpop.trf.xlu0
        %v2601 = vpop.trf.xlu0
        %v2602 = vpop.trf.xlu0
        %v2603 = vpop.trf.xlu0
        %v2604 = vpop.trf.xlu0
        %v2605 = vpop.trf.xlu0
        %v2606 = vpop.trf.xlu0
        %v2607 = vpop.trf.xlu0
        %v2608 = vpop.trf.xlu0
        %v2609 = vpop.trf.xlu0
        %v2610 = vpop.trf.xlu0
        %v2611 = vpop.trf.xlu0
        %v2612 = vpop.trf.xlu0
        %v2613 = vpop.trf.xlu0
        %v2614 = vpop.trf.xlu0
        %v2615 = vpop.trf.xlu0
        %2616 = vxpose.xlu0.b32.start [1/16] %v2359, 128
        %2617 = vxpose.xlu0.b32.cont [2/16] %v2365, 128
        %2618 = vxpose.xlu0.b32.cont [3/16] 0.0, 128
        %2619 = vxpose.xlu0.b32.cont [4/16] 0.0, 128
        %2620 = vxpose.xlu0.b32.cont [5/16] 0.0, 128
        %2621 = vxpose.xlu0.b32.cont [6/16] 0.0, 128
        %2622 = vxpose.xlu0.b32.cont [7/16] 0.0, 128
        %2623 = vxpose.xlu0.b32.cont [8/16] 0.0, 128
        %2624 = vxpose.xlu0.b32.cont [9/16] 0.0, 128
        %2625 = vxpose.xlu0.b32.cont [10/16] 0.0, 128
        %2626 = vxpose.xlu0.b32.cont [11/16] 0.0, 128
        %2627 = vxpose.xlu0.b32.cont [12/16] 0.0, 128
        %2628 = vxpose.xlu0.b32.cont [13/16] 0.0, 128
        %2629 = vxpose.xlu0.b32.cont [14/16] 0.0, 128
        %2630 = vxpose.xlu0.b32.cont [15/16] 0.0, 128
        %2631 = vxpose.xlu0.b32.end [16/16] 0.0, 128
        %v2632 = vpop.trf.xlu0
        %v2633 = vpop.trf.xlu0
        %v2634 = vpop.trf.xlu0
        %v2635 = vpop.trf.xlu0
        %v2636 = vpop.trf.xlu0
        %v2637 = vpop.trf.xlu0
        %v2638 = vpop.trf.xlu0
        %v2639 = vpop.trf.xlu0
        %v2640 = vpop.trf.xlu0
        %v2641 = vpop.trf.xlu0
        %v2642 = vpop.trf.xlu0
        %v2643 = vpop.trf.xlu0
        %v2644 = vpop.trf.xlu0
        %v2645 = vpop.trf.xlu0
        %v2646 = vpop.trf.xlu0
        %v2647 = vpop.trf.xlu0
        %2648 = vxpose.xlu0.b32.start [1/16] %v2371, 128
        %2649 = vxpose.xlu0.b32.cont [2/16] %v2377, 128
        %2650 = vxpose.xlu0.b32.cont [3/16] 0.0, 128
        %2651 = vxpose.xlu0.b32.cont [4/16] 0.0, 128
        %2652 = vxpose.xlu0.b32.cont [5/16] 0.0, 128
        %2653 = vxpose.xlu0.b32.cont [6/16] 0.0, 128
        %2654 = vxpose.xlu0.b32.cont [7/16] 0.0, 128
        %2655 = vxpose.xlu0.b32.cont [8/16] 0.0, 128
        %2656 = vxpose.xlu0.b32.cont [9/16] 0.0, 128
        %2657 = vxpose.xlu0.b32.cont [10/16] 0.0, 128
        %2658 = vxpose.xlu0.b32.cont [11/16] 0.0, 128
        %2659 = vxpose.xlu0.b32.cont [12/16] 0.0, 128
        %2660 = vxpose.xlu0.b32.cont [13/16] 0.0, 128
        %2661 = vxpose.xlu0.b32.cont [14/16] 0.0, 128
        %2662 = vxpose.xlu0.b32.cont [15/16] 0.0, 128
        %2663 = vxpose.xlu0.b32.end [16/16] 0.0, 128
        %v2664 = vpop.trf.xlu0
        %v2665 = vpop.trf.xlu0
        %v2666 = vpop.trf.xlu0
        %v2667 = vpop.trf.xlu0
        %v2668 = vpop.trf.xlu0
        %v2669 = vpop.trf.xlu0
        %v2670 = vpop.trf.xlu0
        %v2671 = vpop.trf.xlu0
        %v2672 = vpop.trf.xlu0
        %v2673 = vpop.trf.xlu0
        %v2674 = vpop.trf.xlu0
        %v2675 = vpop.trf.xlu0
        %v2676 = vpop.trf.xlu0
        %v2677 = vpop.trf.xlu0
        %v2678 = vpop.trf.xlu0
        %v2679 = vpop.trf.xlu0
        %2680 = vxpose.xlu0.b32.start [1/16] %v2383, 128
        %2681 = vxpose.xlu0.b32.cont [2/16] %v2389, 128
        %2682 = vxpose.xlu0.b32.cont [3/16] 0.0, 128
        %2683 = vxpose.xlu0.b32.cont [4/16] 0.0, 128
        %2684 = vxpose.xlu0.b32.cont [5/16] 0.0, 128
        %2685 = vxpose.xlu0.b32.cont [6/16] 0.0, 128
        %2686 = vxpose.xlu0.b32.cont [7/16] 0.0, 128
        %2687 = vxpose.xlu0.b32.cont [8/16] 0.0, 128
        %2688 = vxpose.xlu0.b32.cont [9/16] 0.0, 128
        %2689 = vxpose.xlu0.b32.cont [10/16] 0.0, 128
        %2690 = vxpose.xlu0.b32.cont [11/16] 0.0, 128
        %2691 = vxpose.xlu0.b32.cont [12/16] 0.0, 128
        %2692 = vxpose.xlu0.b32.cont [13/16] 0.0, 128
        %2693 = vxpose.xlu0.b32.cont [14/16] 0.0, 128
        %2694 = vxpose.xlu0.b32.cont [15/16] 0.0, 128
        %2695 = vxpose.xlu0.b32.end [16/16] 0.0, 128
        %v2696 = vpop.trf.xlu0
        %v2697 = vpop.trf.xlu0
        %v2698 = vpop.trf.xlu0
        %v2699 = vpop.trf.xlu0
        %v2700 = vpop.trf.xlu0
        %v2701 = vpop.trf.xlu0
        %v2702 = vpop.trf.xlu0
        %v2703 = vpop.trf.xlu0
        %v2704 = vpop.trf.xlu0
        %v2705 = vpop.trf.xlu0
        %v2706 = vpop.trf.xlu0
        %v2707 = vpop.trf.xlu0
        %v2708 = vpop.trf.xlu0
        %v2709 = vpop.trf.xlu0
        %v2710 = vpop.trf.xlu0
        %v2711 = vpop.trf.xlu0
        %2712 = vxpose.xlu0.b32.start [1/16] %v2395, 128
        %2713 = vxpose.xlu0.b32.cont [2/16] %v2401, 128
        %2714 = vxpose.xlu0.b32.cont [3/16] 0.0, 128
        %2715 = vxpose.xlu0.b32.cont [4/16] 0.0, 128
        %2716 = vxpose.xlu0.b32.cont [5/16] 0.0, 128
        %2717 = vxpose.xlu0.b32.cont [6/16] 0.0, 128
        %2718 = vxpose.xlu0.b32.cont [7/16] 0.0, 128
        %2719 = vxpose.xlu0.b32.cont [8/16] 0.0, 128
        %2720 = vxpose.xlu0.b32.cont [9/16] 0.0, 128
        %2721 = vxpose.xlu0.b32.cont [10/16] 0.0, 128
        %2722 = vxpose.xlu0.b32.cont [11/16] 0.0, 128
        %2723 = vxpose.xlu0.b32.cont [12/16] 0.0, 128
        %2724 = vxpose.xlu0.b32.cont [13/16] 0.0, 128
        %2725 = vxpose.xlu0.b32.cont [14/16] 0.0, 128
        %2726 = vxpose.xlu0.b32.cont [15/16] 0.0, 128
        %2727 = vxpose.xlu0.b32.end [16/16] 0.0, 128
        %v2728 = vpop.trf.xlu0
        %v2729 = vpop.trf.xlu0
        %v2730 = vpop.trf.xlu0
        %v2731 = vpop.trf.xlu0
        %v2732 = vpop.trf.xlu0
        %v2733 = vpop.trf.xlu0
        %v2734 = vpop.trf.xlu0
        %v2735 = vpop.trf.xlu0
        %v2736 = vpop.trf.xlu0
        %v2737 = vpop.trf.xlu0
        %v2738 = vpop.trf.xlu0
        %v2739 = vpop.trf.xlu0
        %v2740 = vpop.trf.xlu0
        %v2741 = vpop.trf.xlu0
        %v2742 = vpop.trf.xlu0
        %v2743 = vpop.trf.xlu0
        %2744 = vxpose.xlu0.b32.start [1/16] %v2407, 128
        %2745 = vxpose.xlu0.b32.cont [2/16] %v2413, 128
        %2746 = vxpose.xlu0.b32.cont [3/16] 0.0, 128
        %2747 = vxpose.xlu0.b32.cont [4/16] 0.0, 128
        %2748 = vxpose.xlu0.b32.cont [5/16] 0.0, 128
        %2749 = vxpose.xlu0.b32.cont [6/16] 0.0, 128
        %2750 = vxpose.xlu0.b32.cont [7/16] 0.0, 128
        %2751 = vxpose.xlu0.b32.cont [8/16] 0.0, 128
        %2752 = vxpose.xlu0.b32.cont [9/16] 0.0, 128
        %2753 = vxpose.xlu0.b32.cont [10/16] 0.0, 128
        %2754 = vxpose.xlu0.b32.cont [11/16] 0.0, 128
        %2755 = vxpose.xlu0.b32.cont [12/16] 0.0, 128
        %2756 = vxpose.xlu0.b32.cont [13/16] 0.0, 128
        %2757 = vxpose.xlu0.b32.cont [14/16] 0.0, 128
        %2758 = vxpose.xlu0.b32.cont [15/16] 0.0, 128
        %2759 = vxpose.xlu0.b32.end [16/16] 0.0, 128
        %v2760 = vpop.trf.xlu0
        %v2761 = vpop.trf.xlu0
        %v2762 = vpop.trf.xlu0
        %v2763 = vpop.trf.xlu0
        %v2764 = vpop.trf.xlu0
        %v2765 = vpop.trf.xlu0
        %v2766 = vpop.trf.xlu0
        %v2767 = vpop.trf.xlu0
        %v2768 = vpop.trf.xlu0
        %v2769 = vpop.trf.xlu0
        %v2770 = vpop.trf.xlu0
        %v2771 = vpop.trf.xlu0
        %v2772 = vpop.trf.xlu0
        %v2773 = vpop.trf.xlu0
        %v2774 = vpop.trf.xlu0
        %v2775 = vpop.trf.xlu0
        %2776 = vxpose.xlu0.b32.start [1/16] %v2419, 128
        %2777 = vxpose.xlu0.b32.cont [2/16] %v2425, 128
        %2778 = vxpose.xlu0.b32.cont [3/16] 0.0, 128
        %2779 = vxpose.xlu0.b32.cont [4/16] 0.0, 128
        %2780 = vxpose.xlu0.b32.cont [5/16] 0.0, 128
        %2781 = vxpose.xlu0.b32.cont [6/16] 0.0, 128
        %2782 = vxpose.xlu0.b32.cont [7/16] 0.0, 128
        %2783 = vxpose.xlu0.b32.cont [8/16] 0.0, 128
        %2784 = vxpose.xlu0.b32.cont [9/16] 0.0, 128
        %2785 = vxpose.xlu0.b32.cont [10/16] 0.0, 128
        %2786 = vxpose.xlu0.b32.cont [11/16] 0.0, 128
        %2787 = vxpose.xlu0.b32.cont [12/16] 0.0, 128
        %2788 = vxpose.xlu0.b32.cont [13/16] 0.0, 128
        %2789 = vxpose.xlu0.b32.cont [14/16] 0.0, 128
        %2790 = vxpose.xlu0.b32.cont [15/16] 0.0, 128
        %2791 = vxpose.xlu0.b32.end [16/16] 0.0, 128
        %v2792 = vpop.trf.xlu0
        %v2793 = vpop.trf.xlu0
        %v2794 = vpop.trf.xlu0
        %v2795 = vpop.trf.xlu0
        %v2796 = vpop.trf.xlu0
        %v2797 = vpop.trf.xlu0
        %v2798 = vpop.trf.xlu0
        %v2799 = vpop.trf.xlu0
        %v2800 = vpop.trf.xlu0
        %v2801 = vpop.trf.xlu0
        %v2802 = vpop.trf.xlu0
        %v2803 = vpop.trf.xlu0
        %v2804 = vpop.trf.xlu0
        %v2805 = vpop.trf.xlu0
        %v2806 = vpop.trf.xlu0
        %v2807 = vpop.trf.xlu0
        %2808 = vxpose.xlu0.b32.start [1/16] %v2431, 128
        %2809 = vxpose.xlu0.b32.cont [2/16] %v2437, 128
        %2810 = vxpose.xlu0.b32.cont [3/16] 0.0, 128
        %2811 = vxpose.xlu0.b32.cont [4/16] 0.0, 128
        %2812 = vxpose.xlu0.b32.cont [5/16] 0.0, 128
        %2813 = vxpose.xlu0.b32.cont [6/16] 0.0, 128
        %2814 = vxpose.xlu0.b32.cont [7/16] 0.0, 128
        %2815 = vxpose.xlu0.b32.cont [8/16] 0.0, 128
        %2816 = vxpose.xlu0.b32.cont [9/16] 0.0, 128
        %2817 = vxpose.xlu0.b32.cont [10/16] 0.0, 128
        %2818 = vxpose.xlu0.b32.cont [11/16] 0.0, 128
        %2819 = vxpose.xlu0.b32.cont [12/16] 0.0, 128
        %2820 = vxpose.xlu0.b32.cont [13/16] 0.0, 128
        %2821 = vxpose.xlu0.b32.cont [14/16] 0.0, 128
        %2822 = vxpose.xlu0.b32.cont [15/16] 0.0, 128
        %2823 = vxpose.xlu0.b32.end [16/16] 0.0, 128
        %v2824 = vpop.trf.xlu0
        %v2825 = vpop.trf.xlu0
        %v2826 = vpop.trf.xlu0
        %v2827 = vpop.trf.xlu0
        %v2828 = vpop.trf.xlu0
        %v2829 = vpop.trf.xlu0
        %v2830 = vpop.trf.xlu0
        %v2831 = vpop.trf.xlu0
        %v2832 = vpop.trf.xlu0
        %v2833 = vpop.trf.xlu0
        %v2834 = vpop.trf.xlu0
        %v2835 = vpop.trf.xlu0
        %v2836 = vpop.trf.xlu0
        %v2837 = vpop.trf.xlu0
        %v2838 = vpop.trf.xlu0
        %v2839 = vpop.trf.xlu0
        %2840 = vxpose.xlu0.b32.start [1/16] %v2443, 128
        %2841 = vxpose.xlu0.b32.cont [2/16] %v2449, 128
        %2842 = vxpose.xlu0.b32.cont [3/16] 0.0, 128
        %2843 = vxpose.xlu0.b32.cont [4/16] 0.0, 128
        %2844 = vxpose.xlu0.b32.cont [5/16] 0.0, 128
        %2845 = vxpose.xlu0.b32.cont [6/16] 0.0, 128
        %2846 = vxpose.xlu0.b32.cont [7/16] 0.0, 128
        %2847 = vxpose.xlu0.b32.cont [8/16] 0.0, 128
        %2848 = vxpose.xlu0.b32.cont [9/16] 0.0, 128
        %2849 = vxpose.xlu0.b32.cont [10/16] 0.0, 128
        %2850 = vxpose.xlu0.b32.cont [11/16] 0.0, 128
        %2851 = vxpose.xlu0.b32.cont [12/16] 0.0, 128
        %2852 = vxpose.xlu0.b32.cont [13/16] 0.0, 128
        %2853 = vxpose.xlu0.b32.cont [14/16] 0.0, 128
        %2854 = vxpose.xlu0.b32.cont [15/16] 0.0, 128
        %2855 = vxpose.xlu0.b32.end [16/16] 0.0, 128
        %v2856 = vpop.trf.xlu0
        %v2857 = vpop.trf.xlu0
        %v2858 = vpop.trf.xlu0
        %v2859 = vpop.trf.xlu0
        %v2860 = vpop.trf.xlu0
        %v2861 = vpop.trf.xlu0
        %v2862 = vpop.trf.xlu0
        %v2863 = vpop.trf.xlu0
        %v2864 = vpop.trf.xlu0
        %v2865 = vpop.trf.xlu0
        %v2866 = vpop.trf.xlu0
        %v2867 = vpop.trf.xlu0
        %v2868 = vpop.trf.xlu0
        %v2869 = vpop.trf.xlu0
        %v2870 = vpop.trf.xlu0
        %v2871 = vpop.trf.xlu0
        %2872 = vxpose.xlu0.b32.start [1/16] %v2455, 128
        %2873 = vxpose.xlu0.b32.cont [2/16] %v2461, 128
        %2874 = vxpose.xlu0.b32.cont [3/16] 0.0, 128
        %2875 = vxpose.xlu0.b32.cont [4/16] 0.0, 128
        %2876 = vxpose.xlu0.b32.cont [5/16] 0.0, 128
        %2877 = vxpose.xlu0.b32.cont [6/16] 0.0, 128
        %2878 = vxpose.xlu0.b32.cont [7/16] 0.0, 128
        %2879 = vxpose.xlu0.b32.cont [8/16] 0.0, 128
        %2880 = vxpose.xlu0.b32.cont [9/16] 0.0, 128
        %2881 = vxpose.xlu0.b32.cont [10/16] 0.0, 128
        %2882 = vxpose.xlu0.b32.cont [11/16] 0.0, 128
        %2883 = vxpose.xlu0.b32.cont [12/16] 0.0, 128
        %2884 = vxpose.xlu0.b32.cont [13/16] 0.0, 128
        %2885 = vxpose.xlu0.b32.cont [14/16] 0.0, 128
        %2886 = vxpose.xlu0.b32.cont [15/16] 0.0, 128
        %2887 = vxpose.xlu0.b32.end [16/16] 0.0, 128
        %v2888 = vpop.trf.xlu0
        %v2889 = vpop.trf.xlu0
        %v2890 = vpop.trf.xlu0
        %v2891 = vpop.trf.xlu0
        %v2892 = vpop.trf.xlu0
        %v2893 = vpop.trf.xlu0
        %v2894 = vpop.trf.xlu0
        %v2895 = vpop.trf.xlu0
        %v2896 = vpop.trf.xlu0
        %v2897 = vpop.trf.xlu0
        %v2898 = vpop.trf.xlu0
        %v2899 = vpop.trf.xlu0
        %v2900 = vpop.trf.xlu0
        %v2901 = vpop.trf.xlu0
        %v2902 = vpop.trf.xlu0
        %v2903 = vpop.trf.xlu0
        %2904 = vxpose.xlu0.b32.start [1/16] %v2467, 128
        %2905 = vxpose.xlu0.b32.cont [2/16] %v2473, 128
        %2906 = vxpose.xlu0.b32.cont [3/16] 0.0, 128
        %2907 = vxpose.xlu0.b32.cont [4/16] 0.0, 128
        %2908 = vxpose.xlu0.b32.cont [5/16] 0.0, 128
        %2909 = vxpose.xlu0.b32.cont [6/16] 0.0, 128
        %2910 = vxpose.xlu0.b32.cont [7/16] 0.0, 128
        %2911 = vxpose.xlu0.b32.cont [8/16] 0.0, 128
        %2912 = vxpose.xlu0.b32.cont [9/16] 0.0, 128
        %2913 = vxpose.xlu0.b32.cont [10/16] 0.0, 128
        %2914 = vxpose.xlu0.b32.cont [11/16] 0.0, 128
        %2915 = vxpose.xlu0.b32.cont [12/16] 0.0, 128
        %2916 = vxpose.xlu0.b32.cont [13/16] 0.0, 128
        %2917 = vxpose.xlu0.b32.cont [14/16] 0.0, 128
        %2918 = vxpose.xlu0.b32.cont [15/16] 0.0, 128
        %2919 = vxpose.xlu0.b32.end [16/16] 0.0, 128
        %v2920 = vpop.trf.xlu0
        %v2921 = vpop.trf.xlu0
        %v2922 = vpop.trf.xlu0
        %v2923 = vpop.trf.xlu0
        %v2924 = vpop.trf.xlu0
        %v2925 = vpop.trf.xlu0
        %v2926 = vpop.trf.xlu0
        %v2927 = vpop.trf.xlu0
        %v2928 = vpop.trf.xlu0
        %v2929 = vpop.trf.xlu0
        %v2930 = vpop.trf.xlu0
        %v2931 = vpop.trf.xlu0
        %v2932 = vpop.trf.xlu0
        %v2933 = vpop.trf.xlu0
        %v2934 = vpop.trf.xlu0
        %v2935 = vpop.trf.xlu0
        %2936 = vxpose.xlu0.b32.start [1/16] %v2479, 128
        %2937 = vxpose.xlu0.b32.cont [2/16] %v2485, 128
        %2938 = vxpose.xlu0.b32.cont [3/16] 0.0, 128
        %2939 = vxpose.xlu0.b32.cont [4/16] 0.0, 128
        %2940 = vxpose.xlu0.b32.cont [5/16] 0.0, 128
        %2941 = vxpose.xlu0.b32.cont [6/16] 0.0, 128
        %2942 = vxpose.xlu0.b32.cont [7/16] 0.0, 128
        %2943 = vxpose.xlu0.b32.cont [8/16] 0.0, 128
        %2944 = vxpose.xlu0.b32.cont [9/16] 0.0, 128
        %2945 = vxpose.xlu0.b32.cont [10/16] 0.0, 128
        %2946 = vxpose.xlu0.b32.cont [11/16] 0.0, 128
        %2947 = vxpose.xlu0.b32.cont [12/16] 0.0, 128
        %2948 = vxpose.xlu0.b32.cont [13/16] 0.0, 128
        %2949 = vxpose.xlu0.b32.cont [14/16] 0.0, 128
        %2950 = vxpose.xlu0.b32.cont [15/16] 0.0, 128
        %2951 = vxpose.xlu0.b32.end [16/16] 0.0, 128
        %v2952 = vpop.trf.xlu0
        %v2953 = vpop.trf.xlu0
        %v2954 = vpop.trf.xlu0
        %v2955 = vpop.trf.xlu0
        %v2956 = vpop.trf.xlu0
        %v2957 = vpop.trf.xlu0
        %v2958 = vpop.trf.xlu0
        %v2959 = vpop.trf.xlu0
        %v2960 = vpop.trf.xlu0
        %v2961 = vpop.trf.xlu0
        %v2962 = vpop.trf.xlu0
        %v2963 = vpop.trf.xlu0
        %v2964 = vpop.trf.xlu0
        %v2965 = vpop.trf.xlu0
        %v2966 = vpop.trf.xlu0
        %v2967 = vpop.trf.xlu0
        %2968 = vxpose.xlu0.b32.start [1/16] %v2491, 128
        %2969 = vxpose.xlu0.b32.cont [2/16] %v2497, 128
        %2970 = vxpose.xlu0.b32.cont [3/16] 0.0, 128
        %2971 = vxpose.xlu0.b32.cont [4/16] 0.0, 128
        %2972 = vxpose.xlu0.b32.cont [5/16] 0.0, 128
        %2973 = vxpose.xlu0.b32.cont [6/16] 0.0, 128
        %2974 = vxpose.xlu0.b32.cont [7/16] 0.0, 128
        %2975 = vxpose.xlu0.b32.cont [8/16] 0.0, 128
        %2976 = vxpose.xlu0.b32.cont [9/16] 0.0, 128
        %2977 = vxpose.xlu0.b32.cont [10/16] 0.0, 128
        %2978 = vxpose.xlu0.b32.cont [11/16] 0.0, 128
        %2979 = vxpose.xlu0.b32.cont [12/16] 0.0, 128
        %2980 = vxpose.xlu0.b32.cont [13/16] 0.0, 128
        %2981 = vxpose.xlu0.b32.cont [14/16] 0.0, 128
        %2982 = vxpose.xlu0.b32.cont [15/16] 0.0, 128
        %2983 = vxpose.xlu0.b32.end [16/16] 0.0, 128
        %v2984 = vpop.trf.xlu0
        %v2985 = vpop.trf.xlu0
        %v2986 = vpop.trf.xlu0
        %v2987 = vpop.trf.xlu0
        %v2988 = vpop.trf.xlu0
        %v2989 = vpop.trf.xlu0
        %v2990 = vpop.trf.xlu0
        %v2991 = vpop.trf.xlu0
        %v2992 = vpop.trf.xlu0
        %v2993 = vpop.trf.xlu0
        %v2994 = vpop.trf.xlu0
        %v2995 = vpop.trf.xlu0
        %v2996 = vpop.trf.xlu0
        %v2997 = vpop.trf.xlu0
        %v2998 = vpop.trf.xlu0
        %v2999 = vpop.trf.xlu0
        %3000 = vxpose.xlu0.b32.start [1/16] %v2503, 128
        %3001 = vxpose.xlu0.b32.cont [2/16] %v2509, 128
        %3002 = vxpose.xlu0.b32.cont [3/16] 0.0, 128
        %3003 = vxpose.xlu0.b32.cont [4/16] 0.0, 128
        %3004 = vxpose.xlu0.b32.cont [5/16] 0.0, 128
        %3005 = vxpose.xlu0.b32.cont [6/16] 0.0, 128
        %3006 = vxpose.xlu0.b32.cont [7/16] 0.0, 128
        %3007 = vxpose.xlu0.b32.cont [8/16] 0.0, 128
        %3008 = vxpose.xlu0.b32.cont [9/16] 0.0, 128
        %3009 = vxpose.xlu0.b32.cont [10/16] 0.0, 128
        %3010 = vxpose.xlu0.b32.cont [11/16] 0.0, 128
        %3011 = vxpose.xlu0.b32.cont [12/16] 0.0, 128
        %3012 = vxpose.xlu0.b32.cont [13/16] 0.0, 128
        %3013 = vxpose.xlu0.b32.cont [14/16] 0.0, 128
        %3014 = vxpose.xlu0.b32.cont [15/16] 0.0, 128
        %3015 = vxpose.xlu0.b32.end [16/16] 0.0, 128
        %v3016 = vpop.trf.xlu0
        %v3017 = vpop.trf.xlu0
        %v3018 = vpop.trf.xlu0
        %v3019 = vpop.trf.xlu0
        %v3020 = vpop.trf.xlu0
        %v3021 = vpop.trf.xlu0
        %v3022 = vpop.trf.xlu0
        %v3023 = vpop.trf.xlu0
        %v3024 = vpop.trf.xlu0
        %v3025 = vpop.trf.xlu0
        %v3026 = vpop.trf.xlu0
        %v3027 = vpop.trf.xlu0
        %v3028 = vpop.trf.xlu0
        %v3029 = vpop.trf.xlu0
        %v3030 = vpop.trf.xlu0
        %v3031 = vpop.trf.xlu0
        %3032 = vxpose.xlu0.b32.start [1/16] %v2515, 128
        %3033 = vxpose.xlu0.b32.cont [2/16] %v2521, 128
        %3034 = vxpose.xlu0.b32.cont [3/16] 0.0, 128
        %3035 = vxpose.xlu0.b32.cont [4/16] 0.0, 128
        %3036 = vxpose.xlu0.b32.cont [5/16] 0.0, 128
        %3037 = vxpose.xlu0.b32.cont [6/16] 0.0, 128
        %3038 = vxpose.xlu0.b32.cont [7/16] 0.0, 128
        %3039 = vxpose.xlu0.b32.cont [8/16] 0.0, 128
        %3040 = vxpose.xlu0.b32.cont [9/16] 0.0, 128
        %3041 = vxpose.xlu0.b32.cont [10/16] 0.0, 128
        %3042 = vxpose.xlu0.b32.cont [11/16] 0.0, 128
        %3043 = vxpose.xlu0.b32.cont [12/16] 0.0, 128
        %3044 = vxpose.xlu0.b32.cont [13/16] 0.0, 128
        %3045 = vxpose.xlu0.b32.cont [14/16] 0.0, 128
        %3046 = vxpose.xlu0.b32.cont [15/16] 0.0, 128
        %3047 = vxpose.xlu0.b32.end [16/16] 0.0, 128
        %v3048 = vpop.trf.xlu0
        %v3049 = vpop.trf.xlu0
        %v3050 = vpop.trf.xlu0
        %v3051 = vpop.trf.xlu0
        %v3052 = vpop.trf.xlu0
        %v3053 = vpop.trf.xlu0
        %v3054 = vpop.trf.xlu0
        %v3055 = vpop.trf.xlu0
        %v3056 = vpop.trf.xlu0
        %v3057 = vpop.trf.xlu0
        %v3058 = vpop.trf.xlu0
        %v3059 = vpop.trf.xlu0
        %v3060 = vpop.trf.xlu0
        %v3061 = vpop.trf.xlu0
        %v3062 = vpop.trf.xlu0
        %v3063 = vpop.trf.xlu0
        %3064 = vxpose.xlu0.b32.start [1/16] %v2527, 128
        %3065 = vxpose.xlu0.b32.cont [2/16] %v2533, 128
        %3066 = vxpose.xlu0.b32.cont [3/16] 0.0, 128
        %3067 = vxpose.xlu0.b32.cont [4/16] 0.0, 128
        %3068 = vxpose.xlu0.b32.cont [5/16] 0.0, 128
        %3069 = vxpose.xlu0.b32.cont [6/16] 0.0, 128
        %3070 = vxpose.xlu0.b32.cont [7/16] 0.0, 128
        %3071 = vxpose.xlu0.b32.cont [8/16] 0.0, 128
        %3072 = vxpose.xlu0.b32.cont [9/16] 0.0, 128
        %3073 = vxpose.xlu0.b32.cont [10/16] 0.0, 128
        %3074 = vxpose.xlu0.b32.cont [11/16] 0.0, 128
        %3075 = vxpose.xlu0.b32.cont [12/16] 0.0, 128
        %3076 = vxpose.xlu0.b32.cont [13/16] 0.0, 128
        %3077 = vxpose.xlu0.b32.cont [14/16] 0.0, 128
        %3078 = vxpose.xlu0.b32.cont [15/16] 0.0, 128
        %3079 = vxpose.xlu0.b32.end [16/16] 0.0, 128
        %v3080 = vpop.trf.xlu0
        %v3081 = vpop.trf.xlu0
        %v3082 = vpop.trf.xlu0
        %v3083 = vpop.trf.xlu0
        %v3084 = vpop.trf.xlu0
        %v3085 = vpop.trf.xlu0
        %v3086 = vpop.trf.xlu0
        %v3087 = vpop.trf.xlu0
        %v3088 = vpop.trf.xlu0
        %v3089 = vpop.trf.xlu0
        %v3090 = vpop.trf.xlu0
        %v3091 = vpop.trf.xlu0
        %v3092 = vpop.trf.xlu0
        %v3093 = vpop.trf.xlu0
        %v3094 = vpop.trf.xlu0
        %v3095 = vpop.trf.xlu0
        %3096 = vxpose.xlu0.b32.start [1/16] %v2539, 128
        %3097 = vxpose.xlu0.b32.cont [2/16] %v2545, 128
        %3098 = vxpose.xlu0.b32.cont [3/16] 0.0, 128
        %3099 = vxpose.xlu0.b32.cont [4/16] 0.0, 128
        %3100 = vxpose.xlu0.b32.cont [5/16] 0.0, 128
        %3101 = vxpose.xlu0.b32.cont [6/16] 0.0, 128
        %3102 = vxpose.xlu0.b32.cont [7/16] 0.0, 128
        %3103 = vxpose.xlu0.b32.cont [8/16] 0.0, 128
        %3104 = vxpose.xlu0.b32.cont [9/16] 0.0, 128
        %3105 = vxpose.xlu0.b32.cont [10/16] 0.0, 128
        %3106 = vxpose.xlu0.b32.cont [11/16] 0.0, 128
        %3107 = vxpose.xlu0.b32.cont [12/16] 0.0, 128
        %3108 = vxpose.xlu0.b32.cont [13/16] 0.0, 128
        %3109 = vxpose.xlu0.b32.cont [14/16] 0.0, 128
        %3110 = vxpose.xlu0.b32.cont [15/16] 0.0, 128
        %3111 = vxpose.xlu0.b32.end [16/16] 0.0, 128
        %v3112 = vpop.trf.xlu0
        %v3113 = vpop.trf.xlu0
        %v3114 = vpop.trf.xlu0
        %v3115 = vpop.trf.xlu0
        %v3116 = vpop.trf.xlu0
        %v3117 = vpop.trf.xlu0
        %v3118 = vpop.trf.xlu0
        %v3119 = vpop.trf.xlu0
        %v3120 = vpop.trf.xlu0
        %v3121 = vpop.trf.xlu0
        %v3122 = vpop.trf.xlu0
        %v3123 = vpop.trf.xlu0
        %v3124 = vpop.trf.xlu0
        %v3125 = vpop.trf.xlu0
        %v3126 = vpop.trf.xlu0
        %v3127 = vpop.trf.xlu0
        %3128 = vxpose.xlu0.b32.start [1/16] %v2551, 128
        %3129 = vxpose.xlu0.b32.cont [2/16] %v2557, 128
        %3130 = vxpose.xlu0.b32.cont [3/16] 0.0, 128
        %3131 = vxpose.xlu0.b32.cont [4/16] 0.0, 128
        %3132 = vxpose.xlu0.b32.cont [5/16] 0.0, 128
        %3133 = vxpose.xlu0.b32.cont [6/16] 0.0, 128
        %3134 = vxpose.xlu0.b32.cont [7/16] 0.0, 128
        %3135 = vxpose.xlu0.b32.cont [8/16] 0.0, 128
        %3136 = vxpose.xlu0.b32.cont [9/16] 0.0, 128
        %3137 = vxpose.xlu0.b32.cont [10/16] 0.0, 128
        %3138 = vxpose.xlu0.b32.cont [11/16] 0.0, 128
        %3139 = vxpose.xlu0.b32.cont [12/16] 0.0, 128
        %3140 = vxpose.xlu0.b32.cont [13/16] 0.0, 128
        %3141 = vxpose.xlu0.b32.cont [14/16] 0.0, 128
        %3142 = vxpose.xlu0.b32.cont [15/16] 0.0, 128
        %3143 = vxpose.xlu0.b32.end [16/16] 0.0, 128
        %v3144 = vpop.trf.xlu0
        %v3145 = vpop.trf.xlu0
        %v3146 = vpop.trf.xlu0
        %v3147 = vpop.trf.xlu0
        %v3148 = vpop.trf.xlu0
        %v3149 = vpop.trf.xlu0
        %v3150 = vpop.trf.xlu0
        %v3151 = vpop.trf.xlu0
        %v3152 = vpop.trf.xlu0
        %v3153 = vpop.trf.xlu0
        %v3154 = vpop.trf.xlu0
        %v3155 = vpop.trf.xlu0
        %v3156 = vpop.trf.xlu0
        %v3157 = vpop.trf.xlu0
        %v3158 = vpop.trf.xlu0
        %v3159 = vpop.trf.xlu0
        %3160 = vxpose.xlu0.b32.start [1/16] %v2563, 128
        %3161 = vxpose.xlu0.b32.cont [2/16] %v2569, 128
        %3162 = vxpose.xlu0.b32.cont [3/16] 0.0, 128
        %3163 = vxpose.xlu0.b32.cont [4/16] 0.0, 128
        %3164 = vxpose.xlu0.b32.cont [5/16] 0.0, 128
        %3165 = vxpose.xlu0.b32.cont [6/16] 0.0, 128
        %3166 = vxpose.xlu0.b32.cont [7/16] 0.0, 128
        %3167 = vxpose.xlu0.b32.cont [8/16] 0.0, 128
        %3168 = vxpose.xlu0.b32.cont [9/16] 0.0, 128
        %3169 = vxpose.xlu0.b32.cont [10/16] 0.0, 128
        %3170 = vxpose.xlu0.b32.cont [11/16] 0.0, 128
        %3171 = vxpose.xlu0.b32.cont [12/16] 0.0, 128
        %3172 = vxpose.xlu0.b32.cont [13/16] 0.0, 128
        %3173 = vxpose.xlu0.b32.cont [14/16] 0.0, 128
        %3174 = vxpose.xlu0.b32.cont [15/16] 0.0, 128
        %3175 = vxpose.xlu0.b32.end [16/16] 0.0, 128
        %v3176 = vpop.trf.xlu0
        %v3177 = vpop.trf.xlu0
        %v3178 = vpop.trf.xlu0
        %v3179 = vpop.trf.xlu0
        %v3180 = vpop.trf.xlu0
        %v3181 = vpop.trf.xlu0
        %v3182 = vpop.trf.xlu0
        %v3183 = vpop.trf.xlu0
        %v3184 = vpop.trf.xlu0
        %v3185 = vpop.trf.xlu0
        %v3186 = vpop.trf.xlu0
        %v3187 = vpop.trf.xlu0
        %v3188 = vpop.trf.xlu0
        %v3189 = vpop.trf.xlu0
        %v3190 = vpop.trf.xlu0
        %v3191 = vpop.trf.xlu0
        %3192 = vxpose.xlu0.b32.start [1/16] %v2575, 128
        %3193 = vxpose.xlu0.b32.cont [2/16] %v2581, 128
        %3194 = vxpose.xlu0.b32.cont [3/16] 0.0, 128
        %3195 = vxpose.xlu0.b32.cont [4/16] 0.0, 128
        %3196 = vxpose.xlu0.b32.cont [5/16] 0.0, 128
        %3197 = vxpose.xlu0.b32.cont [6/16] 0.0, 128
        %3198 = vxpose.xlu0.b32.cont [7/16] 0.0, 128
        %3199 = vxpose.xlu0.b32.cont [8/16] 0.0, 128
        %3200 = vxpose.xlu0.b32.cont [9/16] 0.0, 128
        %3201 = vxpose.xlu0.b32.cont [10/16] 0.0, 128
        %3202 = vxpose.xlu0.b32.cont [11/16] 0.0, 128
        %3203 = vxpose.xlu0.b32.cont [12/16] 0.0, 128
        %3204 = vxpose.xlu0.b32.cont [13/16] 0.0, 128
        %3205 = vxpose.xlu0.b32.cont [14/16] 0.0, 128
        %3206 = vxpose.xlu0.b32.cont [15/16] 0.0, 128
        %3207 = vxpose.xlu0.b32.end [16/16] 0.0, 128
        %v3208 = vpop.trf.xlu0
        %v3209 = vpop.trf.xlu0
        %v3210 = vpop.trf.xlu0
        %v3211 = vpop.trf.xlu0
        %v3212 = vpop.trf.xlu0
        %v3213 = vpop.trf.xlu0
        %v3214 = vpop.trf.xlu0
        %v3215 = vpop.trf.xlu0
        %v3216 = vpop.trf.xlu0
        %v3217 = vpop.trf.xlu0
        %v3218 = vpop.trf.xlu0
        %v3219 = vpop.trf.xlu0
        %v3220 = vpop.trf.xlu0
        %v3221 = vpop.trf.xlu0
        %v3222 = vpop.trf.xlu0
        %v3223 = vpop.trf.xlu0
        %v3224 = vld [vmem:[#allocation5] sm:$0xff]
        %v3225 = vld [vmem:[#allocation5 + $0x8] sm:$0xff]
        %v3227 = vsel %vm327, %v2600, 0
        %v3230 = vsel %vm327, %v2601, 0
        %v3233 = vsel %vm327, %v2632, 0
        %v3236 = vsel %vm327, %v2633, 0
        %v3239 = vsel %vm327, %v2664, 0
        %v3242 = vsel %vm327, %v2665, 0
        %v3245 = vsel %vm327, %v2696, 0
        %v3248 = vsel %vm327, %v2697, 0
        %v3251 = vsel %vm327, %v2728, 0
        %v3254 = vsel %vm327, %v2729, 0
        %v3257 = vsel %vm327, %v2760, 0
        %v3260 = vsel %vm327, %v2761, 0
        %v3263 = vsel %vm327, %v2792, 0
        %v3266 = vsel %vm327, %v2793, 0
        %v3269 = vsel %vm327, %v2824, 0
        %v3272 = vsel %vm327, %v2825, 0
        %v3275 = vsel %vm327, %v2856, 0
        %v3278 = vsel %vm327, %v2857, 0
        %v3281 = vsel %vm327, %v2888, 0
        %v3284 = vsel %vm327, %v2889, 0
        %v3287 = vsel %vm327, %v2920, 0
        %v3290 = vsel %vm327, %v2921, 0
        %v3293 = vsel %vm327, %v2952, 0
        %v3296 = vsel %vm327, %v2953, 0
        %v3299 = vsel %vm327, %v2984, 0
        %v3302 = vsel %vm327, %v2985, 0
        %v3305 = vsel %vm327, %v3016, 0
        %v3308 = vsel %vm327, %v3017, 0
        %v3311 = vsel %vm327, %v3048, 0
        %v3314 = vsel %vm327, %v3049, 0
        %v3317 = vsel %vm327, %v3080, 0
        %v3320 = vsel %vm327, %v3081, 0
        %v3323 = vsel %vm327, %v3112, 0
        %v3326 = vsel %vm327, %v3113, 0
        %v3329 = vsel %vm327, %v3144, 0
        %v3332 = vsel %vm327, %v3145, 0
        %v3335 = vsel %vm327, %v3176, 0
        %v3338 = vsel %vm327, %v3177, 0
        %v3341 = vsel %vm327, %v3208, 0
        %v3344 = vsel %vm327, %v3209, 0
        %3346 = vmatprep.subr.mxu0 0.0
        %v3347 = vand.u32 %v3224, 4294901760
        %3348 = vmatpush1.msra.mxu0 %v3347
        %3349 = vmatprep.subr.mxu0 0.0
        %v3350 = vand.u32 %v3225, 4294901760
        %3351 = vmatpush1.msra.mxu0 %v3350
        %3352 = vmatprep.subr.mxu0 0.0
        %3353 = vmatpush1.msra.mxu0 0.0
        %3354 = vmatprep.subr.mxu0 0.0
        %3355 = vmatpush1.msra.mxu0 0.0
        %3356 = vmatprep.subr.mxu0 0.0
        %3357 = vmatpush1.msra.mxu0 0.0
        %3358 = vmatprep.subr.mxu0 0.0
        %3359 = vmatpush1.msra.mxu0 0.0
        %3360 = vmatprep.subr.mxu0 0.0
        %3361 = vmatpush1.msra.mxu0 0.0
        %3362 = vmatprep.subr.mxu0 0.0
        %3363 = vmatpush1.msra.mxu0 0.0
        %3364 = vmatprep.subr.mxu0 0.0
        %3365 = vmatpush1.msra.mxu0 0.0
        %3366 = vmatprep.subr.mxu0 0.0
        %3367 = vmatpush1.msra.mxu0 0.0
        %3368 = vmatprep.subr.mxu0 0.0
        %3369 = vmatpush1.msra.mxu0 0.0
        %3370 = vmatprep.subr.mxu0 0.0
        %3371 = vmatpush1.msra.mxu0 0.0
        %3372 = vmatprep.subr.mxu0 0.0
        %3373 = vmatpush1.msra.mxu0 0.0
        %3374 = vmatprep.subr.mxu0 0.0
        %3375 = vmatpush1.msra.mxu0 0.0
        %3376 = vmatprep.subr.mxu0 0.0
        %3377 = vmatpush1.msra.mxu0 0.0
        %3378 = vmatprep.subr.mxu0 0.0
        %3379 = vmatpush1.msra.mxu0 0.0
        %3380 = vmatprep.subr.mxu0 0.0
        %3381 = vmatpush1.msra.mxu0 0.0
        %3382 = vmatprep.subr.mxu0 0.0
        %3383 = vmatpush1.msra.mxu0 0.0
        %3384 = vmatprep.subr.mxu0 0.0
        %3385 = vmatpush1.msra.mxu0 0.0
        %3386 = vmatprep.subr.mxu0 0.0
        %3387 = vmatpush1.msra.mxu0 0.0
        %3388 = vmatprep.subr.mxu0 0.0
        %3389 = vmatpush1.msra.mxu0 0.0
        %3390 = vmatprep.subr.mxu0 0.0
        %3391 = vmatpush1.msra.mxu0 0.0
        %3392 = vmatprep.subr.mxu0 0.0
        %3393 = vmatpush1.msra.mxu0 0.0
        %3394 = vmatprep.subr.mxu0 0.0
        %3395 = vmatpush1.msra.mxu0 0.0
        %3396 = vmatprep.subr.mxu0 0.0
        %3397 = vmatpush1.msra.mxu0 0.0
        %3398 = vmatprep.subr.mxu0 0.0
        %3399 = vmatpush1.msra.mxu0 0.0
        %3400 = vmatprep.subr.mxu0 0.0
        %3401 = vmatpush1.msra.mxu0 0.0
        %3402 = vmatprep.subr.mxu0 0.0
        %3403 = vmatpush1.msra.mxu0 0.0
        %3404 = vmatprep.subr.mxu0 0.0
        %3405 = vmatpush1.msra.mxu0 0.0
        %3406 = vmatprep.subr.mxu0 0.0
        %3407 = vmatpush1.msra.mxu0 0.0
        %3408 = vmatprep.subr.mxu0 0.0
        %3409 = vmatpush1.msra.mxu0 0.0
        %3410 = vmatprep.subr.mxu0 0.0
        %3411 = vmatpush1.msra.mxu0 0.0
        %3412 = vmatprep.mubr.f32.mxu0 0.0
        %v3413 = vand.u32 %v3227, 4294901760
        %v3414 = vsub.f32 %v3227, %v3413
        %v3415 = vand.u32 %v3414, 4294901760
        %v3416 = vsub.f32 %v3414, %v3415
        %v3417 = vand.u32 %v3416, 4294901760
        %3418 = vmatmul.mubr.f32.gmra.mrb[0].mxu0 %v3417
        %v3419 = vpop.f32.mrb[0].mxu0
        %v3420 = vadd.f32 0.0, %v3419
        %v3421 = vpop.f32.mrb[0].mxu0
        %3422 = vmatprep.mubr.f32.mxu0 0.0
        %v3423 = vand.u32 %v3230, 4294901760
        %v3424 = vsub.f32 %v3230, %v3423
        %v3425 = vand.u32 %v3424, 4294901760
        %v3426 = vsub.f32 %v3424, %v3425
        %v3427 = vand.u32 %v3426, 4294901760
        %3428 = vmatmul.mubr.f32.gmra.mrb[0].mxu0 %v3427
        %v3429 = vpop.f32.mrb[0].mxu0
        %v3430 = vadd.f32 0.0, %v3429
        %v3431 = vpop.f32.mrb[0].mxu0
        %3432 = vmatprep.mubr.f32.mxu0 0.0
        %v3433 = vand.u32 %v3233, 4294901760
        %v3434 = vsub.f32 %v3233, %v3433
        %v3435 = vand.u32 %v3434, 4294901760
        %v3436 = vsub.f32 %v3434, %v3435
        %v3437 = vand.u32 %v3436, 4294901760
        %3438 = vmatmul.mubr.f32.gmra.mrb[0].mxu0 %v3437
        %v3439 = vpop.f32.mrb[0].mxu0
        %v3440 = vadd.f32 0.0, %v3439
        %v3441 = vpop.f32.mrb[0].mxu0
        %3442 = vmatprep.mubr.f32.mxu0 0.0
        %v3443 = vand.u32 %v3236, 4294901760
        %v3444 = vsub.f32 %v3236, %v3443
        %v3445 = vand.u32 %v3444, 4294901760
        %v3446 = vsub.f32 %v3444, %v3445
        %v3447 = vand.u32 %v3446, 4294901760
        %3448 = vmatmul.mubr.f32.gmra.mrb[0].mxu0 %v3447
        %v3449 = vpop.f32.mrb[0].mxu0
        %v3450 = vadd.f32 0.0, %v3449
        %v3451 = vpop.f32.mrb[0].mxu0
        %3452 = vmatprep.mubr.f32.mxu0 0.0
        %v3453 = vand.u32 %v3239, 4294901760
        %v3454 = vsub.f32 %v3239, %v3453
        %v3455 = vand.u32 %v3454, 4294901760
        %v3456 = vsub.f32 %v3454, %v3455
        %v3457 = vand.u32 %v3456, 4294901760
        %3458 = vmatmul.mubr.f32.gmra.mrb[0].mxu0 %v3457
        %v3459 = vpop.f32.mrb[0].mxu0
        %v3460 = vadd.f32 0.0, %v3459
        %v3461 = vpop.f32.mrb[0].mxu0
        %3462 = vmatprep.mubr.f32.mxu0 0.0
        %v3463 = vand.u32 %v3242, 4294901760
        %v3464 = vsub.f32 %v3242, %v3463
        %v3465 = vand.u32 %v3464, 4294901760
        %v3466 = vsub.f32 %v3464, %v3465
        %v3467 = vand.u32 %v3466, 4294901760
        %3468 = vmatmul.mubr.f32.gmra.mrb[0].mxu0 %v3467
        %v3469 = vpop.f32.mrb[0].mxu0
        %v3470 = vadd.f32 0.0, %v3469
        %v3471 = vpop.f32.mrb[0].mxu0
        %3472 = vmatprep.mubr.f32.mxu0 0.0
        %v3473 = vand.u32 %v3245, 4294901760
        %v3474 = vsub.f32 %v3245, %v3473
        %v3475 = vand.u32 %v3474, 4294901760
        %v3476 = vsub.f32 %v3474, %v3475
        %v3477 = vand.u32 %v3476, 4294901760
        %3478 = vmatmul.mubr.f32.gmra.mrb[0].mxu0 %v3477
        %v3479 = vpop.f32.mrb[0].mxu0
        %v3480 = vadd.f32 0.0, %v3479
        %v3481 = vpop.f32.mrb[0].mxu0
        %3482 = vmatprep.mubr.f32.mxu0 0.0
        %v3483 = vand.u32 %v3248, 4294901760
        %v3484 = vsub.f32 %v3248, %v3483
        %v3485 = vand.u32 %v3484, 4294901760
        %v3486 = vsub.f32 %v3484, %v3485
        %v3487 = vand.u32 %v3486, 4294901760
        %3488 = vmatmul.mubr.f32.gmra.mrb[0].mxu0 %v3487
        %v3489 = vpop.f32.mrb[0].mxu0
        %v3490 = vadd.f32 0.0, %v3489
        %v3491 = vpop.f32.mrb[0].mxu0
        %3492 = vmatprep.mubr.f32.mxu0 0.0
        %v3493 = vand.u32 %v3251, 4294901760
        %v3494 = vsub.f32 %v3251, %v3493
        %v3495 = vand.u32 %v3494, 4294901760
        %v3496 = vsub.f32 %v3494, %v3495
        %v3497 = vand.u32 %v3496, 4294901760
        %3498 = vmatmul.mubr.f32.gmra.mrb[0].mxu0 %v3497
        %v3499 = vpop.f32.mrb[0].mxu0
        %v3500 = vadd.f32 0.0, %v3499
        %v3501 = vpop.f32.mrb[0].mxu0
        %3502 = vmatprep.mubr.f32.mxu0 0.0
        %v3503 = vand.u32 %v3254, 4294901760
        %v3504 = vsub.f32 %v3254, %v3503
        %v3505 = vand.u32 %v3504, 4294901760
        %v3506 = vsub.f32 %v3504, %v3505
        %v3507 = vand.u32 %v3506, 4294901760
        %3508 = vmatmul.mubr.f32.gmra.mrb[0].mxu0 %v3507
        %v3509 = vpop.f32.mrb[0].mxu0
        %v3510 = vadd.f32 0.0, %v3509
        %v3511 = vpop.f32.mrb[0].mxu0
        %3512 = vmatprep.mubr.f32.mxu0 0.0
        %v3513 = vand.u32 %v3257, 4294901760
        %v3514 = vsub.f32 %v3257, %v3513
        %v3515 = vand.u32 %v3514, 4294901760
        %v3516 = vsub.f32 %v3514, %v3515
        %v3517 = vand.u32 %v3516, 4294901760
        %3518 = vmatmul.mubr.f32.gmra.mrb[0].mxu0 %v3517
        %v3519 = vpop.f32.mrb[0].mxu0
        %v3520 = vadd.f32 0.0, %v3519
        %v3521 = vpop.f32.mrb[0].mxu0
        %3522 = vmatprep.mubr.f32.mxu0 0.0
        %v3523 = vand.u32 %v3260, 4294901760
        %v3524 = vsub.f32 %v3260, %v3523
        %v3525 = vand.u32 %v3524, 4294901760
        %v3526 = vsub.f32 %v3524, %v3525
        %v3527 = vand.u32 %v3526, 4294901760
        %3528 = vmatmul.mubr.f32.gmra.mrb[0].mxu0 %v3527
        %v3529 = vpop.f32.mrb[0].mxu0
        %v3530 = vadd.f32 0.0, %v3529
        %v3531 = vpop.f32.mrb[0].mxu0
        %3532 = vmatprep.mubr.f32.mxu0 0.0
        %v3533 = vand.u32 %v3263, 4294901760
        %v3534 = vsub.f32 %v3263, %v3533
        %v3535 = vand.u32 %v3534, 4294901760
        %v3536 = vsub.f32 %v3534, %v3535
        %v3537 = vand.u32 %v3536, 4294901760
        %3538 = vmatmul.mubr.f32.gmra.mrb[0].mxu0 %v3537
        %v3539 = vpop.f32.mrb[0].mxu0
        %v3540 = vadd.f32 0.0, %v3539
        %v3541 = vpop.f32.mrb[0].mxu0
        %3542 = vmatprep.mubr.f32.mxu0 0.0
        %v3543 = vand.u32 %v3266, 4294901760
        %v3544 = vsub.f32 %v3266, %v3543
        %v3545 = vand.u32 %v3544, 4294901760
        %v3546 = vsub.f32 %v3544, %v3545
        %v3547 = vand.u32 %v3546, 4294901760
        %3548 = vmatmul.mubr.f32.gmra.mrb[0].mxu0 %v3547
        %v3549 = vpop.f32.mrb[0].mxu0
        %v3550 = vadd.f32 0.0, %v3549
        %v3551 = vpop.f32.mrb[0].mxu0
        %3552 = vmatprep.mubr.f32.mxu0 0.0
        %v3553 = vand.u32 %v3269, 4294901760
        %v3554 = vsub.f32 %v3269, %v3553
        %v3555 = vand.u32 %v3554, 4294901760
        %v3556 = vsub.f32 %v3554, %v3555
        %v3557 = vand.u32 %v3556, 4294901760
        %3558 = vmatmul.mubr.f32.gmra.mrb[0].mxu0 %v3557
        %v3559 = vpop.f32.mrb[0].mxu0
        %v3560 = vadd.f32 0.0, %v3559
        %v3561 = vpop.f32.mrb[0].mxu0
        %3562 = vmatprep.mubr.f32.mxu0 0.0
        %v3563 = vand.u32 %v3272, 4294901760
        %v3564 = vsub.f32 %v3272, %v3563
        %v3565 = vand.u32 %v3564, 4294901760
        %v3566 = vsub.f32 %v3564, %v3565
        %v3567 = vand.u32 %v3566, 4294901760
        %3568 = vmatmul.mubr.f32.gmra.mrb[0].mxu0 %v3567
        %v3569 = vpop.f32.mrb[0].mxu0
        %v3570 = vadd.f32 0.0, %v3569
        %v3571 = vpop.f32.mrb[0].mxu0
        %3572 = vmatprep.mubr.f32.mxu0 0.0
        %v3573 = vand.u32 %v3275, 4294901760
        %v3574 = vsub.f32 %v3275, %v3573
        %v3575 = vand.u32 %v3574, 4294901760
        %v3576 = vsub.f32 %v3574, %v3575
        %v3577 = vand.u32 %v3576, 4294901760
        %3578 = vmatmul.mubr.f32.gmra.mrb[0].mxu0 %v3577
        %v3579 = vpop.f32.mrb[0].mxu0
        %v3580 = vadd.f32 0.0, %v3579
        %v3581 = vpop.f32.mrb[0].mxu0
        %3582 = vmatprep.mubr.f32.mxu0 0.0
        %v3583 = vand.u32 %v3278, 4294901760
        %v3584 = vsub.f32 %v3278, %v3583
        %v3585 = vand.u32 %v3584, 4294901760
        %v3586 = vsub.f32 %v3584, %v3585
        %v3587 = vand.u32 %v3586, 4294901760
        %3588 = vmatmul.mubr.f32.gmra.mrb[0].mxu0 %v3587
        %v3589 = vpop.f32.mrb[0].mxu0
        %v3590 = vadd.f32 0.0, %v3589
        %v3591 = vpop.f32.mrb[0].mxu0
        %3592 = vmatprep.mubr.f32.mxu0 0.0
        %v3593 = vand.u32 %v3281, 4294901760
        %v3594 = vsub.f32 %v3281, %v3593
        %v3595 = vand.u32 %v3594, 4294901760
        %v3596 = vsub.f32 %v3594, %v3595
        %v3597 = vand.u32 %v3596, 4294901760
        %3598 = vmatmul.mubr.f32.gmra.mrb[0].mxu0 %v3597
        %v3599 = vpop.f32.mrb[0].mxu0
        %v3600 = vadd.f32 0.0, %v3599
        %v3601 = vpop.f32.mrb[0].mxu0
        %3602 = vmatprep.mubr.f32.mxu0 0.0
        %v3603 = vand.u32 %v3284, 4294901760
        %v3604 = vsub.f32 %v3284, %v3603
        %v3605 = vand.u32 %v3604, 4294901760
        %v3606 = vsub.f32 %v3604, %v3605
        %v3607 = vand.u32 %v3606, 4294901760
        %3608 = vmatmul.mubr.f32.gmra.mrb[0].mxu0 %v3607
        %v3609 = vpop.f32.mrb[0].mxu0
        %v3610 = vadd.f32 0.0, %v3609
        %v3611 = vpop.f32.mrb[0].mxu0
        %3612 = vmatprep.mubr.f32.mxu0 0.0
        %v3613 = vand.u32 %v3287, 4294901760
        %v3614 = vsub.f32 %v3287, %v3613
        %v3615 = vand.u32 %v3614, 4294901760
        %v3616 = vsub.f32 %v3614, %v3615
        %v3617 = vand.u32 %v3616, 4294901760
        %3618 = vmatmul.mubr.f32.gmra.mrb[0].mxu0 %v3617
        %v3619 = vpop.f32.mrb[0].mxu0
        %v3620 = vadd.f32 0.0, %v3619
        %v3621 = vpop.f32.mrb[0].mxu0
        %3622 = vmatprep.mubr.f32.mxu0 0.0
        %v3623 = vand.u32 %v3290, 4294901760
        %v3624 = vsub.f32 %v3290, %v3623
        %v3625 = vand.u32 %v3624, 4294901760
        %v3626 = vsub.f32 %v3624, %v3625
        %v3627 = vand.u32 %v3626, 4294901760
        %3628 = vmatmul.mubr.f32.gmra.mrb[0].mxu0 %v3627
        %v3629 = vpop.f32.mrb[0].mxu0
        %v3630 = vadd.f32 0.0, %v3629
        %v3631 = vpop.f32.mrb[0].mxu0
        %3632 = vmatprep.mubr.f32.mxu0 0.0
        %v3633 = vand.u32 %v3293, 4294901760
        %v3634 = vsub.f32 %v3293, %v3633
        %v3635 = vand.u32 %v3634, 4294901760
        %v3636 = vsub.f32 %v3634, %v3635
        %v3637 = vand.u32 %v3636, 4294901760
        %3638 = vmatmul.mubr.f32.gmra.mrb[0].mxu0 %v3637
        %v3639 = vpop.f32.mrb[0].mxu0
        %v3640 = vadd.f32 0.0, %v3639
        %v3641 = vpop.f32.mrb[0].mxu0
        %3642 = vmatprep.mubr.f32.mxu0 0.0
        %v3643 = vand.u32 %v3296, 4294901760
        %v3644 = vsub.f32 %v3296, %v3643
        %v3645 = vand.u32 %v3644, 4294901760
        %v3646 = vsub.f32 %v3644, %v3645
        %v3647 = vand.u32 %v3646, 4294901760
        %3648 = vmatmul.mubr.f32.gmra.mrb[0].mxu0 %v3647
        %v3649 = vpop.f32.mrb[0].mxu0
        %v3650 = vadd.f32 0.0, %v3649
        %v3651 = vpop.f32.mrb[0].mxu0
        %3652 = vmatprep.mubr.f32.mxu0 0.0
        %v3653 = vand.u32 %v3299, 4294901760
        %v3654 = vsub.f32 %v3299, %v3653
        %v3655 = vand.u32 %v3654, 4294901760
        %v3656 = vsub.f32 %v3654, %v3655
        %v3657 = vand.u32 %v3656, 4294901760
        %3658 = vmatmul.mubr.f32.gmra.mrb[0].mxu0 %v3657
        %v3659 = vpop.f32.mrb[0].mxu0
        %v3660 = vadd.f32 0.0, %v3659
        %v3661 = vpop.f32.mrb[0].mxu0
        %3662 = vmatprep.mubr.f32.mxu0 0.0
        %v3663 = vand.u32 %v3302, 4294901760
        %v3664 = vsub.f32 %v3302, %v3663
        %v3665 = vand.u32 %v3664, 4294901760
        %v3666 = vsub.f32 %v3664, %v3665
        %v3667 = vand.u32 %v3666, 4294901760
        %3668 = vmatmul.mubr.f32.gmra.mrb[0].mxu0 %v3667
        %v3669 = vpop.f32.mrb[0].mxu0
        %v3670 = vadd.f32 0.0, %v3669
        %v3671 = vpop.f32.mrb[0].mxu0
        %3672 = vmatprep.mubr.f32.mxu0 0.0
        %v3673 = vand.u32 %v3305, 4294901760
        %v3674 = vsub.f32 %v3305, %v3673
        %v3675 = vand.u32 %v3674, 4294901760
        %v3676 = vsub.f32 %v3674, %v3675
        %v3677 = vand.u32 %v3676, 4294901760
        %3678 = vmatmul.mubr.f32.gmra.mrb[0].mxu0 %v3677
        %v3679 = vpop.f32.mrb[0].mxu0
        %v3680 = vadd.f32 0.0, %v3679
        %v3681 = vpop.f32.mrb[0].mxu0
        %3682 = vmatprep.mubr.f32.mxu0 0.0
        %v3683 = vand.u32 %v3308, 4294901760
        %v3684 = vsub.f32 %v3308, %v3683
        %v3685 = vand.u32 %v3684, 4294901760
        %v3686 = vsub.f32 %v3684, %v3685
        %v3687 = vand.u32 %v3686, 4294901760
        %3688 = vmatmul.mubr.f32.gmra.mrb[0].mxu0 %v3687
        %v3689 = vpop.f32.mrb[0].mxu0
        %v3690 = vadd.f32 0.0, %v3689
        %v3691 = vpop.f32.mrb[0].mxu0
        %3692 = vmatprep.mubr.f32.mxu0 0.0
        %v3693 = vand.u32 %v3311, 4294901760
        %v3694 = vsub.f32 %v3311, %v3693
        %v3695 = vand.u32 %v3694, 4294901760
        %v3696 = vsub.f32 %v3694, %v3695
        %v3697 = vand.u32 %v3696, 4294901760
        %3698 = vmatmul.mubr.f32.gmra.mrb[0].mxu0 %v3697
        %v3699 = vpop.f32.mrb[0].mxu0
        %v3700 = vadd.f32 0.0, %v3699
        %v3701 = vpop.f32.mrb[0].mxu0
        %3702 = vmatprep.mubr.f32.mxu0 0.0
        %v3703 = vand.u32 %v3314, 4294901760
        %v3704 = vsub.f32 %v3314, %v3703
        %v3705 = vand.u32 %v3704, 4294901760
        %v3706 = vsub.f32 %v3704, %v3705
        %v3707 = vand.u32 %v3706, 4294901760
        %3708 = vmatmul.mubr.f32.gmra.mrb[0].mxu0 %v3707
        %v3709 = vpop.f32.mrb[0].mxu0
        %v3710 = vadd.f32 0.0, %v3709
        %v3711 = vpop.f32.mrb[0].mxu0
        %3712 = vmatprep.mubr.f32.mxu0 0.0
        %v3713 = vand.u32 %v3317, 4294901760
        %v3714 = vsub.f32 %v3317, %v3713
        %v3715 = vand.u32 %v3714, 4294901760
        %v3716 = vsub.f32 %v3714, %v3715
        %v3717 = vand.u32 %v3716, 4294901760
        %3718 = vmatmul.mubr.f32.gmra.mrb[0].mxu0 %v3717
        %v3719 = vpop.f32.mrb[0].mxu0
        %v3720 = vadd.f32 0.0, %v3719
        %v3721 = vpop.f32.mrb[0].mxu0
        %3722 = vmatprep.mubr.f32.mxu0 0.0
        %v3723 = vand.u32 %v3320, 4294901760
        %v3724 = vsub.f32 %v3320, %v3723
        %v3725 = vand.u32 %v3724, 4294901760
        %v3726 = vsub.f32 %v3724, %v3725
        %v3727 = vand.u32 %v3726, 4294901760
        %3728 = vmatmul.mubr.f32.gmra.mrb[0].mxu0 %v3727
        %v3729 = vpop.f32.mrb[0].mxu0
        %v3730 = vadd.f32 0.0, %v3729
        %v3731 = vpop.f32.mrb[0].mxu0
        %3732 = vmatprep.mubr.f32.mxu0 0.0
        %v3733 = vand.u32 %v3323, 4294901760
        %v3734 = vsub.f32 %v3323, %v3733
        %v3735 = vand.u32 %v3734, 4294901760
        %v3736 = vsub.f32 %v3734, %v3735
        %v3737 = vand.u32 %v3736, 4294901760
        %3738 = vmatmul.mubr.f32.gmra.mrb[0].mxu0 %v3737
        %v3739 = vpop.f32.mrb[0].mxu0
        %v3740 = vadd.f32 0.0, %v3739
        %v3741 = vpop.f32.mrb[0].mxu0
        %3742 = vmatprep.mubr.f32.mxu0 0.0
        %v3743 = vand.u32 %v3326, 4294901760
        %v3744 = vsub.f32 %v3326, %v3743
        %v3745 = vand.u32 %v3744, 4294901760
        %v3746 = vsub.f32 %v3744, %v3745
        %v3747 = vand.u32 %v3746, 4294901760
        %3748 = vmatmul.mubr.f32.gmra.mrb[0].mxu0 %v3747
        %v3749 = vpop.f32.mrb[0].mxu0
        %v3750 = vadd.f32 0.0, %v3749
        %v3751 = vpop.f32.mrb[0].mxu0
        %3752 = vmatprep.mubr.f32.mxu0 0.0
        %v3753 = vand.u32 %v3329, 4294901760
        %v3754 = vsub.f32 %v3329, %v3753
        %v3755 = vand.u32 %v3754, 4294901760
        %v3756 = vsub.f32 %v3754, %v3755
        %v3757 = vand.u32 %v3756, 4294901760
        %3758 = vmatmul.mubr.f32.gmra.mrb[0].mxu0 %v3757
        %v3759 = vpop.f32.mrb[0].mxu0
        %v3760 = vadd.f32 0.0, %v3759
        %v3761 = vpop.f32.mrb[0].mxu0
        %3762 = vmatprep.mubr.f32.mxu0 0.0
        %v3763 = vand.u32 %v3332, 4294901760
        %v3764 = vsub.f32 %v3332, %v3763
        %v3765 = vand.u32 %v3764, 4294901760
        %v3766 = vsub.f32 %v3764, %v3765
        %v3767 = vand.u32 %v3766, 4294901760
        %3768 = vmatmul.mubr.f32.gmra.mrb[0].mxu0 %v3767
        %v3769 = vpop.f32.mrb[0].mxu0
        %v3770 = vadd.f32 0.0, %v3769
        %v3771 = vpop.f32.mrb[0].mxu0
        %3772 = vmatprep.mubr.f32.mxu0 0.0
        %v3773 = vand.u32 %v3335, 4294901760
        %v3774 = vsub.f32 %v3335, %v3773
        %v3775 = vand.u32 %v3774, 4294901760
        %v3776 = vsub.f32 %v3774, %v3775
        %v3777 = vand.u32 %v3776, 4294901760
        %3778 = vmatmul.mubr.f32.gmra.mrb[0].mxu0 %v3777
        %v3779 = vpop.f32.mrb[0].mxu0
        %v3780 = vadd.f32 0.0, %v3779
        %v3781 = vpop.f32.mrb[0].mxu0
        %3782 = vmatprep.mubr.f32.mxu0 0.0
        %v3783 = vand.u32 %v3338, 4294901760
        %v3784 = vsub.f32 %v3338, %v3783
        %v3785 = vand.u32 %v3784, 4294901760
        %v3786 = vsub.f32 %v3784, %v3785
        %v3787 = vand.u32 %v3786, 4294901760
        %3788 = vmatmul.mubr.f32.gmra.mrb[0].mxu0 %v3787
        %v3789 = vpop.f32.mrb[0].mxu0
        %v3790 = vadd.f32 0.0, %v3789
        %v3791 = vpop.f32.mrb[0].mxu0
        %3792 = vmatprep.mubr.f32.mxu0 0.0
        %v3793 = vand.u32 %v3341, 4294901760
        %v3794 = vsub.f32 %v3341, %v3793
        %v3795 = vand.u32 %v3794, 4294901760
        %v3796 = vsub.f32 %v3794, %v3795
        %v3797 = vand.u32 %v3796, 4294901760
        %3798 = vmatmul.mubr.f32.gmra.mrb[0].mxu0 %v3797
        %v3799 = vpop.f32.mrb[0].mxu0
        %v3800 = vadd.f32 0.0, %v3799
        %v3801 = vpop.f32.mrb[0].mxu0
        %3802 = vmatprep.mubr.f32.mxu0 0.0
        %v3803 = vand.u32 %v3344, 4294901760
        %v3804 = vsub.f32 %v3344, %v3803
        %v3805 = vand.u32 %v3804, 4294901760
        %v3806 = vsub.f32 %v3804, %v3805
        %v3807 = vand.u32 %v3806, 4294901760
        %3808 = vmatmul.mubr.f32.gmra.mrb[0].mxu0 %v3807
        %v3809 = vpop.f32.mrb[0].mxu0
        %v3810 = vadd.f32 0.0, %v3809
        %v3811 = vpop.f32.mrb[0].mxu0
        %3812 = vdwg.mxu0
        %3813 = vmatprep.subr.mxu0 0.0
        %v3814 = vand.u32 %v3224, 4294901760
        %v3815 = vsub.f32 %v3224, %v3814
        %v3816 = vand.u32 %v3815, 4294901760
        %v3817 = vsub.f32 %v3815, %v3816
        %v3818 = vand.u32 %v3817, 4294901760
        %3819 = vmatpush1.msra.mxu0 %v3818
        %3820 = vmatprep.subr.mxu0 0.0
        %v3821 = vand.u32 %v3225, 4294901760
        %v3822 = vsub.f32 %v3225, %v3821
        %v3823 = vand.u32 %v3822, 4294901760
        %v3824 = vsub.f32 %v3822, %v3823
        %v3825 = vand.u32 %v3824, 4294901760
        %3826 = vmatpush1.msra.mxu0 %v3825
        %3827 = vmatprep.subr.mxu0 0.0
        %3828 = vmatpush1.msra.mxu0 0.0
        %3829 = vmatprep.subr.mxu0 0.0
        %3830 = vmatpush1.msra.mxu0 0.0
        %3831 = vmatprep.subr.mxu0 0.0
        %3832 = vmatpush1.msra.mxu0 0.0
        %3833 = vmatprep.subr.mxu0 0.0
        %3834 = vmatpush1.msra.mxu0 0.0
        %3835 = vmatprep.subr.mxu0 0.0
        %3836 = vmatpush1.msra.mxu0 0.0
        %3837 = vmatprep.subr.mxu0 0.0
        %3838 = vmatpush1.msra.mxu0 0.0
        %3839 = vmatprep.subr.mxu0 0.0
        %3840 = vmatpush1.msra.mxu0 0.0
        %3841 = vmatprep.subr.mxu0 0.0
        %3842 = vmatpush1.msra.mxu0 0.0
        %3843 = vmatprep.subr.mxu0 0.0
        %3844 = vmatpush1.msra.mxu0 0.0
        %3845 = vmatprep.subr.mxu0 0.0
        %3846 = vmatpush1.msra.mxu0 0.0
        %3847 = vmatprep.subr.mxu0 0.0
        %3848 = vmatpush1.msra.mxu0 0.0
        %3849 = vmatprep.subr.mxu0 0.0
        %3850 = vmatpush1.msra.mxu0 0.0
        %3851 = vmatprep.subr.mxu0 0.0
        %3852 = vmatpush1.msra.mxu0 0.0
        %3853 = vmatprep.subr.mxu0 0.0
        %3854 = vmatpush1.msra.mxu0 0.0
        %3855 = vmatprep.subr.mxu0 0.0
        %3856 = vmatpush1.msra.mxu0 0.0
        %3857 = vmatprep.subr.mxu0 0.0
        %3858 = vmatpush1.msra.mxu0 0.0
        %3859 = vmatprep.subr.mxu0 0.0
        %3860 = vmatpush1.msra.mxu0 0.0
        %3861 = vmatprep.subr.mxu0 0.0
        %3862 = vmatpush1.msra.mxu0 0.0
        %3863 = vmatprep.subr.mxu0 0.0
        %3864 = vmatpush1.msra.mxu0 0.0
        %3865 = vmatprep.subr.mxu0 0.0
        %3866 = vmatpush1.msra.mxu0 0.0
        %3867 = vmatprep.subr.mxu0 0.0
        %3868 = vmatpush1.msra.mxu0 0.0
        %3869 = vmatprep.subr.mxu0 0.0
        %3870 = vmatpush1.msra.mxu0 0.0
        %3871 = vmatprep.subr.mxu0 0.0
        %3872 = vmatpush1.msra.mxu0 0.0
        %3873 = vmatprep.subr.mxu0 0.0
        %3874 = vmatpush1.msra.mxu0 0.0
        %3875 = vmatprep.subr.mxu0 0.0
        %3876 = vmatpush1.msra.mxu0 0.0
        %3877 = vmatprep.subr.mxu0 0.0
        %3878 = vmatpush1.msra.mxu0 0.0
        %3879 = vmatprep.subr.mxu0 0.0
        %3880 = vmatpush1.msra.mxu0 0.0
        %3881 = vmatprep.subr.mxu0 0.0
        %3882 = vmatpush1.msra.mxu0 0.0
        %3883 = vmatprep.subr.mxu0 0.0
        %3884 = vmatpush1.msra.mxu0 0.0
        %3885 = vmatprep.subr.mxu0 0.0
        %3886 = vmatpush1.msra.mxu0 0.0
        %3887 = vmatprep.mubr.f32.mxu0 0.0
        %v3888 = vand.u32 %v3227, 4294901760
        %3889 = vmatmul.mubr.f32.gmra.mrb[0].mxu0 %v3888
        %v3890 = vpop.f32.mrb[0].mxu0
        %v3891 = vadd.f32 %v3420, %v3890
        %v3892 = vpop.f32.mrb[0].mxu0
        %3893 = vmatprep.mubr.f32.mxu0 0.0
        %v3894 = vand.u32 %v3230, 4294901760
        %3895 = vmatmul.mubr.f32.gmra.mrb[0].mxu0 %v3894
        %v3896 = vpop.f32.mrb[0].mxu0
        %v3897 = vadd.f32 %v3430, %v3896
        %v3898 = vpop.f32.mrb[0].mxu0
        %3899 = vmatprep.mubr.f32.mxu0 0.0
        %v3900 = vand.u32 %v3233, 4294901760
        %3901 = vmatmul.mubr.f32.gmra.mrb[0].mxu0 %v3900
        %v3902 = vpop.f32.mrb[0].mxu0
        %v3903 = vadd.f32 %v3440, %v3902
        %v3904 = vpop.f32.mrb[0].mxu0
        %3905 = vmatprep.mubr.f32.mxu0 0.0
        %v3906 = vand.u32 %v3236, 4294901760
        %3907 = vmatmul.mubr.f32.gmra.mrb[0].mxu0 %v3906
        %v3908 = vpop.f32.mrb[0].mxu0
        %v3909 = vadd.f32 %v3450, %v3908
        %v3910 = vpop.f32.mrb[0].mxu0
        %3911 = vmatprep.mubr.f32.mxu0 0.0
        %v3912 = vand.u32 %v3239, 4294901760
        %3913 = vmatmul.mubr.f32.gmra.mrb[0].mxu0 %v3912
        %v3914 = vpop.f32.mrb[0].mxu0
        %v3915 = vadd.f32 %v3460, %v3914
        %v3916 = vpop.f32.mrb[0].mxu0
        %3917 = vmatprep.mubr.f32.mxu0 0.0
        %v3918 = vand.u32 %v3242, 4294901760
        %3919 = vmatmul.mubr.f32.gmra.mrb[0].mxu0 %v3918
        %v3920 = vpop.f32.mrb[0].mxu0
        %v3921 = vadd.f32 %v3470, %v3920
        %v3922 = vpop.f32.mrb[0].mxu0
        %3923 = vmatprep.mubr.f32.mxu0 0.0
        %v3924 = vand.u32 %v3245, 4294901760
        %3925 = vmatmul.mubr.f32.gmra.mrb[0].mxu0 %v3924
        %v3926 = vpop.f32.mrb[0].mxu0
        %v3927 = vadd.f32 %v3480, %v3926
        %v3928 = vpop.f32.mrb[0].mxu0
        %3929 = vmatprep.mubr.f32.mxu0 0.0
        %v3930 = vand.u32 %v3248, 4294901760
        %3931 = vmatmul.mubr.f32.gmra.mrb[0].mxu0 %v3930
        %v3932 = vpop.f32.mrb[0].mxu0
        %v3933 = vadd.f32 %v3490, %v3932
        %v3934 = vpop.f32.mrb[0].mxu0
        %3935 = vmatprep.mubr.f32.mxu0 0.0
        %v3936 = vand.u32 %v3251, 4294901760
        %3937 = vmatmul.mubr.f32.gmra.mrb[0].mxu0 %v3936
        %v3938 = vpop.f32.mrb[0].mxu0
        %v3939 = vadd.f32 %v3500, %v3938
        %v3940 = vpop.f32.mrb[0].mxu0
        %3941 = vmatprep.mubr.f32.mxu0 0.0
        %v3942 = vand.u32 %v3254, 4294901760
        %3943 = vmatmul.mubr.f32.gmra.mrb[0].mxu0 %v3942
        %v3944 = vpop.f32.mrb[0].mxu0
        %v3945 = vadd.f32 %v3510, %v3944
        %v3946 = vpop.f32.mrb[0].mxu0
        %3947 = vmatprep.mubr.f32.mxu0 0.0
        %v3948 = vand.u32 %v3257, 4294901760
        %3949 = vmatmul.mubr.f32.gmra.mrb[0].mxu0 %v3948
        %v3950 = vpop.f32.mrb[0].mxu0
        %v3951 = vadd.f32 %v3520, %v3950
        %v3952 = vpop.f32.mrb[0].mxu0
        %3953 = vmatprep.mubr.f32.mxu0 0.0
        %v3954 = vand.u32 %v3260, 4294901760
        %3955 = vmatmul.mubr.f32.gmra.mrb[0].mxu0 %v3954
        %v3956 = vpop.f32.mrb[0].mxu0
        %v3957 = vadd.f32 %v3530, %v3956
        %v3958 = vpop.f32.mrb[0].mxu0
        %3959 = vmatprep.mubr.f32.mxu0 0.0
        %v3960 = vand.u32 %v3263, 4294901760
        %3961 = vmatmul.mubr.f32.gmra.mrb[0].mxu0 %v3960
        %v3962 = vpop.f32.mrb[0].mxu0
        %v3963 = vadd.f32 %v3540, %v3962
        %v3964 = vpop.f32.mrb[0].mxu0
        %3965 = vmatprep.mubr.f32.mxu0 0.0
        %v3966 = vand.u32 %v3266, 4294901760
        %3967 = vmatmul.mubr.f32.gmra.mrb[0].mxu0 %v3966
        %v3968 = vpop.f32.mrb[0].mxu0
        %v3969 = vadd.f32 %v3550, %v3968
        %v3970 = vpop.f32.mrb[0].mxu0
        %3971 = vmatprep.mubr.f32.mxu0 0.0
        %v3972 = vand.u32 %v3269, 4294901760
        %3973 = vmatmul.mubr.f32.gmra.mrb[0].mxu0 %v3972
        %v3974 = vpop.f32.mrb[0].mxu0
        %v3975 = vadd.f32 %v3560, %v3974
        %v3976 = vpop.f32.mrb[0].mxu0
        %3977 = vmatprep.mubr.f32.mxu0 0.0
        %v3978 = vand.u32 %v3272, 4294901760
        %3979 = vmatmul.mubr.f32.gmra.mrb[0].mxu0 %v3978
        %v3980 = vpop.f32.mrb[0].mxu0
        %v3981 = vadd.f32 %v3570, %v3980
        %v3982 = vpop.f32.mrb[0].mxu0
        %3983 = vmatprep.mubr.f32.mxu0 0.0
        %v3984 = vand.u32 %v3275, 4294901760
        %3985 = vmatmul.mubr.f32.gmra.mrb[0].mxu0 %v3984
        %v3986 = vpop.f32.mrb[0].mxu0
        %v3987 = vadd.f32 %v3580, %v3986
        %v3988 = vpop.f32.mrb[0].mxu0
        %3989 = vmatprep.mubr.f32.mxu0 0.0
        %v3990 = vand.u32 %v3278, 4294901760
        %3991 = vmatmul.mubr.f32.gmra.mrb[0].mxu0 %v3990
        %v3992 = vpop.f32.mrb[0].mxu0
        %v3993 = vadd.f32 %v3590, %v3992
        %v3994 = vpop.f32.mrb[0].mxu0
        %3995 = vmatprep.mubr.f32.mxu0 0.0
        %v3996 = vand.u32 %v3281, 4294901760
        %3997 = vmatmul.mubr.f32.gmra.mrb[0].mxu0 %v3996
        %v3998 = vpop.f32.mrb[0].mxu0
        %v3999 = vadd.f32 %v3600, %v3998
        %v4000 = vpop.f32.mrb[0].mxu0
        %4001 = vmatprep.mubr.f32.mxu0 0.0
        %v4002 = vand.u32 %v3284, 4294901760
        %4003 = vmatmul.mubr.f32.gmra.mrb[0].mxu0 %v4002
        %v4004 = vpop.f32.mrb[0].mxu0
        %v4005 = vadd.f32 %v3610, %v4004
        %v4006 = vpop.f32.mrb[0].mxu0
        %4007 = vmatprep.mubr.f32.mxu0 0.0
        %v4008 = vand.u32 %v3287, 4294901760
        %4009 = vmatmul.mubr.f32.gmra.mrb[0].mxu0 %v4008
        %v4010 = vpop.f32.mrb[0].mxu0
        %v4011 = vadd.f32 %v3620, %v4010
        %v4012 = vpop.f32.mrb[0].mxu0
        %4013 = vmatprep.mubr.f32.mxu0 0.0
        %v4014 = vand.u32 %v3290, 4294901760
        %4015 = vmatmul.mubr.f32.gmra.mrb[0].mxu0 %v4014
        %v4016 = vpop.f32.mrb[0].mxu0
        %v4017 = vadd.f32 %v3630, %v4016
        %v4018 = vpop.f32.mrb[0].mxu0
        %4019 = vmatprep.mubr.f32.mxu0 0.0
        %v4020 = vand.u32 %v3293, 4294901760
        %4021 = vmatmul.mubr.f32.gmra.mrb[0].mxu0 %v4020
        %v4022 = vpop.f32.mrb[0].mxu0
        %v4023 = vadd.f32 %v3640, %v4022
        %v4024 = vpop.f32.mrb[0].mxu0
        %4025 = vmatprep.mubr.f32.mxu0 0.0
        %v4026 = vand.u32 %v3296, 4294901760
        %4027 = vmatmul.mubr.f32.gmra.mrb[0].mxu0 %v4026
        %v4028 = vpop.f32.mrb[0].mxu0
        %v4029 = vadd.f32 %v3650, %v4028
        %v4030 = vpop.f32.mrb[0].mxu0
        %4031 = vmatprep.mubr.f32.mxu0 0.0
        %v4032 = vand.u32 %v3299, 4294901760
        %4033 = vmatmul.mubr.f32.gmra.mrb[0].mxu0 %v4032
        %v4034 = vpop.f32.mrb[0].mxu0
        %v4035 = vadd.f32 %v3660, %v4034
        %v4036 = vpop.f32.mrb[0].mxu0
        %4037 = vmatprep.mubr.f32.mxu0 0.0
        %v4038 = vand.u32 %v3302, 4294901760
        %4039 = vmatmul.mubr.f32.gmra.mrb[0].mxu0 %v4038
        %v4040 = vpop.f32.mrb[0].mxu0
        %v4041 = vadd.f32 %v3670, %v4040
        %v4042 = vpop.f32.mrb[0].mxu0
        %4043 = vmatprep.mubr.f32.mxu0 0.0
        %v4044 = vand.u32 %v3305, 4294901760
        %4045 = vmatmul.mubr.f32.gmra.mrb[0].mxu0 %v4044
        %v4046 = vpop.f32.mrb[0].mxu0
        %v4047 = vadd.f32 %v3680, %v4046
        %v4048 = vpop.f32.mrb[0].mxu0
        %4049 = vmatprep.mubr.f32.mxu0 0.0
        %v4050 = vand.u32 %v3308, 4294901760
        %4051 = vmatmul.mubr.f32.gmra.mrb[0].mxu0 %v4050
        %v4052 = vpop.f32.mrb[0].mxu0
        %v4053 = vadd.f32 %v3690, %v4052
        %v4054 = vpop.f32.mrb[0].mxu0
        %4055 = vmatprep.mubr.f32.mxu0 0.0
        %v4056 = vand.u32 %v3311, 4294901760
        %4057 = vmatmul.mubr.f32.gmra.mrb[0].mxu0 %v4056
        %v4058 = vpop.f32.mrb[0].mxu0
        %v4059 = vadd.f32 %v3700, %v4058
        %v4060 = vpop.f32.mrb[0].mxu0
        %4061 = vmatprep.mubr.f32.mxu0 0.0
        %v4062 = vand.u32 %v3314, 4294901760
        %4063 = vmatmul.mubr.f32.gmra.mrb[0].mxu0 %v4062
        %v4064 = vpop.f32.mrb[0].mxu0
        %v4065 = vadd.f32 %v3710, %v4064
        %v4066 = vpop.f32.mrb[0].mxu0
        %4067 = vmatprep.mubr.f32.mxu0 0.0
        %v4068 = vand.u32 %v3317, 4294901760
        %4069 = vmatmul.mubr.f32.gmra.mrb[0].mxu0 %v4068
        %v4070 = vpop.f32.mrb[0].mxu0
        %v4071 = vadd.f32 %v3720, %v4070
        %v4072 = vpop.f32.mrb[0].mxu0
        %4073 = vmatprep.mubr.f32.mxu0 0.0
        %v4074 = vand.u32 %v3320, 4294901760
        %4075 = vmatmul.mubr.f32.gmra.mrb[0].mxu0 %v4074
        %v4076 = vpop.f32.mrb[0].mxu0
        %v4077 = vadd.f32 %v3730, %v4076
        %v4078 = vpop.f32.mrb[0].mxu0
        %4079 = vmatprep.mubr.f32.mxu0 0.0
        %v4080 = vand.u32 %v3323, 4294901760
        %4081 = vmatmul.mubr.f32.gmra.mrb[0].mxu0 %v4080
        %v4082 = vpop.f32.mrb[0].mxu0
        %v4083 = vadd.f32 %v3740, %v4082
        %v4084 = vpop.f32.mrb[0].mxu0
        %4085 = vmatprep.mubr.f32.mxu0 0.0
        %v4086 = vand.u32 %v3326, 4294901760
        %4087 = vmatmul.mubr.f32.gmra.mrb[0].mxu0 %v4086
        %v4088 = vpop.f32.mrb[0].mxu0
        %v4089 = vadd.f32 %v3750, %v4088
        %v4090 = vpop.f32.mrb[0].mxu0
        %4091 = vmatprep.mubr.f32.mxu0 0.0
        %v4092 = vand.u32 %v3329, 4294901760
        %4093 = vmatmul.mubr.f32.gmra.mrb[0].mxu0 %v4092
        %v4094 = vpop.f32.mrb[0].mxu0
        %v4095 = vadd.f32 %v3760, %v4094
        %v4096 = vpop.f32.mrb[0].mxu0
        %4097 = vmatprep.mubr.f32.mxu0 0.0
        %v4098 = vand.u32 %v3332, 4294901760
        %4099 = vmatmul.mubr.f32.gmra.mrb[0].mxu0 %v4098
        %v4100 = vpop.f32.mrb[0].mxu0
        %v4101 = vadd.f32 %v3770, %v4100
        %v4102 = vpop.f32.mrb[0].mxu0
        %4103 = vmatprep.mubr.f32.mxu0 0.0
        %v4104 = vand.u32 %v3335, 4294901760
        %4105 = vmatmul.mubr.f32.gmra.mrb[0].mxu0 %v4104
        %v4106 = vpop.f32.mrb[0].mxu0
        %v4107 = vadd.f32 %v3780, %v4106
        %v4108 = vpop.f32.mrb[0].mxu0
        %4109 = vmatprep.mubr.f32.mxu0 0.0
        %v4110 = vand.u32 %v3338, 4294901760
        %4111 = vmatmul.mubr.f32.gmra.mrb[0].mxu0 %v4110
        %v4112 = vpop.f32.mrb[0].mxu0
        %v4113 = vadd.f32 %v3790, %v4112
        %v4114 = vpop.f32.mrb[0].mxu0
        %4115 = vmatprep.mubr.f32.mxu0 0.0
        %v4116 = vand.u32 %v3341, 4294901760
        %4117 = vmatmul.mubr.f32.gmra.mrb[0].mxu0 %v4116
        %v4118 = vpop.f32.mrb[0].mxu0
        %v4119 = vadd.f32 %v3800, %v4118
        %v4120 = vpop.f32.mrb[0].mxu0
        %4121 = vmatprep.mubr.f32.mxu0 0.0
        %v4122 = vand.u32 %v3344, 4294901760
        %4123 = vmatmul.mubr.f32.gmra.mrb[0].mxu0 %v4122
        %v4124 = vpop.f32.mrb[0].mxu0
        %v4125 = vadd.f32 %v3810, %v4124
        %v4126 = vpop.f32.mrb[0].mxu0
        %4127 = vdwg.mxu0
        %4128 = vmatprep.subr.mxu0 0.0
        %v4129 = vand.u32 %v3224, 4294901760
        %v4130 = vsub.f32 %v3224, %v4129
        %4131 = vmatpush1.msra.mxu0 %v4130
        %4132 = vmatprep.subr.mxu0 0.0
        %v4133 = vand.u32 %v3225, 4294901760
        %v4134 = vsub.f32 %v3225, %v4133
        %4135 = vmatpush1.msra.mxu0 %v4134
        %4136 = vmatprep.subr.mxu0 0.0
        %4137 = vmatpush1.msra.mxu0 0.0
        %4138 = vmatprep.subr.mxu0 0.0
        %4139 = vmatpush1.msra.mxu0 0.0
        %4140 = vmatprep.subr.mxu0 0.0
        %4141 = vmatpush1.msra.mxu0 0.0
        %4142 = vmatprep.subr.mxu0 0.0
        %4143 = vmatpush1.msra.mxu0 0.0
        %4144 = vmatprep.subr.mxu0 0.0
        %4145 = vmatpush1.msra.mxu0 0.0
        %4146 = vmatprep.subr.mxu0 0.0
        %4147 = vmatpush1.msra.mxu0 0.0
        %4148 = vmatprep.subr.mxu0 0.0
        %4149 = vmatpush1.msra.mxu0 0.0
        %4150 = vmatprep.subr.mxu0 0.0
        %4151 = vmatpush1.msra.mxu0 0.0
        %4152 = vmatprep.subr.mxu0 0.0
        %4153 = vmatpush1.msra.mxu0 0.0
        %4154 = vmatprep.subr.mxu0 0.0
        %4155 = vmatpush1.msra.mxu0 0.0
        %4156 = vmatprep.subr.mxu0 0.0
        %4157 = vmatpush1.msra.mxu0 0.0
        %4158 = vmatprep.subr.mxu0 0.0
        %4159 = vmatpush1.msra.mxu0 0.0
        %4160 = vmatprep.subr.mxu0 0.0
        %4161 = vmatpush1.msra.mxu0 0.0
        %4162 = vmatprep.subr.mxu0 0.0
        %4163 = vmatpush1.msra.mxu0 0.0
        %4164 = vmatprep.subr.mxu0 0.0
        %4165 = vmatpush1.msra.mxu0 0.0
        %4166 = vmatprep.subr.mxu0 0.0
        %4167 = vmatpush1.msra.mxu0 0.0
        %4168 = vmatprep.subr.mxu0 0.0
        %4169 = vmatpush1.msra.mxu0 0.0
        %4170 = vmatprep.subr.mxu0 0.0
        %4171 = vmatpush1.msra.mxu0 0.0
        %4172 = vmatprep.subr.mxu0 0.0
        %4173 = vmatpush1.msra.mxu0 0.0
        %4174 = vmatprep.subr.mxu0 0.0
        %4175 = vmatpush1.msra.mxu0 0.0
        %4176 = vmatprep.subr.mxu0 0.0
        %4177 = vmatpush1.msra.mxu0 0.0
        %4178 = vmatprep.subr.mxu0 0.0
        %4179 = vmatpush1.msra.mxu0 0.0
        %4180 = vmatprep.subr.mxu0 0.0
        %4181 = vmatpush1.msra.mxu0 0.0
        %4182 = vmatprep.subr.mxu0 0.0
        %4183 = vmatpush1.msra.mxu0 0.0
        %4184 = vmatprep.subr.mxu0 0.0
        %4185 = vmatpush1.msra.mxu0 0.0
        %4186 = vmatprep.subr.mxu0 0.0
        %4187 = vmatpush1.msra.mxu0 0.0
        %4188 = vmatprep.subr.mxu0 0.0
        %4189 = vmatpush1.msra.mxu0 0.0
        %4190 = vmatprep.subr.mxu0 0.0
        %4191 = vmatpush1.msra.mxu0 0.0
        %4192 = vmatprep.subr.mxu0 0.0
        %4193 = vmatpush1.msra.mxu0 0.0
        %4194 = vmatprep.subr.mxu0 0.0
        %4195 = vmatpush1.msra.mxu0 0.0
        %4196 = vmatprep.mubr.f32.mxu0 0.0
        %v4197 = vand.u32 %v3227, 4294901760
        %v4198 = vsub.f32 %v3227, %v4197
        %4199 = vmatmul.mubr.f32.gmra.mrb[0].mxu0 %v4198
        %v4200 = vpop.f32.mrb[0].mxu0
        %v4201 = vadd.f32 %v3891, %v4200
        %v4202 = vpop.f32.mrb[0].mxu0
        %4203 = vmatprep.mubr.f32.mxu0 0.0
        %v4204 = vand.u32 %v3230, 4294901760
        %v4205 = vsub.f32 %v3230, %v4204
        %4206 = vmatmul.mubr.f32.gmra.mrb[0].mxu0 %v4205
        %v4207 = vpop.f32.mrb[0].mxu0
        %v4208 = vadd.f32 %v3897, %v4207
        %v4209 = vpop.f32.mrb[0].mxu0
        %4210 = vmatprep.mubr.f32.mxu0 0.0
        %v4211 = vand.u32 %v3233, 4294901760
        %v4212 = vsub.f32 %v3233, %v4211
        %4213 = vmatmul.mubr.f32.gmra.mrb[0].mxu0 %v4212
        %v4214 = vpop.f32.mrb[0].mxu0
        %v4215 = vadd.f32 %v3903, %v4214
        %v4216 = vpop.f32.mrb[0].mxu0
        %4217 = vmatprep.mubr.f32.mxu0 0.0
        %v4218 = vand.u32 %v3236, 4294901760
        %v4219 = vsub.f32 %v3236, %v4218
        %4220 = vmatmul.mubr.f32.gmra.mrb[0].mxu0 %v4219
        %v4221 = vpop.f32.mrb[0].mxu0
        %v4222 = vadd.f32 %v3909, %v4221
        %v4223 = vpop.f32.mrb[0].mxu0
        %4224 = vmatprep.mubr.f32.mxu0 0.0
        %v4225 = vand.u32 %v3239, 4294901760
        %v4226 = vsub.f32 %v3239, %v4225
        %4227 = vmatmul.mubr.f32.gmra.mrb[0].mxu0 %v4226
        %v4228 = vpop.f32.mrb[0].mxu0
        %v4229 = vadd.f32 %v3915, %v4228
        %v4230 = vpop.f32.mrb[0].mxu0
        %4231 = vmatprep.mubr.f32.mxu0 0.0
        %v4232 = vand.u32 %v3242, 4294901760
        %v4233 = vsub.f32 %v3242, %v4232
        %4234 = vmatmul.mubr.f32.gmra.mrb[0].mxu0 %v4233
        %v4235 = vpop.f32.mrb[0].mxu0
        %v4236 = vadd.f32 %v3921, %v4235
        %v4237 = vpop.f32.mrb[0].mxu0
        %4238 = vmatprep.mubr.f32.mxu0 0.0
        %v4239 = vand.u32 %v3245, 4294901760
        %v4240 = vsub.f32 %v3245, %v4239
        %4241 = vmatmul.mubr.f32.gmra.mrb[0].mxu0 %v4240
        %v4242 = vpop.f32.mrb[0].mxu0
        %v4243 = vadd.f32 %v3927, %v4242
        %v4244 = vpop.f32.mrb[0].mxu0
        %4245 = vmatprep.mubr.f32.mxu0 0.0
        %v4246 = vand.u32 %v3248, 4294901760
        %v4247 = vsub.f32 %v3248, %v4246
        %4248 = vmatmul.mubr.f32.gmra.mrb[0].mxu0 %v4247
        %v4249 = vpop.f32.mrb[0].mxu0
        %v4250 = vadd.f32 %v3933, %v4249
        %v4251 = vpop.f32.mrb[0].mxu0
        %4252 = vmatprep.mubr.f32.mxu0 0.0
        %v4253 = vand.u32 %v3251, 4294901760
        %v4254 = vsub.f32 %v3251, %v4253
        %4255 = vmatmul.mubr.f32.gmra.mrb[0].mxu0 %v4254
        %v4256 = vpop.f32.mrb[0].mxu0
        %v4257 = vadd.f32 %v3939, %v4256
        %v4258 = vpop.f32.mrb[0].mxu0
        %4259 = vmatprep.mubr.f32.mxu0 0.0
        %v4260 = vand.u32 %v3254, 4294901760
        %v4261 = vsub.f32 %v3254, %v4260
        %4262 = vmatmul.mubr.f32.gmra.mrb[0].mxu0 %v4261
        %v4263 = vpop.f32.mrb[0].mxu0
        %v4264 = vadd.f32 %v3945, %v4263
        %v4265 = vpop.f32.mrb[0].mxu0
        %4266 = vmatprep.mubr.f32.mxu0 0.0
        %v4267 = vand.u32 %v3257, 4294901760
        %v4268 = vsub.f32 %v3257, %v4267
        %4269 = vmatmul.mubr.f32.gmra.mrb[0].mxu0 %v4268
        %v4270 = vpop.f32.mrb[0].mxu0
        %v4271 = vadd.f32 %v3951, %v4270
        %v4272 = vpop.f32.mrb[0].mxu0
        %4273 = vmatprep.mubr.f32.mxu0 0.0
        %v4274 = vand.u32 %v3260, 4294901760
        %v4275 = vsub.f32 %v3260, %v4274
        %4276 = vmatmul.mubr.f32.gmra.mrb[0].mxu0 %v4275
        %v4277 = vpop.f32.mrb[0].mxu0
        %v4278 = vadd.f32 %v3957, %v4277
        %v4279 = vpop.f32.mrb[0].mxu0
        %4280 = vmatprep.mubr.f32.mxu0 0.0
        %v4281 = vand.u32 %v3263, 4294901760
        %v4282 = vsub.f32 %v3263, %v4281
        %4283 = vmatmul.mubr.f32.gmra.mrb[0].mxu0 %v4282
        %v4284 = vpop.f32.mrb[0].mxu0
        %v4285 = vadd.f32 %v3963, %v4284
        %v4286 = vpop.f32.mrb[0].mxu0
        %4287 = vmatprep.mubr.f32.mxu0 0.0
        %v4288 = vand.u32 %v3266, 4294901760
        %v4289 = vsub.f32 %v3266, %v4288
        %4290 = vmatmul.mubr.f32.gmra.mrb[0].mxu0 %v4289
        %v4291 = vpop.f32.mrb[0].mxu0
        %v4292 = vadd.f32 %v3969, %v4291
        %v4293 = vpop.f32.mrb[0].mxu0
        %4294 = vmatprep.mubr.f32.mxu0 0.0
        %v4295 = vand.u32 %v3269, 4294901760
        %v4296 = vsub.f32 %v3269, %v4295
        %4297 = vmatmul.mubr.f32.gmra.mrb[0].mxu0 %v4296
        %v4298 = vpop.f32.mrb[0].mxu0
        %v4299 = vadd.f32 %v3975, %v4298
        %v4300 = vpop.f32.mrb[0].mxu0
        %4301 = vmatprep.mubr.f32.mxu0 0.0
        %v4302 = vand.u32 %v3272, 4294901760
        %v4303 = vsub.f32 %v3272, %v4302
        %4304 = vmatmul.mubr.f32.gmra.mrb[0].mxu0 %v4303
        %v4305 = vpop.f32.mrb[0].mxu0
        %v4306 = vadd.f32 %v3981, %v4305
        %v4307 = vpop.f32.mrb[0].mxu0
        %4308 = vmatprep.mubr.f32.mxu0 0.0
        %v4309 = vand.u32 %v3275, 4294901760
        %v4310 = vsub.f32 %v3275, %v4309
        %4311 = vmatmul.mubr.f32.gmra.mrb[0].mxu0 %v4310
        %v4312 = vpop.f32.mrb[0].mxu0
        %v4313 = vadd.f32 %v3987, %v4312
        %v4314 = vpop.f32.mrb[0].mxu0
        %4315 = vmatprep.mubr.f32.mxu0 0.0
        %v4316 = vand.u32 %v3278, 4294901760
        %v4317 = vsub.f32 %v3278, %v4316
        %4318 = vmatmul.mubr.f32.gmra.mrb[0].mxu0 %v4317
        %v4319 = vpop.f32.mrb[0].mxu0
        %v4320 = vadd.f32 %v3993, %v4319
        %v4321 = vpop.f32.mrb[0].mxu0
        %4322 = vmatprep.mubr.f32.mxu0 0.0
        %v4323 = vand.u32 %v3281, 4294901760
        %v4324 = vsub.f32 %v3281, %v4323
        %4325 = vmatmul.mubr.f32.gmra.mrb[0].mxu0 %v4324
        %v4326 = vpop.f32.mrb[0].mxu0
        %v4327 = vadd.f32 %v3999, %v4326
        %v4328 = vpop.f32.mrb[0].mxu0
        %4329 = vmatprep.mubr.f32.mxu0 0.0
        %v4330 = vand.u32 %v3284, 4294901760
        %v4331 = vsub.f32 %v3284, %v4330
        %4332 = vmatmul.mubr.f32.gmra.mrb[0].mxu0 %v4331
        %v4333 = vpop.f32.mrb[0].mxu0
        %v4334 = vadd.f32 %v4005, %v4333
        %v4335 = vpop.f32.mrb[0].mxu0
        %4336 = vmatprep.mubr.f32.mxu0 0.0
        %v4337 = vand.u32 %v3287, 4294901760
        %v4338 = vsub.f32 %v3287, %v4337
        %4339 = vmatmul.mubr.f32.gmra.mrb[0].mxu0 %v4338
        %v4340 = vpop.f32.mrb[0].mxu0
        %v4341 = vadd.f32 %v4011, %v4340
        %v4342 = vpop.f32.mrb[0].mxu0
        %4343 = vmatprep.mubr.f32.mxu0 0.0
        %v4344 = vand.u32 %v3290, 4294901760
        %v4345 = vsub.f32 %v3290, %v4344
        %4346 = vmatmul.mubr.f32.gmra.mrb[0].mxu0 %v4345
        %v4347 = vpop.f32.mrb[0].mxu0
        %v4348 = vadd.f32 %v4017, %v4347
        %v4349 = vpop.f32.mrb[0].mxu0
        %4350 = vmatprep.mubr.f32.mxu0 0.0
        %v4351 = vand.u32 %v3293, 4294901760
        %v4352 = vsub.f32 %v3293, %v4351
        %4353 = vmatmul.mubr.f32.gmra.mrb[0].mxu0 %v4352
        %v4354 = vpop.f32.mrb[0].mxu0
        %v4355 = vadd.f32 %v4023, %v4354
        %v4356 = vpop.f32.mrb[0].mxu0
        %4357 = vmatprep.mubr.f32.mxu0 0.0
        %v4358 = vand.u32 %v3296, 4294901760
        %v4359 = vsub.f32 %v3296, %v4358
        %4360 = vmatmul.mubr.f32.gmra.mrb[0].mxu0 %v4359
        %v4361 = vpop.f32.mrb[0].mxu0
        %v4362 = vadd.f32 %v4029, %v4361
        %v4363 = vpop.f32.mrb[0].mxu0
        %4364 = vmatprep.mubr.f32.mxu0 0.0
        %v4365 = vand.u32 %v3299, 4294901760
        %v4366 = vsub.f32 %v3299, %v4365
        %4367 = vmatmul.mubr.f32.gmra.mrb[0].mxu0 %v4366
        %v4368 = vpop.f32.mrb[0].mxu0
        %v4369 = vadd.f32 %v4035, %v4368
        %v4370 = vpop.f32.mrb[0].mxu0
        %4371 = vmatprep.mubr.f32.mxu0 0.0
        %v4372 = vand.u32 %v3302, 4294901760
        %v4373 = vsub.f32 %v3302, %v4372
        %4374 = vmatmul.mubr.f32.gmra.mrb[0].mxu0 %v4373
        %v4375 = vpop.f32.mrb[0].mxu0
        %v4376 = vadd.f32 %v4041, %v4375
        %v4377 = vpop.f32.mrb[0].mxu0
        %4378 = vmatprep.mubr.f32.mxu0 0.0
        %v4379 = vand.u32 %v3305, 4294901760
        %v4380 = vsub.f32 %v3305, %v4379
        %4381 = vmatmul.mubr.f32.gmra.mrb[0].mxu0 %v4380
        %v4382 = vpop.f32.mrb[0].mxu0
        %v4383 = vadd.f32 %v4047, %v4382
        %v4384 = vpop.f32.mrb[0].mxu0
        %4385 = vmatprep.mubr.f32.mxu0 0.0
        %v4386 = vand.u32 %v3308, 4294901760
        %v4387 = vsub.f32 %v3308, %v4386
        %4388 = vmatmul.mubr.f32.gmra.mrb[0].mxu0 %v4387
        %v4389 = vpop.f32.mrb[0].mxu0
        %v4390 = vadd.f32 %v4053, %v4389
        %v4391 = vpop.f32.mrb[0].mxu0
        %4392 = vmatprep.mubr.f32.mxu0 0.0
        %v4393 = vand.u32 %v3311, 4294901760
        %v4394 = vsub.f32 %v3311, %v4393
        %4395 = vmatmul.mubr.f32.gmra.mrb[0].mxu0 %v4394
        %v4396 = vpop.f32.mrb[0].mxu0
        %v4397 = vadd.f32 %v4059, %v4396
        %v4398 = vpop.f32.mrb[0].mxu0
        %4399 = vmatprep.mubr.f32.mxu0 0.0
        %v4400 = vand.u32 %v3314, 4294901760
        %v4401 = vsub.f32 %v3314, %v4400
        %4402 = vmatmul.mubr.f32.gmra.mrb[0].mxu0 %v4401
        %v4403 = vpop.f32.mrb[0].mxu0
        %v4404 = vadd.f32 %v4065, %v4403
        %v4405 = vpop.f32.mrb[0].mxu0
        %4406 = vmatprep.mubr.f32.mxu0 0.0
        %v4407 = vand.u32 %v3317, 4294901760
        %v4408 = vsub.f32 %v3317, %v4407
        %4409 = vmatmul.mubr.f32.gmra.mrb[0].mxu0 %v4408
        %v4410 = vpop.f32.mrb[0].mxu0
        %v4411 = vadd.f32 %v4071, %v4410
        %v4412 = vpop.f32.mrb[0].mxu0
        %4413 = vmatprep.mubr.f32.mxu0 0.0
        %v4414 = vand.u32 %v3320, 4294901760
        %v4415 = vsub.f32 %v3320, %v4414
        %4416 = vmatmul.mubr.f32.gmra.mrb[0].mxu0 %v4415
        %v4417 = vpop.f32.mrb[0].mxu0
        %v4418 = vadd.f32 %v4077, %v4417
        %v4419 = vpop.f32.mrb[0].mxu0
        %4420 = vmatprep.mubr.f32.mxu0 0.0
        %v4421 = vand.u32 %v3323, 4294901760
        %v4422 = vsub.f32 %v3323, %v4421
        %4423 = vmatmul.mubr.f32.gmra.mrb[0].mxu0 %v4422
        %v4424 = vpop.f32.mrb[0].mxu0
        %v4425 = vadd.f32 %v4083, %v4424
        %v4426 = vpop.f32.mrb[0].mxu0
        %4427 = vmatprep.mubr.f32.mxu0 0.0
        %v4428 = vand.u32 %v3326, 4294901760
        %v4429 = vsub.f32 %v3326, %v4428
        %4430 = vmatmul.mubr.f32.gmra.mrb[0].mxu0 %v4429
        %v4431 = vpop.f32.mrb[0].mxu0
        %v4432 = vadd.f32 %v4089, %v4431
        %v4433 = vpop.f32.mrb[0].mxu0
        %4434 = vmatprep.mubr.f32.mxu0 0.0
        %v4435 = vand.u32 %v3329, 4294901760
        %v4436 = vsub.f32 %v3329, %v4435
        %4437 = vmatmul.mubr.f32.gmra.mrb[0].mxu0 %v4436
        %v4438 = vpop.f32.mrb[0].mxu0
        %v4439 = vadd.f32 %v4095, %v4438
        %v4440 = vpop.f32.mrb[0].mxu0
        %4441 = vmatprep.mubr.f32.mxu0 0.0
        %v4442 = vand.u32 %v3332, 4294901760
        %v4443 = vsub.f32 %v3332, %v4442
        %4444 = vmatmul.mubr.f32.gmra.mrb[0].mxu0 %v4443
        %v4445 = vpop.f32.mrb[0].mxu0
        %v4446 = vadd.f32 %v4101, %v4445
        %v4447 = vpop.f32.mrb[0].mxu0
        %4448 = vmatprep.mubr.f32.mxu0 0.0
        %v4449 = vand.u32 %v3335, 4294901760
        %v4450 = vsub.f32 %v3335, %v4449
        %4451 = vmatmul.mubr.f32.gmra.mrb[0].mxu0 %v4450
        %v4452 = vpop.f32.mrb[0].mxu0
        %v4453 = vadd.f32 %v4107, %v4452
        %v4454 = vpop.f32.mrb[0].mxu0
        %4455 = vmatprep.mubr.f32.mxu0 0.0
        %v4456 = vand.u32 %v3338, 4294901760
        %v4457 = vsub.f32 %v3338, %v4456
        %4458 = vmatmul.mubr.f32.gmra.mrb[0].mxu0 %v4457
        %v4459 = vpop.f32.mrb[0].mxu0
        %v4460 = vadd.f32 %v4113, %v4459
        %v4461 = vpop.f32.mrb[0].mxu0
        %4462 = vmatprep.mubr.f32.mxu0 0.0
        %v4463 = vand.u32 %v3341, 4294901760
        %v4464 = vsub.f32 %v3341, %v4463
        %4465 = vmatmul.mubr.f32.gmra.mrb[0].mxu0 %v4464
        %v4466 = vpop.f32.mrb[0].mxu0
        %v4467 = vadd.f32 %v4119, %v4466
        %v4468 = vpop.f32.mrb[0].mxu0
        %4469 = vmatprep.mubr.f32.mxu0 0.0
        %v4470 = vand.u32 %v3344, 4294901760
        %v4471 = vsub.f32 %v3344, %v4470
        %4472 = vmatmul.mubr.f32.gmra.mrb[0].mxu0 %v4471
        %v4473 = vpop.f32.mrb[0].mxu0
        %v4474 = vadd.f32 %v4125, %v4473
        %v4475 = vpop.f32.mrb[0].mxu0
        %4476 = vdwg.mxu0
        %4477 = vmatprep.subr.mxu0 0.0
        %v4478 = vand.u32 %v3224, 4294901760
        %4479 = vmatpush1.msra.mxu0 %v4478
        %4480 = vmatprep.subr.mxu0 0.0
        %v4481 = vand.u32 %v3225, 4294901760
        %4482 = vmatpush1.msra.mxu0 %v4481
        %4483 = vmatprep.subr.mxu0 0.0
        %4484 = vmatpush1.msra.mxu0 0.0
        %4485 = vmatprep.subr.mxu0 0.0
        %4486 = vmatpush1.msra.mxu0 0.0
        %4487 = vmatprep.subr.mxu0 0.0
        %4488 = vmatpush1.msra.mxu0 0.0
        %4489 = vmatprep.subr.mxu0 0.0
        %4490 = vmatpush1.msra.mxu0 0.0
        %4491 = vmatprep.subr.mxu0 0.0
        %4492 = vmatpush1.msra.mxu0 0.0
        %4493 = vmatprep.subr.mxu0 0.0
        %4494 = vmatpush1.msra.mxu0 0.0
        %4495 = vmatprep.subr.mxu0 0.0
        %4496 = vmatpush1.msra.mxu0 0.0
        %4497 = vmatprep.subr.mxu0 0.0
        %4498 = vmatpush1.msra.mxu0 0.0
        %4499 = vmatprep.subr.mxu0 0.0
        %4500 = vmatpush1.msra.mxu0 0.0
        %4501 = vmatprep.subr.mxu0 0.0
        %4502 = vmatpush1.msra.mxu0 0.0
        %4503 = vmatprep.subr.mxu0 0.0
        %4504 = vmatpush1.msra.mxu0 0.0
        %4505 = vmatprep.subr.mxu0 0.0
        %4506 = vmatpush1.msra.mxu0 0.0
        %4507 = vmatprep.subr.mxu0 0.0
        %4508 = vmatpush1.msra.mxu0 0.0
        %4509 = vmatprep.subr.mxu0 0.0
        %4510 = vmatpush1.msra.mxu0 0.0
        %4511 = vmatprep.subr.mxu0 0.0
        %4512 = vmatpush1.msra.mxu0 0.0
        %4513 = vmatprep.subr.mxu0 0.0
        %4514 = vmatpush1.msra.mxu0 0.0
        %4515 = vmatprep.subr.mxu0 0.0
        %4516 = vmatpush1.msra.mxu0 0.0
        %4517 = vmatprep.subr.mxu0 0.0
        %4518 = vmatpush1.msra.mxu0 0.0
        %4519 = vmatprep.subr.mxu0 0.0
        %4520 = vmatpush1.msra.mxu0 0.0
        %4521 = vmatprep.subr.mxu0 0.0
        %4522 = vmatpush1.msra.mxu0 0.0
        %4523 = vmatprep.subr.mxu0 0.0
        %4524 = vmatpush1.msra.mxu0 0.0
        %4525 = vmatprep.subr.mxu0 0.0
        %4526 = vmatpush1.msra.mxu0 0.0
        %4527 = vmatprep.subr.mxu0 0.0
        %4528 = vmatpush1.msra.mxu0 0.0
        %4529 = vmatprep.subr.mxu0 0.0
        %4530 = vmatpush1.msra.mxu0 0.0
        %4531 = vmatprep.subr.mxu0 0.0
        %4532 = vmatpush1.msra.mxu0 0.0
        %4533 = vmatprep.subr.mxu0 0.0
        %4534 = vmatpush1.msra.mxu0 0.0
        %4535 = vmatprep.subr.mxu0 0.0
        %4536 = vmatpush1.msra.mxu0 0.0
        %4537 = vmatprep.subr.mxu0 0.0
        %4538 = vmatpush1.msra.mxu0 0.0
        %4539 = vmatprep.subr.mxu0 0.0
        %4540 = vmatpush1.msra.mxu0 0.0
        %4541 = vmatprep.subr.mxu0 0.0
        %4542 = vmatpush1.msra.mxu0 0.0
        %4543 = vmatprep.mubr.f32.mxu0 0.0
        %v4544 = vand.u32 %v3227, 4294901760
        %v4545 = vsub.f32 %v3227, %v4544
        %v4546 = vand.u32 %v4545, 4294901760
        %4547 = vmatmul.mubr.f32.gmra.mrb[0].mxu0 %v4546
        %v4548 = vpop.f32.mrb[0].mxu0
        %v4549 = vadd.f32 %v4201, %v4548
        %v4550 = vpop.f32.mrb[0].mxu0
        %4551 = vmatprep.mubr.f32.mxu0 0.0
        %v4552 = vand.u32 %v3230, 4294901760
        %v4553 = vsub.f32 %v3230, %v4552
        %v4554 = vand.u32 %v4553, 4294901760
        %4555 = vmatmul.mubr.f32.gmra.mrb[0].mxu0 %v4554
        %v4556 = vpop.f32.mrb[0].mxu0
        %v4557 = vadd.f32 %v4208, %v4556
        %v4558 = vpop.f32.mrb[0].mxu0
        %4559 = vmatprep.mubr.f32.mxu0 0.0
        %v4560 = vand.u32 %v3233, 4294901760
        %v4561 = vsub.f32 %v3233, %v4560
        %v4562 = vand.u32 %v4561, 4294901760
        %4563 = vmatmul.mubr.f32.gmra.mrb[0].mxu0 %v4562
        %v4564 = vpop.f32.mrb[0].mxu0
        %v4565 = vadd.f32 %v4215, %v4564
        %v4566 = vpop.f32.mrb[0].mxu0
        %4567 = vmatprep.mubr.f32.mxu0 0.0
        %v4568 = vand.u32 %v3236, 4294901760
        %v4569 = vsub.f32 %v3236, %v4568
        %v4570 = vand.u32 %v4569, 4294901760
        %4571 = vmatmul.mubr.f32.gmra.mrb[0].mxu0 %v4570
        %v4572 = vpop.f32.mrb[0].mxu0
        %v4573 = vadd.f32 %v4222, %v4572
        %v4574 = vpop.f32.mrb[0].mxu0
        %4575 = vmatprep.mubr.f32.mxu0 0.0
        %v4576 = vand.u32 %v3239, 4294901760
        %v4577 = vsub.f32 %v3239, %v4576
        %v4578 = vand.u32 %v4577, 4294901760
        %4579 = vmatmul.mubr.f32.gmra.mrb[0].mxu0 %v4578
        %v4580 = vpop.f32.mrb[0].mxu0
        %v4581 = vadd.f32 %v4229, %v4580
        %v4582 = vpop.f32.mrb[0].mxu0
        %4583 = vmatprep.mubr.f32.mxu0 0.0
        %v4584 = vand.u32 %v3242, 4294901760
        %v4585 = vsub.f32 %v3242, %v4584
        %v4586 = vand.u32 %v4585, 4294901760
        %4587 = vmatmul.mubr.f32.gmra.mrb[0].mxu0 %v4586
        %v4588 = vpop.f32.mrb[0].mxu0
        %v4589 = vadd.f32 %v4236, %v4588
        %v4590 = vpop.f32.mrb[0].mxu0
        %4591 = vmatprep.mubr.f32.mxu0 0.0
        %v4592 = vand.u32 %v3245, 4294901760
        %v4593 = vsub.f32 %v3245, %v4592
        %v4594 = vand.u32 %v4593, 4294901760
        %4595 = vmatmul.mubr.f32.gmra.mrb[0].mxu0 %v4594
        %v4596 = vpop.f32.mrb[0].mxu0
        %v4597 = vadd.f32 %v4243, %v4596
        %v4598 = vpop.f32.mrb[0].mxu0
        %4599 = vmatprep.mubr.f32.mxu0 0.0
        %v4600 = vand.u32 %v3248, 4294901760
        %v4601 = vsub.f32 %v3248, %v4600
        %v4602 = vand.u32 %v4601, 4294901760
        %4603 = vmatmul.mubr.f32.gmra.mrb[0].mxu0 %v4602
        %v4604 = vpop.f32.mrb[0].mxu0
        %v4605 = vadd.f32 %v4250, %v4604
        %v4606 = vpop.f32.mrb[0].mxu0
        %4607 = vmatprep.mubr.f32.mxu0 0.0
        %v4608 = vand.u32 %v3251, 4294901760
        %v4609 = vsub.f32 %v3251, %v4608
        %v4610 = vand.u32 %v4609, 4294901760
        %4611 = vmatmul.mubr.f32.gmra.mrb[0].mxu0 %v4610
        %v4612 = vpop.f32.mrb[0].mxu0
        %v4613 = vadd.f32 %v4257, %v4612
        %v4614 = vpop.f32.mrb[0].mxu0
        %4615 = vmatprep.mubr.f32.mxu0 0.0
        %v4616 = vand.u32 %v3254, 4294901760
        %v4617 = vsub.f32 %v3254, %v4616
        %v4618 = vand.u32 %v4617, 4294901760
        %4619 = vmatmul.mubr.f32.gmra.mrb[0].mxu0 %v4618
        %v4620 = vpop.f32.mrb[0].mxu0
        %v4621 = vadd.f32 %v4264, %v4620
        %v4622 = vpop.f32.mrb[0].mxu0
        %4623 = vmatprep.mubr.f32.mxu0 0.0
        %v4624 = vand.u32 %v3257, 4294901760
        %v4625 = vsub.f32 %v3257, %v4624
        %v4626 = vand.u32 %v4625, 4294901760
        %4627 = vmatmul.mubr.f32.gmra.mrb[0].mxu0 %v4626
        %v4628 = vpop.f32.mrb[0].mxu0
        %v4629 = vadd.f32 %v4271, %v4628
        %v4630 = vpop.f32.mrb[0].mxu0
        %4631 = vmatprep.mubr.f32.mxu0 0.0
        %v4632 = vand.u32 %v3260, 4294901760
        %v4633 = vsub.f32 %v3260, %v4632
        %v4634 = vand.u32 %v4633, 4294901760
        %4635 = vmatmul.mubr.f32.gmra.mrb[0].mxu0 %v4634
        %v4636 = vpop.f32.mrb[0].mxu0
        %v4637 = vadd.f32 %v4278, %v4636
        %v4638 = vpop.f32.mrb[0].mxu0
        %4639 = vmatprep.mubr.f32.mxu0 0.0
        %v4640 = vand.u32 %v3263, 4294901760
        %v4641 = vsub.f32 %v3263, %v4640
        %v4642 = vand.u32 %v4641, 4294901760
        %4643 = vmatmul.mubr.f32.gmra.mrb[0].mxu0 %v4642
        %v4644 = vpop.f32.mrb[0].mxu0
        %v4645 = vadd.f32 %v4285, %v4644
        %v4646 = vpop.f32.mrb[0].mxu0
        %4647 = vmatprep.mubr.f32.mxu0 0.0
        %v4648 = vand.u32 %v3266, 4294901760
        %v4649 = vsub.f32 %v3266, %v4648
        %v4650 = vand.u32 %v4649, 4294901760
        %4651 = vmatmul.mubr.f32.gmra.mrb[0].mxu0 %v4650
        %v4652 = vpop.f32.mrb[0].mxu0
        %v4653 = vadd.f32 %v4292, %v4652
        %v4654 = vpop.f32.mrb[0].mxu0
        %4655 = vmatprep.mubr.f32.mxu0 0.0
        %v4656 = vand.u32 %v3269, 4294901760
        %v4657 = vsub.f32 %v3269, %v4656
        %v4658 = vand.u32 %v4657, 4294901760
        %4659 = vmatmul.mubr.f32.gmra.mrb[0].mxu0 %v4658
        %v4660 = vpop.f32.mrb[0].mxu0
        %v4661 = vadd.f32 %v4299, %v4660
        %v4662 = vpop.f32.mrb[0].mxu0
        %4663 = vmatprep.mubr.f32.mxu0 0.0
        %v4664 = vand.u32 %v3272, 4294901760
        %v4665 = vsub.f32 %v3272, %v4664
        %v4666 = vand.u32 %v4665, 4294901760
        %4667 = vmatmul.mubr.f32.gmra.mrb[0].mxu0 %v4666
        %v4668 = vpop.f32.mrb[0].mxu0
        %v4669 = vadd.f32 %v4306, %v4668
        %v4670 = vpop.f32.mrb[0].mxu0
        %4671 = vmatprep.mubr.f32.mxu0 0.0
        %v4672 = vand.u32 %v3275, 4294901760
        %v4673 = vsub.f32 %v3275, %v4672
        %v4674 = vand.u32 %v4673, 4294901760
        %4675 = vmatmul.mubr.f32.gmra.mrb[0].mxu0 %v4674
        %v4676 = vpop.f32.mrb[0].mxu0
        %v4677 = vadd.f32 %v4313, %v4676
        %v4678 = vpop.f32.mrb[0].mxu0
        %4679 = vmatprep.mubr.f32.mxu0 0.0
        %v4680 = vand.u32 %v3278, 4294901760
        %v4681 = vsub.f32 %v3278, %v4680
        %v4682 = vand.u32 %v4681, 4294901760
        %4683 = vmatmul.mubr.f32.gmra.mrb[0].mxu0 %v4682
        %v4684 = vpop.f32.mrb[0].mxu0
        %v4685 = vadd.f32 %v4320, %v4684
        %v4686 = vpop.f32.mrb[0].mxu0
        %4687 = vmatprep.mubr.f32.mxu0 0.0
        %v4688 = vand.u32 %v3281, 4294901760
        %v4689 = vsub.f32 %v3281, %v4688
        %v4690 = vand.u32 %v4689, 4294901760
        %4691 = vmatmul.mubr.f32.gmra.mrb[0].mxu0 %v4690
        %v4692 = vpop.f32.mrb[0].mxu0
        %v4693 = vadd.f32 %v4327, %v4692
        %v4694 = vpop.f32.mrb[0].mxu0
        %4695 = vmatprep.mubr.f32.mxu0 0.0
        %v4696 = vand.u32 %v3284, 4294901760
        %v4697 = vsub.f32 %v3284, %v4696
        %v4698 = vand.u32 %v4697, 4294901760
        %4699 = vmatmul.mubr.f32.gmra.mrb[0].mxu0 %v4698
        %v4700 = vpop.f32.mrb[0].mxu0
        %v4701 = vadd.f32 %v4334, %v4700
        %v4702 = vpop.f32.mrb[0].mxu0
        %4703 = vmatprep.mubr.f32.mxu0 0.0
        %v4704 = vand.u32 %v3287, 4294901760
        %v4705 = vsub.f32 %v3287, %v4704
        %v4706 = vand.u32 %v4705, 4294901760
        %4707 = vmatmul.mubr.f32.gmra.mrb[0].mxu0 %v4706
        %v4708 = vpop.f32.mrb[0].mxu0
        %v4709 = vadd.f32 %v4341, %v4708
        %v4710 = vpop.f32.mrb[0].mxu0
        %4711 = vmatprep.mubr.f32.mxu0 0.0
        %v4712 = vand.u32 %v3290, 4294901760
        %v4713 = vsub.f32 %v3290, %v4712
        %v4714 = vand.u32 %v4713, 4294901760
        %4715 = vmatmul.mubr.f32.gmra.mrb[0].mxu0 %v4714
        %v4716 = vpop.f32.mrb[0].mxu0
        %v4717 = vadd.f32 %v4348, %v4716
        %v4718 = vpop.f32.mrb[0].mxu0
        %4719 = vmatprep.mubr.f32.mxu0 0.0
        %v4720 = vand.u32 %v3293, 4294901760
        %v4721 = vsub.f32 %v3293, %v4720
        %v4722 = vand.u32 %v4721, 4294901760
        %4723 = vmatmul.mubr.f32.gmra.mrb[0].mxu0 %v4722
        %v4724 = vpop.f32.mrb[0].mxu0
        %v4725 = vadd.f32 %v4355, %v4724
        %v4726 = vpop.f32.mrb[0].mxu0
        %4727 = vmatprep.mubr.f32.mxu0 0.0
        %v4728 = vand.u32 %v3296, 4294901760
        %v4729 = vsub.f32 %v3296, %v4728
        %v4730 = vand.u32 %v4729, 4294901760
        %4731 = vmatmul.mubr.f32.gmra.mrb[0].mxu0 %v4730
        %v4732 = vpop.f32.mrb[0].mxu0
        %v4733 = vadd.f32 %v4362, %v4732
        %v4734 = vpop.f32.mrb[0].mxu0
        %4735 = vmatprep.mubr.f32.mxu0 0.0
        %v4736 = vand.u32 %v3299, 4294901760
        %v4737 = vsub.f32 %v3299, %v4736
        %v4738 = vand.u32 %v4737, 4294901760
        %4739 = vmatmul.mubr.f32.gmra.mrb[0].mxu0 %v4738
        %v4740 = vpop.f32.mrb[0].mxu0
        %v4741 = vadd.f32 %v4369, %v4740
        %v4742 = vpop.f32.mrb[0].mxu0
        %4743 = vmatprep.mubr.f32.mxu0 0.0
        %v4744 = vand.u32 %v3302, 4294901760
        %v4745 = vsub.f32 %v3302, %v4744
        %v4746 = vand.u32 %v4745, 4294901760
        %4747 = vmatmul.mubr.f32.gmra.mrb[0].mxu0 %v4746
        %v4748 = vpop.f32.mrb[0].mxu0
        %v4749 = vadd.f32 %v4376, %v4748
        %v4750 = vpop.f32.mrb[0].mxu0
        %4751 = vmatprep.mubr.f32.mxu0 0.0
        %v4752 = vand.u32 %v3305, 4294901760
        %v4753 = vsub.f32 %v3305, %v4752
        %v4754 = vand.u32 %v4753, 4294901760
        %4755 = vmatmul.mubr.f32.gmra.mrb[0].mxu0 %v4754
        %v4756 = vpop.f32.mrb[0].mxu0
        %v4757 = vadd.f32 %v4383, %v4756
        %v4758 = vpop.f32.mrb[0].mxu0
        %4759 = vmatprep.mubr.f32.mxu0 0.0
        %v4760 = vand.u32 %v3308, 4294901760
        %v4761 = vsub.f32 %v3308, %v4760
        %v4762 = vand.u32 %v4761, 4294901760
        %4763 = vmatmul.mubr.f32.gmra.mrb[0].mxu0 %v4762
        %v4764 = vpop.f32.mrb[0].mxu0
        %v4765 = vadd.f32 %v4390, %v4764
        %v4766 = vpop.f32.mrb[0].mxu0
        %4767 = vmatprep.mubr.f32.mxu0 0.0
        %v4768 = vand.u32 %v3311, 4294901760
        %v4769 = vsub.f32 %v3311, %v4768
        %v4770 = vand.u32 %v4769, 4294901760
        %4771 = vmatmul.mubr.f32.gmra.mrb[0].mxu0 %v4770
        %v4772 = vpop.f32.mrb[0].mxu0
        %v4773 = vadd.f32 %v4397, %v4772
        %v4774 = vpop.f32.mrb[0].mxu0
        %4775 = vmatprep.mubr.f32.mxu0 0.0
        %v4776 = vand.u32 %v3314, 4294901760
        %v4777 = vsub.f32 %v3314, %v4776
        %v4778 = vand.u32 %v4777, 4294901760
        %4779 = vmatmul.mubr.f32.gmra.mrb[0].mxu0 %v4778
        %v4780 = vpop.f32.mrb[0].mxu0
        %v4781 = vadd.f32 %v4404, %v4780
        %v4782 = vpop.f32.mrb[0].mxu0
        %4783 = vmatprep.mubr.f32.mxu0 0.0
        %v4784 = vand.u32 %v3317, 4294901760
        %v4785 = vsub.f32 %v3317, %v4784
        %v4786 = vand.u32 %v4785, 4294901760
        %4787 = vmatmul.mubr.f32.gmra.mrb[0].mxu0 %v4786
        %v4788 = vpop.f32.mrb[0].mxu0
        %v4789 = vadd.f32 %v4411, %v4788
        %v4790 = vpop.f32.mrb[0].mxu0
        %4791 = vmatprep.mubr.f32.mxu0 0.0
        %v4792 = vand.u32 %v3320, 4294901760
        %v4793 = vsub.f32 %v3320, %v4792
        %v4794 = vand.u32 %v4793, 4294901760
        %4795 = vmatmul.mubr.f32.gmra.mrb[0].mxu0 %v4794
        %v4796 = vpop.f32.mrb[0].mxu0
        %v4797 = vadd.f32 %v4418, %v4796
        %v4798 = vpop.f32.mrb[0].mxu0
        %4799 = vmatprep.mubr.f32.mxu0 0.0
        %v4800 = vand.u32 %v3323, 4294901760
        %v4801 = vsub.f32 %v3323, %v4800
        %v4802 = vand.u32 %v4801, 4294901760
        %4803 = vmatmul.mubr.f32.gmra.mrb[0].mxu0 %v4802
        %v4804 = vpop.f32.mrb[0].mxu0
        %v4805 = vadd.f32 %v4425, %v4804
        %v4806 = vpop.f32.mrb[0].mxu0
        %4807 = vmatprep.mubr.f32.mxu0 0.0
        %v4808 = vand.u32 %v3326, 4294901760
        %v4809 = vsub.f32 %v3326, %v4808
        %v4810 = vand.u32 %v4809, 4294901760
        %4811 = vmatmul.mubr.f32.gmra.mrb[0].mxu0 %v4810
        %v4812 = vpop.f32.mrb[0].mxu0
        %v4813 = vadd.f32 %v4432, %v4812
        %v4814 = vpop.f32.mrb[0].mxu0
        %4815 = vmatprep.mubr.f32.mxu0 0.0
        %v4816 = vand.u32 %v3329, 4294901760
        %v4817 = vsub.f32 %v3329, %v4816
        %v4818 = vand.u32 %v4817, 4294901760
        %4819 = vmatmul.mubr.f32.gmra.mrb[0].mxu0 %v4818
        %v4820 = vpop.f32.mrb[0].mxu0
        %v4821 = vadd.f32 %v4439, %v4820
        %v4822 = vpop.f32.mrb[0].mxu0
        %4823 = vmatprep.mubr.f32.mxu0 0.0
        %v4824 = vand.u32 %v3332, 4294901760
        %v4825 = vsub.f32 %v3332, %v4824
        %v4826 = vand.u32 %v4825, 4294901760
        %4827 = vmatmul.mubr.f32.gmra.mrb[0].mxu0 %v4826
        %v4828 = vpop.f32.mrb[0].mxu0
        %v4829 = vadd.f32 %v4446, %v4828
        %v4830 = vpop.f32.mrb[0].mxu0
        %4831 = vmatprep.mubr.f32.mxu0 0.0
        %v4832 = vand.u32 %v3335, 4294901760
        %v4833 = vsub.f32 %v3335, %v4832
        %v4834 = vand.u32 %v4833, 4294901760
        %4835 = vmatmul.mubr.f32.gmra.mrb[0].mxu0 %v4834
        %v4836 = vpop.f32.mrb[0].mxu0
        %v4837 = vadd.f32 %v4453, %v4836
        %v4838 = vpop.f32.mrb[0].mxu0
        %4839 = vmatprep.mubr.f32.mxu0 0.0
        %v4840 = vand.u32 %v3338, 4294901760
        %v4841 = vsub.f32 %v3338, %v4840
        %v4842 = vand.u32 %v4841, 4294901760
        %4843 = vmatmul.mubr.f32.gmra.mrb[0].mxu0 %v4842
        %v4844 = vpop.f32.mrb[0].mxu0
        %v4845 = vadd.f32 %v4460, %v4844
        %v4846 = vpop.f32.mrb[0].mxu0
        %4847 = vmatprep.mubr.f32.mxu0 0.0
        %v4848 = vand.u32 %v3341, 4294901760
        %v4849 = vsub.f32 %v3341, %v4848
        %v4850 = vand.u32 %v4849, 4294901760
        %4851 = vmatmul.mubr.f32.gmra.mrb[0].mxu0 %v4850
        %v4852 = vpop.f32.mrb[0].mxu0
        %v4853 = vadd.f32 %v4467, %v4852
        %v4854 = vpop.f32.mrb[0].mxu0
        %4855 = vmatprep.mubr.f32.mxu0 0.0
        %v4856 = vand.u32 %v3344, 4294901760
        %v4857 = vsub.f32 %v3344, %v4856
        %v4858 = vand.u32 %v4857, 4294901760
        %4859 = vmatmul.mubr.f32.gmra.mrb[0].mxu0 %v4858
        %v4860 = vpop.f32.mrb[0].mxu0
        %v4861 = vadd.f32 %v4474, %v4860
        %v4862 = vpop.f32.mrb[0].mxu0
        %4863 = vdwg.mxu0
        %4864 = vmatprep.subr.mxu0 0.0
        %v4865 = vand.u32 %v3224, 4294901760
        %v4866 = vsub.f32 %v3224, %v4865
        %v4867 = vand.u32 %v4866, 4294901760
        %4868 = vmatpush1.msra.mxu0 %v4867
        %4869 = vmatprep.subr.mxu0 0.0
        %v4870 = vand.u32 %v3225, 4294901760
        %v4871 = vsub.f32 %v3225, %v4870
        %v4872 = vand.u32 %v4871, 4294901760
        %4873 = vmatpush1.msra.mxu0 %v4872
        %4874 = vmatprep.subr.mxu0 0.0
        %4875 = vmatpush1.msra.mxu0 0.0
        %4876 = vmatprep.subr.mxu0 0.0
        %4877 = vmatpush1.msra.mxu0 0.0
        %4878 = vmatprep.subr.mxu0 0.0
        %4879 = vmatpush1.msra.mxu0 0.0
        %4880 = vmatprep.subr.mxu0 0.0
        %4881 = vmatpush1.msra.mxu0 0.0
        %4882 = vmatprep.subr.mxu0 0.0
        %4883 = vmatpush1.msra.mxu0 0.0
        %4884 = vmatprep.subr.mxu0 0.0
        %4885 = vmatpush1.msra.mxu0 0.0
        %4886 = vmatprep.subr.mxu0 0.0
        %4887 = vmatpush1.msra.mxu0 0.0
        %4888 = vmatprep.subr.mxu0 0.0
        %4889 = vmatpush1.msra.mxu0 0.0
        %4890 = vmatprep.subr.mxu0 0.0
        %4891 = vmatpush1.msra.mxu0 0.0
        %4892 = vmatprep.subr.mxu0 0.0
        %4893 = vmatpush1.msra.mxu0 0.0
        %4894 = vmatprep.subr.mxu0 0.0
        %4895 = vmatpush1.msra.mxu0 0.0
        %4896 = vmatprep.subr.mxu0 0.0
        %4897 = vmatpush1.msra.mxu0 0.0
        %4898 = vmatprep.subr.mxu0 0.0
        %4899 = vmatpush1.msra.mxu0 0.0
        %4900 = vmatprep.subr.mxu0 0.0
        %4901 = vmatpush1.msra.mxu0 0.0
        %4902 = vmatprep.subr.mxu0 0.0
        %4903 = vmatpush1.msra.mxu0 0.0
        %4904 = vmatprep.subr.mxu0 0.0
        %4905 = vmatpush1.msra.mxu0 0.0
        %4906 = vmatprep.subr.mxu0 0.0
        %4907 = vmatpush1.msra.mxu0 0.0
        %4908 = vmatprep.subr.mxu0 0.0
        %4909 = vmatpush1.msra.mxu0 0.0
        %4910 = vmatprep.subr.mxu0 0.0
        %4911 = vmatpush1.msra.mxu0 0.0
        %4912 = vmatprep.subr.mxu0 0.0
        %4913 = vmatpush1.msra.mxu0 0.0
        %4914 = vmatprep.subr.mxu0 0.0
        %4915 = vmatpush1.msra.mxu0 0.0
        %4916 = vmatprep.subr.mxu0 0.0
        %4917 = vmatpush1.msra.mxu0 0.0
        %4918 = vmatprep.subr.mxu0 0.0
        %4919 = vmatpush1.msra.mxu0 0.0
        %4920 = vmatprep.subr.mxu0 0.0
        %4921 = vmatpush1.msra.mxu0 0.0
        %4922 = vmatprep.subr.mxu0 0.0
        %4923 = vmatpush1.msra.mxu0 0.0
        %4924 = vmatprep.subr.mxu0 0.0
        %4925 = vmatpush1.msra.mxu0 0.0
        %4926 = vmatprep.subr.mxu0 0.0
        %4927 = vmatpush1.msra.mxu0 0.0
        %4928 = vmatprep.subr.mxu0 0.0
        %4929 = vmatpush1.msra.mxu0 0.0
        %4930 = vmatprep.subr.mxu0 0.0
        %4931 = vmatpush1.msra.mxu0 0.0
        %4932 = vmatprep.subr.mxu0 0.0
        %4933 = vmatpush1.msra.mxu0 0.0
        %4934 = vmatprep.mubr.f32.mxu0 0.0
        %v4935 = vand.u32 %v3227, 4294901760
        %4936 = vmatmul.mubr.f32.gmra.mrb[0].mxu0 %v4935
        %v4937 = vpop.f32.mrb[0].mxu0
        %v4938 = vadd.f32 %v4549, %v4937
        %v4939 = vpop.f32.mrb[0].mxu0
        %4940 = vmatprep.mubr.f32.mxu0 0.0
        %v4941 = vand.u32 %v3230, 4294901760
        %4942 = vmatmul.mubr.f32.gmra.mrb[0].mxu0 %v4941
        %v4943 = vpop.f32.mrb[0].mxu0
        %v4944 = vadd.f32 %v4557, %v4943
        %v4945 = vpop.f32.mrb[0].mxu0
        %4946 = vmatprep.mubr.f32.mxu0 0.0
        %v4947 = vand.u32 %v3233, 4294901760
        %4948 = vmatmul.mubr.f32.gmra.mrb[0].mxu0 %v4947
        %v4949 = vpop.f32.mrb[0].mxu0
        %v4950 = vadd.f32 %v4565, %v4949
        %v4951 = vpop.f32.mrb[0].mxu0
        %4952 = vmatprep.mubr.f32.mxu0 0.0
        %v4953 = vand.u32 %v3236, 4294901760
        %4954 = vmatmul.mubr.f32.gmra.mrb[0].mxu0 %v4953
        %v4955 = vpop.f32.mrb[0].mxu0
        %v4956 = vadd.f32 %v4573, %v4955
        %v4957 = vpop.f32.mrb[0].mxu0
        %4958 = vmatprep.mubr.f32.mxu0 0.0
        %v4959 = vand.u32 %v3239, 4294901760
        %4960 = vmatmul.mubr.f32.gmra.mrb[0].mxu0 %v4959
        %v4961 = vpop.f32.mrb[0].mxu0
        %v4962 = vadd.f32 %v4581, %v4961
        %v4963 = vpop.f32.mrb[0].mxu0
        %4964 = vmatprep.mubr.f32.mxu0 0.0
        %v4965 = vand.u32 %v3242, 4294901760
        %4966 = vmatmul.mubr.f32.gmra.mrb[0].mxu0 %v4965
        %v4967 = vpop.f32.mrb[0].mxu0
        %v4968 = vadd.f32 %v4589, %v4967
        %v4969 = vpop.f32.mrb[0].mxu0
        %4970 = vmatprep.mubr.f32.mxu0 0.0
        %v4971 = vand.u32 %v3245, 4294901760
        %4972 = vmatmul.mubr.f32.gmra.mrb[0].mxu0 %v4971
        %v4973 = vpop.f32.mrb[0].mxu0
        %v4974 = vadd.f32 %v4597, %v4973
        %v4975 = vpop.f32.mrb[0].mxu0
        %4976 = vmatprep.mubr.f32.mxu0 0.0
        %v4977 = vand.u32 %v3248, 4294901760
        %4978 = vmatmul.mubr.f32.gmra.mrb[0].mxu0 %v4977
        %v4979 = vpop.f32.mrb[0].mxu0
        %v4980 = vadd.f32 %v4605, %v4979
        %v4981 = vpop.f32.mrb[0].mxu0
        %4982 = vmatprep.mubr.f32.mxu0 0.0
        %v4983 = vand.u32 %v3251, 4294901760
        %4984 = vmatmul.mubr.f32.gmra.mrb[0].mxu0 %v4983
        %v4985 = vpop.f32.mrb[0].mxu0
        %v4986 = vadd.f32 %v4613, %v4985
        %v4987 = vpop.f32.mrb[0].mxu0
        %4988 = vmatprep.mubr.f32.mxu0 0.0
        %v4989 = vand.u32 %v3254, 4294901760
        %4990 = vmatmul.mubr.f32.gmra.mrb[0].mxu0 %v4989
        %v4991 = vpop.f32.mrb[0].mxu0
        %v4992 = vadd.f32 %v4621, %v4991
        %v4993 = vpop.f32.mrb[0].mxu0
        %4994 = vmatprep.mubr.f32.mxu0 0.0
        %v4995 = vand.u32 %v3257, 4294901760
        %4996 = vmatmul.mubr.f32.gmra.mrb[0].mxu0 %v4995
        %v4997 = vpop.f32.mrb[0].mxu0
        %v4998 = vadd.f32 %v4629, %v4997
        %v4999 = vpop.f32.mrb[0].mxu0
        %5000 = vmatprep.mubr.f32.mxu0 0.0
        %v5001 = vand.u32 %v3260, 4294901760
        %5002 = vmatmul.mubr.f32.gmra.mrb[0].mxu0 %v5001
        %v5003 = vpop.f32.mrb[0].mxu0
        %v5004 = vadd.f32 %v4637, %v5003
        %v5005 = vpop.f32.mrb[0].mxu0
        %5006 = vmatprep.mubr.f32.mxu0 0.0
        %v5007 = vand.u32 %v3263, 4294901760
        %5008 = vmatmul.mubr.f32.gmra.mrb[0].mxu0 %v5007
        %v5009 = vpop.f32.mrb[0].mxu0
        %v5010 = vadd.f32 %v4645, %v5009
        %v5011 = vpop.f32.mrb[0].mxu0
        %5012 = vmatprep.mubr.f32.mxu0 0.0
        %v5013 = vand.u32 %v3266, 4294901760
        %5014 = vmatmul.mubr.f32.gmra.mrb[0].mxu0 %v5013
        %v5015 = vpop.f32.mrb[0].mxu0
        %v5016 = vadd.f32 %v4653, %v5015
        %v5017 = vpop.f32.mrb[0].mxu0
        %5018 = vmatprep.mubr.f32.mxu0 0.0
        %v5019 = vand.u32 %v3269, 4294901760
        %5020 = vmatmul.mubr.f32.gmra.mrb[0].mxu0 %v5019
        %v5021 = vpop.f32.mrb[0].mxu0
        %v5022 = vadd.f32 %v4661, %v5021
        %v5023 = vpop.f32.mrb[0].mxu0
        %5024 = vmatprep.mubr.f32.mxu0 0.0
        %v5025 = vand.u32 %v3272, 4294901760
        %5026 = vmatmul.mubr.f32.gmra.mrb[0].mxu0 %v5025
        %v5027 = vpop.f32.mrb[0].mxu0
        %v5028 = vadd.f32 %v4669, %v5027
        %v5029 = vpop.f32.mrb[0].mxu0
        %5030 = vmatprep.mubr.f32.mxu0 0.0
        %v5031 = vand.u32 %v3275, 4294901760
        %5032 = vmatmul.mubr.f32.gmra.mrb[0].mxu0 %v5031
        %v5033 = vpop.f32.mrb[0].mxu0
        %v5034 = vadd.f32 %v4677, %v5033
        %v5035 = vpop.f32.mrb[0].mxu0
        %5036 = vmatprep.mubr.f32.mxu0 0.0
        %v5037 = vand.u32 %v3278, 4294901760
        %5038 = vmatmul.mubr.f32.gmra.mrb[0].mxu0 %v5037
        %v5039 = vpop.f32.mrb[0].mxu0
        %v5040 = vadd.f32 %v4685, %v5039
        %v5041 = vpop.f32.mrb[0].mxu0
        %5042 = vmatprep.mubr.f32.mxu0 0.0
        %v5043 = vand.u32 %v3281, 4294901760
        %5044 = vmatmul.mubr.f32.gmra.mrb[0].mxu0 %v5043
        %v5045 = vpop.f32.mrb[0].mxu0
        %v5046 = vadd.f32 %v4693, %v5045
        %v5047 = vpop.f32.mrb[0].mxu0
        %5048 = vmatprep.mubr.f32.mxu0 0.0
        %v5049 = vand.u32 %v3284, 4294901760
        %5050 = vmatmul.mubr.f32.gmra.mrb[0].mxu0 %v5049
        %v5051 = vpop.f32.mrb[0].mxu0
        %v5052 = vadd.f32 %v4701, %v5051
        %v5053 = vpop.f32.mrb[0].mxu0
        %5054 = vmatprep.mubr.f32.mxu0 0.0
        %v5055 = vand.u32 %v3287, 4294901760
        %5056 = vmatmul.mubr.f32.gmra.mrb[0].mxu0 %v5055
        %v5057 = vpop.f32.mrb[0].mxu0
        %v5058 = vadd.f32 %v4709, %v5057
        %v5059 = vpop.f32.mrb[0].mxu0
        %5060 = vmatprep.mubr.f32.mxu0 0.0
        %v5061 = vand.u32 %v3290, 4294901760
        %5062 = vmatmul.mubr.f32.gmra.mrb[0].mxu0 %v5061
        %v5063 = vpop.f32.mrb[0].mxu0
        %v5064 = vadd.f32 %v4717, %v5063
        %v5065 = vpop.f32.mrb[0].mxu0
        %5066 = vmatprep.mubr.f32.mxu0 0.0
        %v5067 = vand.u32 %v3293, 4294901760
        %5068 = vmatmul.mubr.f32.gmra.mrb[0].mxu0 %v5067
        %v5069 = vpop.f32.mrb[0].mxu0
        %v5070 = vadd.f32 %v4725, %v5069
        %v5071 = vpop.f32.mrb[0].mxu0
        %5072 = vmatprep.mubr.f32.mxu0 0.0
        %v5073 = vand.u32 %v3296, 4294901760
        %5074 = vmatmul.mubr.f32.gmra.mrb[0].mxu0 %v5073
        %v5075 = vpop.f32.mrb[0].mxu0
        %v5076 = vadd.f32 %v4733, %v5075
        %v5077 = vpop.f32.mrb[0].mxu0
        %5078 = vmatprep.mubr.f32.mxu0 0.0
        %v5079 = vand.u32 %v3299, 4294901760
        %5080 = vmatmul.mubr.f32.gmra.mrb[0].mxu0 %v5079
        %v5081 = vpop.f32.mrb[0].mxu0
        %v5082 = vadd.f32 %v4741, %v5081
        %v5083 = vpop.f32.mrb[0].mxu0
        %5084 = vmatprep.mubr.f32.mxu0 0.0
        %v5085 = vand.u32 %v3302, 4294901760
        %5086 = vmatmul.mubr.f32.gmra.mrb[0].mxu0 %v5085
        %v5087 = vpop.f32.mrb[0].mxu0
        %v5088 = vadd.f32 %v4749, %v5087
        %v5089 = vpop.f32.mrb[0].mxu0
        %5090 = vmatprep.mubr.f32.mxu0 0.0
        %v5091 = vand.u32 %v3305, 4294901760
        %5092 = vmatmul.mubr.f32.gmra.mrb[0].mxu0 %v5091
        %v5093 = vpop.f32.mrb[0].mxu0
        %v5094 = vadd.f32 %v4757, %v5093
        %v5095 = vpop.f32.mrb[0].mxu0
        %5096 = vmatprep.mubr.f32.mxu0 0.0
        %v5097 = vand.u32 %v3308, 4294901760
        %5098 = vmatmul.mubr.f32.gmra.mrb[0].mxu0 %v5097
        %v5099 = vpop.f32.mrb[0].mxu0
        %v5100 = vadd.f32 %v4765, %v5099
        %v5101 = vpop.f32.mrb[0].mxu0
        %5102 = vmatprep.mubr.f32.mxu0 0.0
        %v5103 = vand.u32 %v3311, 4294901760
        %5104 = vmatmul.mubr.f32.gmra.mrb[0].mxu0 %v5103
        %v5105 = vpop.f32.mrb[0].mxu0
        %v5106 = vadd.f32 %v4773, %v5105
        %v5107 = vpop.f32.mrb[0].mxu0
        %5108 = vmatprep.mubr.f32.mxu0 0.0
        %v5109 = vand.u32 %v3314, 4294901760
        %5110 = vmatmul.mubr.f32.gmra.mrb[0].mxu0 %v5109
        %v5111 = vpop.f32.mrb[0].mxu0
        %v5112 = vadd.f32 %v4781, %v5111
        %v5113 = vpop.f32.mrb[0].mxu0
        %5114 = vmatprep.mubr.f32.mxu0 0.0
        %v5115 = vand.u32 %v3317, 4294901760
        %5116 = vmatmul.mubr.f32.gmra.mrb[0].mxu0 %v5115
        %v5117 = vpop.f32.mrb[0].mxu0
        %v5118 = vadd.f32 %v4789, %v5117
        %v5119 = vpop.f32.mrb[0].mxu0
        %5120 = vmatprep.mubr.f32.mxu0 0.0
        %v5121 = vand.u32 %v3320, 4294901760
        %5122 = vmatmul.mubr.f32.gmra.mrb[0].mxu0 %v5121
        %v5123 = vpop.f32.mrb[0].mxu0
        %v5124 = vadd.f32 %v4797, %v5123
        %v5125 = vpop.f32.mrb[0].mxu0
        %5126 = vmatprep.mubr.f32.mxu0 0.0
        %v5127 = vand.u32 %v3323, 4294901760
        %5128 = vmatmul.mubr.f32.gmra.mrb[0].mxu0 %v5127
        %v5129 = vpop.f32.mrb[0].mxu0
        %v5130 = vadd.f32 %v4805, %v5129
        %v5131 = vpop.f32.mrb[0].mxu0
        %5132 = vmatprep.mubr.f32.mxu0 0.0
        %v5133 = vand.u32 %v3326, 4294901760
        %5134 = vmatmul.mubr.f32.gmra.mrb[0].mxu0 %v5133
        %v5135 = vpop.f32.mrb[0].mxu0
        %v5136 = vadd.f32 %v4813, %v5135
        %v5137 = vpop.f32.mrb[0].mxu0
        %5138 = vmatprep.mubr.f32.mxu0 0.0
        %v5139 = vand.u32 %v3329, 4294901760
        %5140 = vmatmul.mubr.f32.gmra.mrb[0].mxu0 %v5139
        %v5141 = vpop.f32.mrb[0].mxu0
        %v5142 = vadd.f32 %v4821, %v5141
        %v5143 = vpop.f32.mrb[0].mxu0
        %5144 = vmatprep.mubr.f32.mxu0 0.0
        %v5145 = vand.u32 %v3332, 4294901760
        %5146 = vmatmul.mubr.f32.gmra.mrb[0].mxu0 %v5145
        %v5147 = vpop.f32.mrb[0].mxu0
        %v5148 = vadd.f32 %v4829, %v5147
        %v5149 = vpop.f32.mrb[0].mxu0
        %5150 = vmatprep.mubr.f32.mxu0 0.0
        %v5151 = vand.u32 %v3335, 4294901760
        %5152 = vmatmul.mubr.f32.gmra.mrb[0].mxu0 %v5151
        %v5153 = vpop.f32.mrb[0].mxu0
        %v5154 = vadd.f32 %v4837, %v5153
        %v5155 = vpop.f32.mrb[0].mxu0
        %5156 = vmatprep.mubr.f32.mxu0 0.0
        %v5157 = vand.u32 %v3338, 4294901760
        %5158 = vmatmul.mubr.f32.gmra.mrb[0].mxu0 %v5157
        %v5159 = vpop.f32.mrb[0].mxu0
        %v5160 = vadd.f32 %v4845, %v5159
        %v5161 = vpop.f32.mrb[0].mxu0
        %5162 = vmatprep.mubr.f32.mxu0 0.0
        %v5163 = vand.u32 %v3341, 4294901760
        %5164 = vmatmul.mubr.f32.gmra.mrb[0].mxu0 %v5163
        %v5165 = vpop.f32.mrb[0].mxu0
        %v5166 = vadd.f32 %v4853, %v5165
        %v5167 = vpop.f32.mrb[0].mxu0
        %5168 = vmatprep.mubr.f32.mxu0 0.0
        %v5169 = vand.u32 %v3344, 4294901760
        %5170 = vmatmul.mubr.f32.gmra.mrb[0].mxu0 %v5169
        %v5171 = vpop.f32.mrb[0].mxu0
        %v5172 = vadd.f32 %v4861, %v5171
        %v5173 = vpop.f32.mrb[0].mxu0
        %5174 = vdwg.mxu0
        %5175 = vmatprep.subr.mxu0 0.0
        %v5176 = vand.u32 %v3224, 4294901760
        %5177 = vmatpush1.msra.mxu0 %v5176
        %5178 = vmatprep.subr.mxu0 0.0
        %v5179 = vand.u32 %v3225, 4294901760
        %5180 = vmatpush1.msra.mxu0 %v5179
        %5181 = vmatprep.subr.mxu0 0.0
        %5182 = vmatpush1.msra.mxu0 0.0
        %5183 = vmatprep.subr.mxu0 0.0
        %5184 = vmatpush1.msra.mxu0 0.0
        %5185 = vmatprep.subr.mxu0 0.0
        %5186 = vmatpush1.msra.mxu0 0.0
        %5187 = vmatprep.subr.mxu0 0.0
        %5188 = vmatpush1.msra.mxu0 0.0
        %5189 = vmatprep.subr.mxu0 0.0
        %5190 = vmatpush1.msra.mxu0 0.0
        %5191 = vmatprep.subr.mxu0 0.0
        %5192 = vmatpush1.msra.mxu0 0.0
        %5193 = vmatprep.subr.mxu0 0.0
        %5194 = vmatpush1.msra.mxu0 0.0
        %5195 = vmatprep.subr.mxu0 0.0
        %5196 = vmatpush1.msra.mxu0 0.0
        %5197 = vmatprep.subr.mxu0 0.0
        %5198 = vmatpush1.msra.mxu0 0.0
        %5199 = vmatprep.subr.mxu0 0.0
        %5200 = vmatpush1.msra.mxu0 0.0
        %5201 = vmatprep.subr.mxu0 0.0
        %5202 = vmatpush1.msra.mxu0 0.0
        %5203 = vmatprep.subr.mxu0 0.0
        %5204 = vmatpush1.msra.mxu0 0.0
        %5205 = vmatprep.subr.mxu0 0.0
        %5206 = vmatpush1.msra.mxu0 0.0
        %5207 = vmatprep.subr.mxu0 0.0
        %5208 = vmatpush1.msra.mxu0 0.0
        %5209 = vmatprep.subr.mxu0 0.0
        %5210 = vmatpush1.msra.mxu0 0.0
        %5211 = vmatprep.subr.mxu0 0.0
        %5212 = vmatpush1.msra.mxu0 0.0
        %5213 = vmatprep.subr.mxu0 0.0
        %5214 = vmatpush1.msra.mxu0 0.0
        %5215 = vmatprep.subr.mxu0 0.0
        %5216 = vmatpush1.msra.mxu0 0.0
        %5217 = vmatprep.subr.mxu0 0.0
        %5218 = vmatpush1.msra.mxu0 0.0
        %5219 = vmatprep.subr.mxu0 0.0
        %5220 = vmatpush1.msra.mxu0 0.0
        %5221 = vmatprep.subr.mxu0 0.0
        %5222 = vmatpush1.msra.mxu0 0.0
        %5223 = vmatprep.subr.mxu0 0.0
        %5224 = vmatpush1.msra.mxu0 0.0
        %5225 = vmatprep.subr.mxu0 0.0
        %5226 = vmatpush1.msra.mxu0 0.0
        %5227 = vmatprep.subr.mxu0 0.0
        %5228 = vmatpush1.msra.mxu0 0.0
        %5229 = vmatprep.subr.mxu0 0.0
        %5230 = vmatpush1.msra.mxu0 0.0
        %5231 = vmatprep.subr.mxu0 0.0
        %5232 = vmatpush1.msra.mxu0 0.0
        %5233 = vmatprep.subr.mxu0 0.0
        %5234 = vmatpush1.msra.mxu0 0.0
        %5235 = vmatprep.subr.mxu0 0.0
        %5236 = vmatpush1.msra.mxu0 0.0
        %5237 = vmatprep.subr.mxu0 0.0
        %5238 = vmatpush1.msra.mxu0 0.0
        %5239 = vmatprep.subr.mxu0 0.0
        %5240 = vmatpush1.msra.mxu0 0.0
        %5241 = vmatprep.mubr.f32.mxu0 0.0
        %v5242 = vand.u32 %v3227, 4294901760
        %5243 = vmatmul.mubr.f32.gmra.mrb[0].mxu0 %v5242
        %v5244 = vpop.f32.mrb[0].mxu0
        %v5245 = vadd.f32 %v4938, %v5244
        %v5246 = vpop.f32.mrb[0].mxu0
        %5247 = vmatprep.mubr.f32.mxu0 0.0
        %v5248 = vand.u32 %v3230, 4294901760
        %5249 = vmatmul.mubr.f32.gmra.mrb[0].mxu0 %v5248
        %v5250 = vpop.f32.mrb[0].mxu0
        %v5251 = vadd.f32 %v4944, %v5250
        %v5252 = vpop.f32.mrb[0].mxu0
        %5253 = vmatprep.mubr.f32.mxu0 0.0
        %v5254 = vand.u32 %v3233, 4294901760
        %5255 = vmatmul.mubr.f32.gmra.mrb[0].mxu0 %v5254
        %v5256 = vpop.f32.mrb[0].mxu0
        %v5257 = vadd.f32 %v4950, %v5256
        %v5258 = vpop.f32.mrb[0].mxu0
        %5259 = vmatprep.mubr.f32.mxu0 0.0
        %v5260 = vand.u32 %v3236, 4294901760
        %5261 = vmatmul.mubr.f32.gmra.mrb[0].mxu0 %v5260
        %v5262 = vpop.f32.mrb[0].mxu0
        %v5263 = vadd.f32 %v4956, %v5262
        %v5264 = vpop.f32.mrb[0].mxu0
        %5265 = vmatprep.mubr.f32.mxu0 0.0
        %v5266 = vand.u32 %v3239, 4294901760
        %5267 = vmatmul.mubr.f32.gmra.mrb[0].mxu0 %v5266
        %v5268 = vpop.f32.mrb[0].mxu0
        %v5269 = vadd.f32 %v4962, %v5268
        %v5270 = vpop.f32.mrb[0].mxu0
        %5271 = vmatprep.mubr.f32.mxu0 0.0
        %v5272 = vand.u32 %v3242, 4294901760
        %5273 = vmatmul.mubr.f32.gmra.mrb[0].mxu0 %v5272
        %v5274 = vpop.f32.mrb[0].mxu0
        %v5275 = vadd.f32 %v4968, %v5274
        %v5276 = vpop.f32.mrb[0].mxu0
        %5277 = vmatprep.mubr.f32.mxu0 0.0
        %v5278 = vand.u32 %v3245, 4294901760
        %5279 = vmatmul.mubr.f32.gmra.mrb[0].mxu0 %v5278
        %v5280 = vpop.f32.mrb[0].mxu0
        %v5281 = vadd.f32 %v4974, %v5280
        %v5282 = vpop.f32.mrb[0].mxu0
        %5283 = vmatprep.mubr.f32.mxu0 0.0
        %v5284 = vand.u32 %v3248, 4294901760
        %5285 = vmatmul.mubr.f32.gmra.mrb[0].mxu0 %v5284
        %v5286 = vpop.f32.mrb[0].mxu0
        %v5287 = vadd.f32 %v4980, %v5286
        %v5288 = vpop.f32.mrb[0].mxu0
        %5289 = vmatprep.mubr.f32.mxu0 0.0
        %v5290 = vand.u32 %v3251, 4294901760
        %5291 = vmatmul.mubr.f32.gmra.mrb[0].mxu0 %v5290
        %v5292 = vpop.f32.mrb[0].mxu0
        %v5293 = vadd.f32 %v4986, %v5292
        %v5294 = vpop.f32.mrb[0].mxu0
        %5295 = vmatprep.mubr.f32.mxu0 0.0
        %v5296 = vand.u32 %v3254, 4294901760
        %5297 = vmatmul.mubr.f32.gmra.mrb[0].mxu0 %v5296
        %v5298 = vpop.f32.mrb[0].mxu0
        %v5299 = vadd.f32 %v4992, %v5298
        %v5300 = vpop.f32.mrb[0].mxu0
        %5301 = vmatprep.mubr.f32.mxu0 0.0
        %v5302 = vand.u32 %v3257, 4294901760
        %5303 = vmatmul.mubr.f32.gmra.mrb[0].mxu0 %v5302
        %v5304 = vpop.f32.mrb[0].mxu0
        %v5305 = vadd.f32 %v4998, %v5304
        %v5306 = vpop.f32.mrb[0].mxu0
        %5307 = vmatprep.mubr.f32.mxu0 0.0
        %v5308 = vand.u32 %v3260, 4294901760
        %5309 = vmatmul.mubr.f32.gmra.mrb[0].mxu0 %v5308
        %v5310 = vpop.f32.mrb[0].mxu0
        %v5311 = vadd.f32 %v5004, %v5310
        %v5312 = vpop.f32.mrb[0].mxu0
        %5313 = vmatprep.mubr.f32.mxu0 0.0
        %v5314 = vand.u32 %v3263, 4294901760
        %5315 = vmatmul.mubr.f32.gmra.mrb[0].mxu0 %v5314
        %v5316 = vpop.f32.mrb[0].mxu0
        %v5317 = vadd.f32 %v5010, %v5316
        %v5318 = vpop.f32.mrb[0].mxu0
        %5319 = vmatprep.mubr.f32.mxu0 0.0
        %v5320 = vand.u32 %v3266, 4294901760
        %5321 = vmatmul.mubr.f32.gmra.mrb[0].mxu0 %v5320
        %v5322 = vpop.f32.mrb[0].mxu0
        %v5323 = vadd.f32 %v5016, %v5322
        %v5324 = vpop.f32.mrb[0].mxu0
        %5325 = vmatprep.mubr.f32.mxu0 0.0
        %v5326 = vand.u32 %v3269, 4294901760
        %5327 = vmatmul.mubr.f32.gmra.mrb[0].mxu0 %v5326
        %v5328 = vpop.f32.mrb[0].mxu0
        %v5329 = vadd.f32 %v5022, %v5328
        %v5330 = vpop.f32.mrb[0].mxu0
        %5331 = vmatprep.mubr.f32.mxu0 0.0
        %v5332 = vand.u32 %v3272, 4294901760
        %5333 = vmatmul.mubr.f32.gmra.mrb[0].mxu0 %v5332
        %v5334 = vpop.f32.mrb[0].mxu0
        %v5335 = vadd.f32 %v5028, %v5334
        %v5336 = vpop.f32.mrb[0].mxu0
        %5337 = vmatprep.mubr.f32.mxu0 0.0
        %v5338 = vand.u32 %v3275, 4294901760
        %5339 = vmatmul.mubr.f32.gmra.mrb[0].mxu0 %v5338
        %v5340 = vpop.f32.mrb[0].mxu0
        %v5341 = vadd.f32 %v5034, %v5340
        %v5342 = vpop.f32.mrb[0].mxu0
        %5343 = vmatprep.mubr.f32.mxu0 0.0
        %v5344 = vand.u32 %v3278, 4294901760
        %5345 = vmatmul.mubr.f32.gmra.mrb[0].mxu0 %v5344
        %v5346 = vpop.f32.mrb[0].mxu0
        %v5347 = vadd.f32 %v5040, %v5346
        %v5348 = vpop.f32.mrb[0].mxu0
        %5349 = vmatprep.mubr.f32.mxu0 0.0
        %v5350 = vand.u32 %v3281, 4294901760
        %5351 = vmatmul.mubr.f32.gmra.mrb[0].mxu0 %v5350
        %v5352 = vpop.f32.mrb[0].mxu0
        %v5353 = vadd.f32 %v5046, %v5352
        %v5354 = vpop.f32.mrb[0].mxu0
        %5355 = vmatprep.mubr.f32.mxu0 0.0
        %v5356 = vand.u32 %v3284, 4294901760
        %5357 = vmatmul.mubr.f32.gmra.mrb[0].mxu0 %v5356
        %v5358 = vpop.f32.mrb[0].mxu0
        %v5359 = vadd.f32 %v5052, %v5358
        %v5360 = vpop.f32.mrb[0].mxu0
        %5361 = vmatprep.mubr.f32.mxu0 0.0
        %v5362 = vand.u32 %v3287, 4294901760
        %5363 = vmatmul.mubr.f32.gmra.mrb[0].mxu0 %v5362
        %v5364 = vpop.f32.mrb[0].mxu0
        %v5365 = vadd.f32 %v5058, %v5364
        %v5366 = vpop.f32.mrb[0].mxu0
        %5367 = vmatprep.mubr.f32.mxu0 0.0
        %v5368 = vand.u32 %v3290, 4294901760
        %5369 = vmatmul.mubr.f32.gmra.mrb[0].mxu0 %v5368
        %v5370 = vpop.f32.mrb[0].mxu0
        %v5371 = vadd.f32 %v5064, %v5370
        %v5372 = vpop.f32.mrb[0].mxu0
        %5373 = vmatprep.mubr.f32.mxu0 0.0
        %v5374 = vand.u32 %v3293, 4294901760
        %5375 = vmatmul.mubr.f32.gmra.mrb[0].mxu0 %v5374
        %v5376 = vpop.f32.mrb[0].mxu0
        %v5377 = vadd.f32 %v5070, %v5376
        %v5378 = vpop.f32.mrb[0].mxu0
        %5379 = vmatprep.mubr.f32.mxu0 0.0
        %v5380 = vand.u32 %v3296, 4294901760
        %5381 = vmatmul.mubr.f32.gmra.mrb[0].mxu0 %v5380
        %v5382 = vpop.f32.mrb[0].mxu0
        %v5383 = vadd.f32 %v5076, %v5382
        %v5384 = vpop.f32.mrb[0].mxu0
        %5385 = vmatprep.mubr.f32.mxu0 0.0
        %v5386 = vand.u32 %v3299, 4294901760
        %5387 = vmatmul.mubr.f32.gmra.mrb[0].mxu0 %v5386
        %v5388 = vpop.f32.mrb[0].mxu0
        %v5389 = vadd.f32 %v5082, %v5388
        %v5390 = vpop.f32.mrb[0].mxu0
        %5391 = vmatprep.mubr.f32.mxu0 0.0
        %v5392 = vand.u32 %v3302, 4294901760
        %5393 = vmatmul.mubr.f32.gmra.mrb[0].mxu0 %v5392
        %v5394 = vpop.f32.mrb[0].mxu0
        %v5395 = vadd.f32 %v5088, %v5394
        %v5396 = vpop.f32.mrb[0].mxu0
        %5397 = vmatprep.mubr.f32.mxu0 0.0
        %v5398 = vand.u32 %v3305, 4294901760
        %5399 = vmatmul.mubr.f32.gmra.mrb[0].mxu0 %v5398
        %v5400 = vpop.f32.mrb[0].mxu0
        %v5401 = vadd.f32 %v5094, %v5400
        %v5402 = vpop.f32.mrb[0].mxu0
        %5403 = vmatprep.mubr.f32.mxu0 0.0
        %v5404 = vand.u32 %v3308, 4294901760
        %5405 = vmatmul.mubr.f32.gmra.mrb[0].mxu0 %v5404
        %v5406 = vpop.f32.mrb[0].mxu0
        %v5407 = vadd.f32 %v5100, %v5406
        %v5408 = vpop.f32.mrb[0].mxu0
        %5409 = vmatprep.mubr.f32.mxu0 0.0
        %v5410 = vand.u32 %v3311, 4294901760
        %5411 = vmatmul.mubr.f32.gmra.mrb[0].mxu0 %v5410
        %v5412 = vpop.f32.mrb[0].mxu0
        %v5413 = vadd.f32 %v5106, %v5412
        %v5414 = vpop.f32.mrb[0].mxu0
        %5415 = vmatprep.mubr.f32.mxu0 0.0
        %v5416 = vand.u32 %v3314, 4294901760
        %5417 = vmatmul.mubr.f32.gmra.mrb[0].mxu0 %v5416
        %v5418 = vpop.f32.mrb[0].mxu0
        %v5419 = vadd.f32 %v5112, %v5418
        %v5420 = vpop.f32.mrb[0].mxu0
        %5421 = vmatprep.mubr.f32.mxu0 0.0
        %v5422 = vand.u32 %v3317, 4294901760
        %5423 = vmatmul.mubr.f32.gmra.mrb[0].mxu0 %v5422
        %v5424 = vpop.f32.mrb[0].mxu0
        %v5425 = vadd.f32 %v5118, %v5424
        %v5426 = vpop.f32.mrb[0].mxu0
        %5427 = vmatprep.mubr.f32.mxu0 0.0
        %v5428 = vand.u32 %v3320, 4294901760
        %5429 = vmatmul.mubr.f32.gmra.mrb[0].mxu0 %v5428
        %v5430 = vpop.f32.mrb[0].mxu0
        %v5431 = vadd.f32 %v5124, %v5430
        %v5432 = vpop.f32.mrb[0].mxu0
        %5433 = vmatprep.mubr.f32.mxu0 0.0
        %v5434 = vand.u32 %v3323, 4294901760
        %5435 = vmatmul.mubr.f32.gmra.mrb[0].mxu0 %v5434
        %v5436 = vpop.f32.mrb[0].mxu0
        %v5437 = vadd.f32 %v5130, %v5436
        %v5438 = vpop.f32.mrb[0].mxu0
        %5439 = vmatprep.mubr.f32.mxu0 0.0
        %v5440 = vand.u32 %v3326, 4294901760
        %5441 = vmatmul.mubr.f32.gmra.mrb[0].mxu0 %v5440
        %v5442 = vpop.f32.mrb[0].mxu0
        %v5443 = vadd.f32 %v5136, %v5442
        %v5444 = vpop.f32.mrb[0].mxu0
        %5445 = vmatprep.mubr.f32.mxu0 0.0
        %v5446 = vand.u32 %v3329, 4294901760
        %5447 = vmatmul.mubr.f32.gmra.mrb[0].mxu0 %v5446
        %v5448 = vpop.f32.mrb[0].mxu0
        %v5449 = vadd.f32 %v5142, %v5448
        %v5450 = vpop.f32.mrb[0].mxu0
        %5451 = vmatprep.mubr.f32.mxu0 0.0
        %v5452 = vand.u32 %v3332, 4294901760
        %5453 = vmatmul.mubr.f32.gmra.mrb[0].mxu0 %v5452
        %v5454 = vpop.f32.mrb[0].mxu0
        %v5455 = vadd.f32 %v5148, %v5454
        %v5456 = vpop.f32.mrb[0].mxu0
        %5457 = vmatprep.mubr.f32.mxu0 0.0
        %v5458 = vand.u32 %v3335, 4294901760
        %5459 = vmatmul.mubr.f32.gmra.mrb[0].mxu0 %v5458
        %v5460 = vpop.f32.mrb[0].mxu0
        %v5461 = vadd.f32 %v5154, %v5460
        %v5462 = vpop.f32.mrb[0].mxu0
        %5463 = vmatprep.mubr.f32.mxu0 0.0
        %v5464 = vand.u32 %v3338, 4294901760
        %5465 = vmatmul.mubr.f32.gmra.mrb[0].mxu0 %v5464
        %v5466 = vpop.f32.mrb[0].mxu0
        %v5467 = vadd.f32 %v5160, %v5466
        %v5468 = vpop.f32.mrb[0].mxu0
        %5469 = vmatprep.mubr.f32.mxu0 0.0
        %v5470 = vand.u32 %v3341, 4294901760
        %5471 = vmatmul.mubr.f32.gmra.mrb[0].mxu0 %v5470
        %v5472 = vpop.f32.mrb[0].mxu0
        %v5473 = vadd.f32 %v5166, %v5472
        %v5474 = vpop.f32.mrb[0].mxu0
        %5475 = vmatprep.mubr.f32.mxu0 0.0
        %v5476 = vand.u32 %v3344, 4294901760
        %5477 = vmatmul.mubr.f32.gmra.mrb[0].mxu0 %v5476
        %v5478 = vpop.f32.mrb[0].mxu0
        %v5479 = vadd.f32 %v5172, %v5478
        %v5480 = vpop.f32.mrb[0].mxu0
        %5481 = vdwg.mxu0
        %v5482 = vmul.f32 %v5245, %v5245
        %v5483 = vmul.f32 %v5251, %v5251
        %v5484 = vmul.f32 %v5257, %v5257
        %v5485 = vmul.f32 %v5263, %v5263
        %v5486 = vmul.f32 %v5269, %v5269
        %v5487 = vmul.f32 %v5275, %v5275
        %v5488 = vmul.f32 %v5281, %v5281
        %v5489 = vmul.f32 %v5287, %v5287
        %v5490 = vmul.f32 %v5293, %v5293
        %v5491 = vmul.f32 %v5299, %v5299
        %v5492 = vmul.f32 %v5305, %v5305
        %v5493 = vmul.f32 %v5311, %v5311
        %v5494 = vmul.f32 %v5317, %v5317
        %v5495 = vmul.f32 %v5323, %v5323
        %v5496 = vmul.f32 %v5329, %v5329
        %v5497 = vmul.f32 %v5335, %v5335
        %v5498 = vmul.f32 %v5245, %v5293
        %v5499 = vmul.f32 %v5251, %v5299
        %v5500 = vmul.f32 %v5257, %v5305
        %v5501 = vmul.f32 %v5263, %v5311
        %v5502 = vmul.f32 %v5269, %v5317
        %v5503 = vmul.f32 %v5275, %v5323
        %v5504 = vmul.f32 %v5281, %v5329
        %v5505 = vmul.f32 %v5287, %v5335
        %v5506 = vsub.f32 %v5341, %v5482
        %v5507 = vsub.f32 %v5347, %v5483
        %v5508 = vsub.f32 %v5353, %v5484
        %v5509 = vsub.f32 %v5359, %v5485
        %v5510 = vsub.f32 %v5365, %v5486
        %v5511 = vsub.f32 %v5371, %v5487
        %v5512 = vsub.f32 %v5377, %v5488
        %v5513 = vsub.f32 %v5383, %v5489
        %v5514 = vsub.f32 %v5389, %v5490
        %v5515 = vsub.f32 %v5395, %v5491
        %v5516 = vsub.f32 %v5401, %v5492
        %v5517 = vsub.f32 %v5407, %v5493
        %v5518 = vsub.f32 %v5413, %v5494
        %v5519 = vsub.f32 %v5419, %v5495
        %v5520 = vsub.f32 %v5425, %v5496
        %v5521 = vsub.f32 %v5431, %v5497
        %v5522 = vsub.f32 %v5437, %v5498
        %v5523 = vsub.f32 %v5443, %v5499
        %v5524 = vsub.f32 %v5449, %v5500
        %v5525 = vsub.f32 %v5455, %v5501
        %v5526 = vsub.f32 %v5461, %v5502
        %v5527 = vsub.f32 %v5467, %v5503
        %v5528 = vsub.f32 %v5473, %v5504
        %v5529 = vsub.f32 %v5479, %v5505
        %v5530 = vmul.f32 %v5498, 2.0
        %v5531 = vmul.f32 %v5499, 2.0
        %v5532 = vmul.f32 %v5500, 2.0
        %v5533 = vmul.f32 %v5501, 2.0
        %v5534 = vmul.f32 %v5502, 2.0
        %v5535 = vmul.f32 %v5503, 2.0
        %v5536 = vmul.f32 %v5504, 2.0
        %v5537 = vmul.f32 %v5505, 2.0
        %v5538 = vadd.f32 %v5530, 0.0001
        %v5539 = vadd.f32 %v5531, 0.0001
        %v5540 = vadd.f32 %v5532, 0.0001
        %v5541 = vadd.f32 %v5533, 0.0001
        %v5542 = vadd.f32 %v5534, 0.0001
        %v5543 = vadd.f32 %v5535, 0.0001
        %v5544 = vadd.f32 %v5536, 0.0001
        %v5545 = vadd.f32 %v5537, 0.0001
        %v5546 = vmul.f32 %v5522, 2.0
        %v5547 = vmul.f32 %v5523, 2.0
        %v5548 = vmul.f32 %v5524, 2.0
        %v5549 = vmul.f32 %v5525, 2.0
        %v5550 = vmul.f32 %v5526, 2.0
        %v5551 = vmul.f32 %v5527, 2.0
        %v5552 = vmul.f32 %v5528, 2.0
        %v5553 = vmul.f32 %v5529, 2.0
        %v5554 = vadd.f32 %v5546, 0.0009
        %v5555 = vadd.f32 %v5547, 0.0009
        %v5556 = vadd.f32 %v5548, 0.0009
        %v5557 = vadd.f32 %v5549, 0.0009
        %v5558 = vadd.f32 %v5550, 0.0009
        %v5559 = vadd.f32 %v5551, 0.0009
        %v5560 = vadd.f32 %v5552, 0.0009
        %v5561 = vadd.f32 %v5553, 0.0009
        %v5562 = vmul.f32 %v5538, %v5554
        %v5563 = vmul.f32 %v5539, %v5555
        %v5564 = vmul.f32 %v5540, %v5556
        %v5565 = vmul.f32 %v5541, %v5557
        %v5566 = vmul.f32 %v5542, %v5558
        %v5567 = vmul.f32 %v5543, %v5559
        %v5568 = vmul.f32 %v5544, %v5560
        %v5569 = vmul.f32 %v5545, %v5561
        %v5570 = vadd.f32 %v5482, %v5490
        %v5571 = vadd.f32 %v5483, %v5491
        %v5572 = vadd.f32 %v5484, %v5492
        %v5573 = vadd.f32 %v5485, %v5493
        %v5574 = vadd.f32 %v5486, %v5494
        %v5575 = vadd.f32 %v5487, %v5495
        %v5576 = vadd.f32 %v5488, %v5496
        %v5577 = vadd.f32 %v5489, %v5497
        %v5578 = vadd.f32 %v5570, 0.0001
        %v5579 = vadd.f32 %v5571, 0.0001
        %v5580 = vadd.f32 %v5572, 0.0001
        %v5581 = vadd.f32 %v5573, 0.0001
        %v5582 = vadd.f32 %v5574, 0.0001
        %v5583 = vadd.f32 %v5575, 0.0001
        %v5584 = vadd.f32 %v5576, 0.0001
        %v5585 = vadd.f32 %v5577, 0.0001
        %v5586 = vadd.f32 %v5506, %v5514
        %v5587 = vadd.f32 %v5507, %v5515
        %v5588 = vadd.f32 %v5508, %v5516
        %v5589 = vadd.f32 %v5509, %v5517
        %v5590 = vadd.f32 %v5510, %v5518
        %v5591 = vadd.f32 %v5511, %v5519
        %v5592 = vadd.f32 %v5512, %v5520
        %v5593 = vadd.f32 %v5513, %v5521
        %v5594 = vadd.f32 %v5586, 0.0009
        %v5595 = vadd.f32 %v5587, 0.0009
        %v5596 = vadd.f32 %v5588, 0.0009
        %v5597 = vadd.f32 %v5589, 0.0009
        %v5598 = vadd.f32 %v5590, 0.0009
        %v5599 = vadd.f32 %v5591, 0.0009
        %v5600 = vadd.f32 %v5592, 0.0009
        %v5601 = vadd.f32 %v5593, 0.0009
        %v5602 = vmul.f32 %v5578, %v5594
        %v5603 = vmul.f32 %v5579, %v5595
        %v5604 = vmul.f32 %v5580, %v5596
        %v5605 = vmul.f32 %v5581, %v5597
        %v5606 = vmul.f32 %v5582, %v5598
        %v5607 = vmul.f32 %v5583, %v5599
        %v5608 = vmul.f32 %v5584, %v5600
        %v5609 = vmul.f32 %v5585, %v5601
        %v5610 = vrcp.pop %v5602
        %v5611 = vrcp.pop %v5603
        %v5612 = vrcp.pop %v5604
        %v5613 = vrcp.pop %v5605
        %v5614 = vrcp.pop %v5606
        %v5615 = vrcp.pop %v5607
        %v5616 = vrcp.pop %v5608
        %v5617 = vrcp.pop %v5609
        %v5618 = vmul.f32 %v5602, %v5610
        %v5619 = vmul.f32 %v5603, %v5611
        %v5620 = vmul.f32 %v5604, %v5612
        %v5621 = vmul.f32 %v5605, %v5613
        %v5622 = vmul.f32 %v5606, %v5614
        %v5623 = vmul.f32 %v5607, %v5615
        %v5624 = vmul.f32 %v5608, %v5616
        %v5625 = vmul.f32 %v5609, %v5617
        %v5626 = vsub.f32 2.0, %v5618
        %v5627 = vsub.f32 2.0, %v5619
        %v5628 = vsub.f32 2.0, %v5620
        %v5629 = vsub.f32 2.0, %v5621
        %v5630 = vsub.f32 2.0, %v5622
        %v5631 = vsub.f32 2.0, %v5623
        %v5632 = vsub.f32 2.0, %v5624
        %v5633 = vsub.f32 2.0, %v5625
        %v5634 = vmul.f32 %v5610, %v5626
        %v5635 = vmul.f32 %v5611, %v5627
        %v5636 = vmul.f32 %v5612, %v5628
        %v5637 = vmul.f32 %v5613, %v5629
        %v5638 = vmul.f32 %v5614, %v5630
        %v5639 = vmul.f32 %v5615, %v5631
        %v5640 = vmul.f32 %v5616, %v5632
        %v5641 = vmul.f32 %v5617, %v5633
        %v5642 = vmul.f32 %v5562, %v5634
        %v5643 = vmul.f32 %v5563, %v5635
        %v5644 = vmul.f32 %v5564, %v5636
        %v5645 = vmul.f32 %v5565, %v5637
        %v5646 = vmul.f32 %v5566, %v5638
        %v5647 = vmul.f32 %v5567, %v5639
        %v5648 = vmul.f32 %v5568, %v5640
        %v5649 = vmul.f32 %v5569, %v5641
        %v5650 = vmax.f32 %v5642, 0.0
        %v5651 = vmax.f32 %v5643, 0.0
        %v5652 = vmax.f32 %v5644, 0.0
        %v5653 = vmax.f32 %v5645, 0.0
        %v5654 = vmax.f32 %v5646, 0.0
        %v5655 = vmax.f32 %v5647, 0.0
        %v5656 = vmax.f32 %v5648, 0.0
        %v5657 = vmax.f32 %v5649, 0.0
        %v5658 = vmin.f32 %v5650, 1.0
        %v5659 = vmin.f32 %v5651, 1.0
        %v5660 = vmin.f32 %v5652, 1.0
        %v5661 = vmin.f32 %v5653, 1.0
        %v5662 = vmin.f32 %v5654, 1.0
        %v5663 = vmin.f32 %v5655, 1.0
        %v5664 = vmin.f32 %v5656, 1.0
        %v5665 = vmin.f32 %v5657, 1.0
        %5666 = vxpose.xlu0.b32.start [1/16] %v5658, 128
        %5667 = vxpose.xlu0.b32.cont [2/16] %v5659, 128
        %5668 = vxpose.xlu0.b32.cont [3/16] 0.0, 128
        %5669 = vxpose.xlu0.b32.cont [4/16] 0.0, 128
        %5670 = vxpose.xlu0.b32.cont [5/16] 0.0, 128
        %5671 = vxpose.xlu0.b32.cont [6/16] 0.0, 128
        %5672 = vxpose.xlu0.b32.cont [7/16] 0.0, 128
        %5673 = vxpose.xlu0.b32.cont [8/16] 0.0, 128
        %5674 = vxpose.xlu0.b32.cont [9/16] 0.0, 128
        %5675 = vxpose.xlu0.b32.cont [10/16] 0.0, 128
        %5676 = vxpose.xlu0.b32.cont [11/16] 0.0, 128
        %5677 = vxpose.xlu0.b32.cont [12/16] 0.0, 128
        %5678 = vxpose.xlu0.b32.cont [13/16] 0.0, 128
        %5679 = vxpose.xlu0.b32.cont [14/16] 0.0, 128
        %5680 = vxpose.xlu0.b32.cont [15/16] 0.0, 128
        %5681 = vxpose.xlu0.b32.end [16/16] 0.0, 128
        %v5682 = vpop.trf.xlu0
        %v5683 = vpop.trf.xlu0
        %v5684 = vpop.trf.xlu0
        %v5685 = vpop.trf.xlu0
        %v5686 = vpop.trf.xlu0
        %v5687 = vpop.trf.xlu0
        %v5688 = vpop.trf.xlu0
        %v5689 = vpop.trf.xlu0
        %v5690 = vpop.trf.xlu0
        %v5691 = vpop.trf.xlu0
        %v5692 = vpop.trf.xlu0
        %v5693 = vpop.trf.xlu0
        %v5694 = vpop.trf.xlu0
        %v5695 = vpop.trf.xlu0
        %v5696 = vpop.trf.xlu0
        %v5697 = vpop.trf.xlu0
        %5698 = vxpose.xlu0.b32.start [1/16] %v5660, 128
        %5699 = vxpose.xlu0.b32.cont [2/16] %v5661, 128
        %5700 = vxpose.xlu0.b32.cont [3/16] 0.0, 128
        %5701 = vxpose.xlu0.b32.cont [4/16] 0.0, 128
        %5702 = vxpose.xlu0.b32.cont [5/16] 0.0, 128
        %5703 = vxpose.xlu0.b32.cont [6/16] 0.0, 128
        %5704 = vxpose.xlu0.b32.cont [7/16] 0.0, 128
        %5705 = vxpose.xlu0.b32.cont [8/16] 0.0, 128
        %5706 = vxpose.xlu0.b32.cont [9/16] 0.0, 128
        %5707 = vxpose.xlu0.b32.cont [10/16] 0.0, 128
        %5708 = vxpose.xlu0.b32.cont [11/16] 0.0, 128
        %5709 = vxpose.xlu0.b32.cont [12/16] 0.0, 128
        %5710 = vxpose.xlu0.b32.cont [13/16] 0.0, 128
        %5711 = vxpose.xlu0.b32.cont [14/16] 0.0, 128
        %5712 = vxpose.xlu0.b32.cont [15/16] 0.0, 128
        %5713 = vxpose.xlu0.b32.end [16/16] 0.0, 128
        %v5714 = vpop.trf.xlu0
        %v5715 = vpop.trf.xlu0
        %v5716 = vpop.trf.xlu0
        %v5717 = vpop.trf.xlu0
        %v5718 = vpop.trf.xlu0
        %v5719 = vpop.trf.xlu0
        %v5720 = vpop.trf.xlu0
        %v5721 = vpop.trf.xlu0
        %v5722 = vpop.trf.xlu0
        %v5723 = vpop.trf.xlu0
        %v5724 = vpop.trf.xlu0
        %v5725 = vpop.trf.xlu0
        %v5726 = vpop.trf.xlu0
        %v5727 = vpop.trf.xlu0
        %v5728 = vpop.trf.xlu0
        %v5729 = vpop.trf.xlu0
        %5730 = vxpose.xlu0.b32.start [1/16] %v5662, 128
        %5731 = vxpose.xlu0.b32.cont [2/16] %v5663, 128
        %5732 = vxpose.xlu0.b32.cont [3/16] 0.0, 128
        %5733 = vxpose.xlu0.b32.cont [4/16] 0.0, 128
        %5734 = vxpose.xlu0.b32.cont [5/16] 0.0, 128
        %5735 = vxpose.xlu0.b32.cont [6/16] 0.0, 128
        %5736 = vxpose.xlu0.b32.cont [7/16] 0.0, 128
        %5737 = vxpose.xlu0.b32.cont [8/16] 0.0, 128
        %5738 = vxpose.xlu0.b32.cont [9/16] 0.0, 128
        %5739 = vxpose.xlu0.b32.cont [10/16] 0.0, 128
        %5740 = vxpose.xlu0.b32.cont [11/16] 0.0, 128
        %5741 = vxpose.xlu0.b32.cont [12/16] 0.0, 128
        %5742 = vxpose.xlu0.b32.cont [13/16] 0.0, 128
        %5743 = vxpose.xlu0.b32.cont [14/16] 0.0, 128
        %5744 = vxpose.xlu0.b32.cont [15/16] 0.0, 128
        %5745 = vxpose.xlu0.b32.end [16/16] 0.0, 128
        %v5746 = vpop.trf.xlu0
        %v5747 = vpop.trf.xlu0
        %v5748 = vpop.trf.xlu0
        %v5749 = vpop.trf.xlu0
        %v5750 = vpop.trf.xlu0
        %v5751 = vpop.trf.xlu0
        %v5752 = vpop.trf.xlu0
        %v5753 = vpop.trf.xlu0
        %v5754 = vpop.trf.xlu0
        %v5755 = vpop.trf.xlu0
        %v5756 = vpop.trf.xlu0
        %v5757 = vpop.trf.xlu0
        %v5758 = vpop.trf.xlu0
        %v5759 = vpop.trf.xlu0
        %v5760 = vpop.trf.xlu0
        %v5761 = vpop.trf.xlu0
        %5762 = vxpose.xlu0.b32.start [1/16] %v5664, 128
        %5763 = vxpose.xlu0.b32.cont [2/16] %v5665, 128
        %5764 = vxpose.xlu0.b32.cont [3/16] 0.0, 128
        %5765 = vxpose.xlu0.b32.cont [4/16] 0.0, 128
        %5766 = vxpose.xlu0.b32.cont [5/16] 0.0, 128
        %5767 = vxpose.xlu0.b32.cont [6/16] 0.0, 128
        %5768 = vxpose.xlu0.b32.cont [7/16] 0.0, 128
        %5769 = vxpose.xlu0.b32.cont [8/16] 0.0, 128
        %5770 = vxpose.xlu0.b32.cont [9/16] 0.0, 128
        %5771 = vxpose.xlu0.b32.cont [10/16] 0.0, 128
        %5772 = vxpose.xlu0.b32.cont [11/16] 0.0, 128
        %5773 = vxpose.xlu0.b32.cont [12/16] 0.0, 128
        %5774 = vxpose.xlu0.b32.cont [13/16] 0.0, 128
        %5775 = vxpose.xlu0.b32.cont [14/16] 0.0, 128
        %5776 = vxpose.xlu0.b32.cont [15/16] 0.0, 128
        %5777 = vxpose.xlu0.b32.end [16/16] 0.0, 128
        %v5778 = vpop.trf.xlu0
        %v5779 = vpop.trf.xlu0
        %v5780 = vpop.trf.xlu0
        %v5781 = vpop.trf.xlu0
        %v5782 = vpop.trf.xlu0
        %v5783 = vpop.trf.xlu0
        %v5784 = vpop.trf.xlu0
        %v5785 = vpop.trf.xlu0
        %v5786 = vpop.trf.xlu0
        %v5787 = vpop.trf.xlu0
        %v5788 = vpop.trf.xlu0
        %v5789 = vpop.trf.xlu0
        %v5790 = vpop.trf.xlu0
        %v5791 = vpop.trf.xlu0
        %v5792 = vpop.trf.xlu0
        %v5793 = vpop.trf.xlu0
        %5794 = vst.msk [vmem:[%s281] sm:$0xff] %vm327, %v5682
        %5795 = vst.msk [vmem:[%s281 + $0x8] sm:$0xff] %vm327, %v5683
        %5796 = vst.msk [vmem:[%s281 + $0x10] sm:$0xff] %vm327, %v5714
        %5797 = vst.msk [vmem:[%s281 + $0x18] sm:$0xff] %vm327, %v5715
        %5798 = vst.msk [vmem:[%s281 + $0x20] sm:$0xff] %vm327, %v5746
        %5799 = vst.msk [vmem:[%s281 + $0x28] sm:$0xff] %vm327, %v5747
        %5800 = vst.msk [vmem:[%s281 + $0x30] sm:$0xff] %vm327, %v5778
        %5801 = vst.msk [vmem:[%s281 + $0x38] sm:$0xff] %vm327, %v5779
        %s5802 = sand.u32 %s122, 1
        %s5803 = scalar_lea.sflag [#allocation4], %s5802
        %s5804 = sand.u32 %s122, 1
        %s5805 = smul.addr %s5804, 64
        %s5806 = scalar_lea.vmem [#allocation9], %s5805
        // Predicated region
        $region53: #{tpu_custom_call.1} parent=35 // pred_check
          %p5807 = pneg %p132
        $region54: #{tpu_custom_call.1} parent=35 // pred_check_branch
          %5809 = sbr.rel (%p5807) target = $region56
        $region55: #{tpu_custom_call.1} parent=35 // pred_region
          %s5810 = smul.u32 4, %s20
          %s5812 = ssub.s32 1024, 1024
          %5813 = vsyncadd %s5803, %s5812
          %s5814 = smul.addr %s5810, 2
          %s5815 = smul.addr %s5814, 128
          %s5816 = scalar_lea.hbm %s4, %s5815
          %s5817 = sshll.u32 %s5806, 4
          %s5818 = int_to_ptr.vmem [resolvable:$true] %s5817
          %5823 = dma.vmem_to_hbm [thread:$0]  %s5818, 1024, %s5816, %s5803, 128, 128, 8
        $region56: #{tpu_custom_call.1} parent=35 // pred_fallthru
          _
      $region36: #{tpu_custom_call.1} parent=5 // pred_fallthru
        _
      %p5824 = scmp.le.s32.totalorder 2, %s15
      // Predicated region
      $region57: #{tpu_custom_call.1} parent=5 // pred_check
        %p5825 = pneg %p5824
      $region58: #{tpu_custom_call.1} parent=5 // pred_check_branch
        %5827 = sbr.rel (%p5825) target = $region60
      $region59: #{tpu_custom_call.1} parent=5 // pred_region
        %s5828 = ssub.s32 %s15, 2
        // Predicated region
        $region61: #{tpu_custom_call.1} parent=59 // pred_check
          %p5829 = pneg %p138
        $region62: #{tpu_custom_call.1} parent=59 // pred_check_branch
          %5831 = sbr.rel (%p5829) target = $region64
        $region63: #{tpu_custom_call.1} parent=59 // pred_region
          %s5832 = sand.u32 %s123, 1
          %s5833 = scalar_lea.sflag [#allocation4], %s5832
          %s5834 = sand.u32 %s123, 1
          %s5835 = smul.addr %s5834, 64
          %s5836 = scalar_lea.vmem [#allocation9], %s5835
          %5837 = dma.done %s5833, 1024
        $region64: #{tpu_custom_call.1} parent=59 // pred_fallthru
          _
      $region60: #{tpu_custom_call.1} parent=5 // pred_fallthru
        _
    $region6: #{tpu_custom_call.1} parent=1 // loop_footer
      %s19 = sadd.s32 1, %s15
    $region7: #{tpu_custom_call.1} parent=1 // loop_footer_branch
      %14 = sbr.rel target = $region3
    $region8: #{tpu_custom_call.1} parent=1 // loop_exit
      _
    %5838 = vsyncpa [#allocation3], 1
    %s5839 = scalar_lea.sflag [#allocation3], 1
    %5840 = vsyncpa %s5839, 1
    %5841 = vsyncpa [#allocation6], 1
    %5842 = vsyncpa [#allocation4], 1
    %s5843 = scalar_lea.sflag [#allocation4], 1
    %5844 = vsyncpa %s5843, 1

</llo_original>
